<compile_context>
chip_gen: v7x
topology: tpu7x:2x2x1
jax: 0.10.0
libtpu: 0.0.40
codegen_flags: <defaults>
</compile_context>

<pallas_src>
import jax
import jax.numpy as jnp
from jax.experimental import pallas as pl
from jax.experimental.pallas import tpu as pltpu


TB = 1024  # batch rows per grid step; multiple of 1024 -> output block is (8, 128)


def _silu(x):
    # SiLU / swish: x * sigmoid(x); reciprocal routed to the EUP (approx vrcp).
    return x * pl.reciprocal(1.0 + jnp.exp(-x), approx=True)


def regmodel_kernel(x_ref, w1_ref, b1_ref, w2_ref, b2_ref, wo_ref, bo_ref, o_ref):
    """Fused MLP tile: two (Linear + SiLU) stages + 16->1 output projection.

    x tile: (TB, n_cont) bf16.  Hidden matmuls on the MXU (bf16 in, f32
    accumulate); activation / bias math in f32.
    """
    x = x_ref[...]  # bf16 (TB, n_cont)

    # layer 1: Linear -> SiLU   (dropout = identity in eval mode)
    h = jnp.dot(x, w1_ref[...], preferred_element_type=jnp.float32) + b1_ref[...]
    h = _silu(h)

    # layer 2: Linear -> SiLU
    h = jnp.dot(h.astype(jnp.bfloat16), w2_ref[...],
                preferred_element_type=jnp.float32) + b2_ref[...]
    h = _silu(h)

    # output projection (K=16, N=1): VPU multiply + minor-axis reduce instead
    # of a padded MXU pass; result emitted as a lane-dense (TB//128, 128) slab
    # so the store is an unmasked full-lane vst.
    tb, hdim = h.shape
    h3 = h.reshape(tb // 128, 128, hdim)                 # sublane regroup
    wrow = wo_ref[...].reshape(1, 1, hdim)               # (1, 1, hdim)
    out = jnp.sum(h3 * wrow, axis=-1) + bo_ref[...]      # (TB//128, 128) f32
    o_ref[...] = out.astype(o_ref.dtype)


def regmodel_forward(x, params, *, tb=TB):
    """x: [B, n_cont] float32 -> [B] float32 (matches x.squeeze() for out_sz=1)."""
    w1, b1, w2, b2, wo, bo = params
    B, n_cont = x.shape
    h1 = w1.shape[1]
    h2 = w2.shape[1]
    out_sz = wo.shape[1]
    assert out_sz == 1, "fused lane-dense output path assumes out_sz == 1"
    assert tb % 1024 == 0, "tb must be a multiple of 1024 for an (8k,128) out block"

    # Pad batch to a multiple of the tile; padded rows are computed & discarded.
    b_pad = ((B + tb - 1) // tb) * tb
    g = b_pad // tb
    x_p = jnp.pad(x, ((0, b_pad - B), (0, 0))).astype(jnp.bfloat16)

    # bf16 weights for the MXU; f32 biases + f32 output projection row.
    w1b = w1.astype(jnp.bfloat16)
    w2b = w2.astype(jnp.bfloat16)
    wo_row = wo.reshape(1, h2).astype(jnp.float32)
    bo_ = bo.reshape(1, 1).astype(jnp.float32)
    b1_ = b1.astype(jnp.float32)
    b2_ = b2.astype(jnp.float32)

    out2d = pl.pallas_call(
        regmodel_kernel,
        out_shape=jax.ShapeDtypeStruct((b_pad // 128, 128), jnp.float32),
        grid=(g,),
        in_specs=[
            pl.BlockSpec((tb, n_cont), lambda i: (i, 0)),   # x: streamed per tile
            pl.BlockSpec((n_cont, h1), lambda i: (0, 0)),   # weights / biases:
            pl.BlockSpec((1, h1), lambda i: (0, 0)),        #   resident in VMEM
            pl.BlockSpec((h1, h2), lambda i: (0, 0)),       #   across all grid steps
            pl.BlockSpec((1, h2), lambda i: (0, 0)),
            pl.BlockSpec((1, h2), lambda i: (0, 0)),
            pl.BlockSpec((1, 1), lambda i: (0, 0)),
        ],
        out_specs=pl.BlockSpec((tb // 128, 128), lambda i: (i, 0)),
        compiler_params=pltpu.CompilerParams(
            dimension_semantics=("parallel",),  # shard batch tiles across TCs (v7x)
        ),
    )(x_p, w1b, b1_, w2b, b2_, wo_row, bo_)

    # Flatten the lane-dense slab back to (B,)  ==  x.squeeze() for out_sz == 1.
    return out2d.reshape(b_pad)[:B]


def init_params(key, n_cont, szs, out_sz):
    """Deterministic parameter init mirroring the module's __init__ shapes.

    Linear weights: kaiming_normal_ (std = sqrt(2 / fan_in)); biases: small
    uniform like PyTorch's default. Stored as [in, out] for the kernel.
    """
    dims = [n_cont] + szs
    keys = jax.random.split(key, 2 * (len(dims) + 1))
    params = []
    ki = 0
    for i in range(len(dims) - 1):
        fan_in, fan_out = dims[i], dims[i + 1]
        w = jax.random.normal(keys[ki], (fan_in, fan_out), jnp.float32) * jnp.sqrt(
            2.0 / fan_in
        )
        ki += 1
        bound = 1.0 / jnp.sqrt(fan_in)
        b = jax.random.uniform(
            keys[ki], (1, fan_out), jnp.float32, minval=-bound, maxval=bound
        )
        ki += 1
        params.extend([w, b])
    fan_in = dims[-1]
    wo = jax.random.normal(keys[ki], (fan_in, out_sz), jnp.float32) * jnp.sqrt(
        2.0 / fan_in
    )
    ki += 1
    bound = 1.0 / jnp.sqrt(fan_in)
    bo = jax.random.uniform(
        keys[ki], (1, out_sz), jnp.float32, minval=-bound, maxval=bound
    )
    params.extend([wo, bo])
    return tuple(params)


def reference_forward(x, params):
    """Plain-JAX f32 reference for correctness checking."""
    w1, b1, w2, b2, wo, bo = params
    h = jax.nn.silu(x @ w1 + b1)
    h = jax.nn.silu(h @ w2 + b2)
    out = h @ wo + bo
    return jnp.squeeze(out)


if __name__ == "__main__":
    # RegModel(n_cont, emb_drop, out_sz, szs, drops) hyperparams:
    n_cont = 16
    szs = [32, 16]
    out_sz = 1
    batch = 2000  # not a multiple of the 1024-row tile -> exercises padding + 2-step grid
    # emb_drop / drops: dropout is identity at inference; BatchNorm is created
    # but never applied in the reference forward(), so neither appears here.

    key = jax.random.PRNGKey(0)
    kx, kp = jax.random.split(key)
    x = jax.random.normal(kx, (batch, n_cont), jnp.float32)
    params = init_params(kp, n_cont, szs, out_sz)

    y = jax.block_until_ready(regmodel_forward(x, params))
    y_ref = reference_forward(x, params)

    assert y.shape == (batch,), y.shape
    # bf16 MXU operands + approx reciprocal => loosened tolerance vs f32 ref.
    max_err = float(jnp.max(jnp.abs(y - y_ref)))
    assert jnp.allclose(y, y_ref, atol=5e-2, rtol=5e-2), max_err

    print("KERNEL_OK")
</pallas_src>

<mosaic_0001>
module attributes {stable_mosaic.version = 11 : i64} {
  func.func @regmodel_kernel(%arg0: i32, %arg1: memref<1024x16xbf16, #tpu.memory_space<vmem>>, %arg2: memref<16x32xbf16, #tpu.memory_space<vmem>>, %arg3: memref<1x32xf32, #tpu.memory_space<vmem>>, %arg4: memref<32x16xbf16, #tpu.memory_space<vmem>>, %arg5: memref<1x16xf32, #tpu.memory_space<vmem>>, %arg6: memref<1x16xf32, #tpu.memory_space<vmem>>, %arg7: memref<1x1xf32, #tpu.memory_space<vmem>>, %arg8: memref<8x128xf32, #tpu.memory_space<vmem>>) attributes {dimension_semantics = [#tpu.dimension_semantics<parallel>], iteration_bounds = array<i64: 2>, scalar_prefetch = 0 : i64, scratch_operands = 0 : i64, tpu.core_type = #tpu.core_type<tc>, window_params = [{transform_indices = @transform_0, window_bounds = array<i64: 1024, 16>}, {pipeline_mode = #tpu.pipeline_mode<synchronous>, transform_indices = @transform_1, window_bounds = array<i64: 16, 32>}, {pipeline_mode = #tpu.pipeline_mode<synchronous>, transform_indices = @transform_2, window_bounds = array<i64: 1, 32>}, {pipeline_mode = #tpu.pipeline_mode<synchronous>, transform_indices = @transform_3, window_bounds = array<i64: 32, 16>}, {pipeline_mode = #tpu.pipeline_mode<synchronous>, transform_indices = @transform_4, window_bounds = array<i64: 1, 16>}, {pipeline_mode = #tpu.pipeline_mode<synchronous>, transform_indices = @transform_5, window_bounds = array<i64: 1, 16>}, {pipeline_mode = #tpu.pipeline_mode<synchronous>, transform_indices = @transform_6, window_bounds = array<i64: 1, 1>}, {transform_indices = @transform_7, window_bounds = array<i64: 8, 128>}]} {
    %c0 = arith.constant 0 : index
    %c0_0 = arith.constant 0 : index
    %0 = vector.load %arg1[%c0, %c0_0] : memref<1024x16xbf16, #tpu.memory_space<vmem>>, vector<1024x16xbf16>
    %c0_1 = arith.constant 0 : index
    %c0_2 = arith.constant 0 : index
    %1 = vector.load %arg2[%c0_1, %c0_2] : memref<16x32xbf16, #tpu.memory_space<vmem>>, vector<16x32xbf16>
    %cst = arith.constant dense<0.000000e+00> : vector<1024x32xf32>
    %2 = tpu.matmul %0, %1, %cst {dimension_numbers = #tpu.dot_dimension_numbers<[1], [0], [0], [1], [0, 0, 1, 1], [], []>} : vector<1024x16xbf16>, vector<16x32xbf16>, vector<1024x32xf32> -> vector<1024x32xf32>
    %c0_3 = arith.constant 0 : index
    %c0_4 = arith.constant 0 : index
    %3 = vector.load %arg3[%c0_3, %c0_4] : memref<1x32xf32, #tpu.memory_space<vmem>>, vector<1x32xf32>
    %4 = vector.broadcast %3 : vector<1x32xf32> to vector<1024x32xf32>
    %5 = arith.addf %2, %4 : vector<1024x32xf32>
    %cst_5 = arith.constant 0.000000e+00 : f32
    %6 = vector.broadcast %cst_5 : f32 to vector<1024x32xf32>
    %7 = arith.subf %6, %5 : vector<1024x32xf32>
    %8 = math.exp %7 : vector<1024x32xf32>
    %cst_6 = arith.constant 1.000000e+00 : f32
    %9 = vector.broadcast %cst_6 : f32 to vector<1024x32xf32>
    %10 = arith.addf %9, %8 : vector<1024x32xf32>
    %11 = tpu.reciprocal %10 {approx = true} : vector<1024x32xf32> -> vector<1024x32xf32>
    %12 = arith.mulf %5, %11 : vector<1024x32xf32>
    %13 = arith.truncf %12 : vector<1024x32xf32> to vector<1024x32xbf16>
    %c0_7 = arith.constant 0 : index
    %c0_8 = arith.constant 0 : index
    %14 = vector.load %arg4[%c0_7, %c0_8] : memref<32x16xbf16, #tpu.memory_space<vmem>>, vector<32x16xbf16>
    %cst_9 = arith.constant dense<0.000000e+00> : vector<1024x16xf32>
    %15 = tpu.matmul %13, %14, %cst_9 {dimension_numbers = #tpu.dot_dimension_numbers<[1], [0], [0], [1], [0, 0, 1, 1], [], []>} : vector<1024x32xbf16>, vector<32x16xbf16>, vector<1024x16xf32> -> vector<1024x16xf32>
    %c0_10 = arith.constant 0 : index
    %c0_11 = arith.constant 0 : index
    %16 = vector.load %arg5[%c0_10, %c0_11] : memref<1x16xf32, #tpu.memory_space<vmem>>, vector<1x16xf32>
    %17 = vector.broadcast %16 : vector<1x16xf32> to vector<1024x16xf32>
    %18 = arith.addf %15, %17 : vector<1024x16xf32>
    %cst_12 = arith.constant 0.000000e+00 : f32
    %19 = vector.broadcast %cst_12 : f32 to vector<1024x16xf32>
    %20 = arith.subf %19, %18 : vector<1024x16xf32>
    %21 = math.exp %20 : vector<1024x16xf32>
    %cst_13 = arith.constant 1.000000e+00 : f32
    %22 = vector.broadcast %cst_13 : f32 to vector<1024x16xf32>
    %23 = arith.addf %22, %21 : vector<1024x16xf32>
    %24 = tpu.reciprocal %23 {approx = true} : vector<1024x16xf32> -> vector<1024x16xf32>
    %25 = arith.mulf %18, %24 : vector<1024x16xf32>
    %26 = vector.shape_cast %25 : vector<1024x16xf32> to vector<8x128x16xf32>
    %c0_14 = arith.constant 0 : index
    %c0_15 = arith.constant 0 : index
    %27 = vector.load %arg6[%c0_14, %c0_15] : memref<1x16xf32, #tpu.memory_space<vmem>>, vector<1x16xf32>
    %28 = vector.shape_cast %27 : vector<1x16xf32> to vector<1x1x16xf32>
    %29 = vector.broadcast %28 : vector<1x1x16xf32> to vector<8x128x16xf32>
    %30 = arith.mulf %26, %29 : vector<8x128x16xf32>
    %cst_16 = arith.constant dense<0.000000e+00> : vector<8x128xf32>
    %31 = vector.multi_reduction <add>, %30, %cst_16 [2] : vector<8x128x16xf32> to vector<8x128xf32>
    %c0_17 = arith.constant 0 : index
    %c0_18 = arith.constant 0 : index
    %32 = vector.load %arg7[%c0_17, %c0_18] : memref<1x1xf32, #tpu.memory_space<vmem>>, vector<1x1xf32>
    %33 = vector.broadcast %32 : vector<1x1xf32> to vector<8x128xf32>
    %34 = arith.addf %31, %33 : vector<8x128xf32>
    %c0_19 = arith.constant 0 : index
    %c0_20 = arith.constant 0 : index
    %35 = vector.load %arg8[%c0_19, %c0_20] : memref<8x128xf32, #tpu.memory_space<vmem>>, vector<8x128xf32>
    tpu.vector_store %arg8[%c0_19, %c0_20], %34 {strides = array<i32>} : memref<8x128xf32, #tpu.memory_space<vmem>>, vector<8x128xf32>,
    return
  }
  func.func @transform_0(%arg0: i32) -> (i32, i32) {
    %c0_i32 = arith.constant 0 : i32
    %c0_i32_0 = arith.constant 0 : i32
    return %arg0, %c0_i32 : i32, i32
  }
  func.func @transform_1(%arg0: i32) -> (i32, i32) {
    %c0_i32 = arith.constant 0 : i32
    %c0_i32_0 = arith.constant 0 : i32
    %c0_i32_1 = arith.constant 0 : i32
    return %c0_i32, %c0_i32_0 : i32, i32
  }
  func.func @transform_2(%arg0: i32) -> (i32, i32) {
    %c0_i32 = arith.constant 0 : i32
    %c0_i32_0 = arith.constant 0 : i32
    %c0_i32_1 = arith.constant 0 : i32
    return %c0_i32, %c0_i32_0 : i32, i32
  }
  func.func @transform_3(%arg0: i32) -> (i32, i32) {
    %c0_i32 = arith.constant 0 : i32
    %c0_i32_0 = arith.constant 0 : i32
    %c0_i32_1 = arith.constant 0 : i32
    return %c0_i32, %c0_i32_0 : i32, i32
  }
  func.func @transform_4(%arg0: i32) -> (i32, i32) {
    %c0_i32 = arith.constant 0 : i32
    %c0_i32_0 = arith.constant 0 : i32
    %c0_i32_1 = arith.constant 0 : i32
    return %c0_i32, %c0_i32_0 : i32, i32
  }
  func.func @transform_5(%arg0: i32) -> (i32, i32) {
    %c0_i32 = arith.constant 0 : i32
    %c0_i32_0 = arith.constant 0 : i32
    %c0_i32_1 = arith.constant 0 : i32
    return %c0_i32, %c0_i32_0 : i32, i32
  }
  func.func @transform_6(%arg0: i32) -> (i32, i32) {
    %c0_i32 = arith.constant 0 : i32
    %c0_i32_0 = arith.constant 0 : i32
    %c0_i32_1 = arith.constant 0 : i32
    return %c0_i32, %c0_i32_0 : i32, i32
  }
  func.func @transform_7(%arg0: i32) -> (i32, i32) {
    %c0_i32 = arith.constant 0 : i32
    %c0_i32_0 = arith.constant 0 : i32
    return %arg0, %c0_i32 : i32, i32
  }
}

</mosaic_0001>

<llo_original>
// kernel: tpu_custom_call.1
$region0: #{tpu_custom_call.1}
  #allocation0 [shape = 'u32[]', space=smem, size = 0x4, offset = 0x4, fixed_abs, tag = 'smem constant byte address 0x4 - core index']
  #allocation1 [shape = 'u32[144,128]{1,0:T(1,128)}', space=vmem, size = 0x12000, scoped, tag = 'internal scratch']
  #allocation2 [shape = 'f32[1,1]{1,0:T(1,128)S(1)}', space=vmem, size = 0x200, scoped, tag = 'scoped memory for tpu_custom_call.1']
  %s0 = inlined_call_operand.vmem [shape: bf16[2048,16], index: 0, kind: input, shape index: {}]
  %s1 = inlined_call_operand.vmem [shape: bf16[16,32], index: 1, kind: input, shape index: {}]
  %s2 = inlined_call_operand.vmem [shape: f32[1,32], index: 2, kind: input, shape index: {}]
  %s3 = inlined_call_operand.vmem [shape: bf16[32,16], index: 3, kind: input, shape index: {}]
  %s4 = inlined_call_operand.vmem [shape: f32[1,16], index: 4, kind: input, shape index: {}]
  %s5 = inlined_call_operand.vmem [shape: f32[1,16], index: 5, kind: input, shape index: {}]
  %s6 = inlined_call_operand.<no memory space> [shape: f32[1,1], index: 6, kind: input, shape index: {}]
  %s7 = inlined_call_operand.hbm [shape: f32[16,128], index: 7, kind: output, shape index: {}]
  %s8 = sld [smem:[#allocation0]]
  $region61: #{tpu_custom_call.1} parent=0
    _
  %s10 = ssub.s32 1, %s8
  %s11 = scalar_select 0, %s10, %s8
  %v12 = vstv %s6
  %13 = vst [vmem:[#allocation2] sm:$0x1] %v12
  $region1: #{tpu_custom_call.1} parent=0
    #allocation3 [shape = 'u8[8192]{0}', space=vmem, size = 0x2000, scoped, tag = 'output window, operand 0']
    #allocation4 [shape = 's32[2]{0}', space=sflag, size = 0x8, scoped, tag = 'scoped memory for tpu_custom_call.1']
    %14 = vsyncpa [#allocation4], 0
    %s15 = scalar_lea.sflag [#allocation4], 1
    %16 = vsyncpa %s15, 0
    loop: start=0, step=1, limit=4
    $region2: #{tpu_custom_call.1} parent=1 // loop_pre_header
      _
    $region3: #{tpu_custom_call.1} parent=1 // loop_header
      %s18 = sphi 0, %s22
      %p19 = scmp.ge.s32.totalorder %s18, 4
      %s28 = sphi 0, %s30
      %s31 = sphi 0, %s28
      %s32 = sphi 0, %s31
      %s48 = sphi 0, %s32
      %s52 = sphi 0, %s52
      %s54 = sphi 0, %s52
      %s55 = sphi 0, %s54
      %s69 = sphi 0, %s55
      %s73 = sphi 0, %s73
      %s75 = sphi 0, %s73
      %s76 = sphi 0, %s75
      %s90 = sphi 0, %s76
      %s94 = sphi 0, %s94
      %s96 = sphi 0, %s94
      %s97 = sphi 0, %s96
      %s111 = sphi 0, %s97
      %s115 = sphi 0, %s115
      %s117 = sphi 0, %s115
      %s118 = sphi 0, %s117
      %s132 = sphi 0, %s118
      %s136 = sphi 0, %s136
      %s138 = sphi 0, %s136
      %s139 = sphi 0, %s138
      %s153 = sphi 0, %s139
      %s157 = sphi 0, %s157
      %s159 = sphi 0, %s157
      %s160 = sphi 0, %s159
      %s174 = sphi 0, %s160
      %s180 = sphi 0, %s182
      %s183 = sphi 0, %s180
      %s184 = sphi 0, %s183
      %s200 = sphi 0, %s184
    $region4: #{tpu_custom_call.1} parent=1 // loop_header_branch
      %21 = sbr.rel (%p19) target = $region8
    $region5: #{tpu_custom_call.1} parent=1 // loop_body
      %s23 = ssub.s32 %s18, 1
      %s24 = ssub.s32 %s18, 2
      %s25 = sadd.s32 %s18, 1
      %s26 = ssub.s32 %s18, %s25
      %p27 = scmp.eq.s32.totalorder %s26, 0
      %s29 = sadd.s32 %s28, 1
      %s30 = scalar_select %p27, %s28, %s29
      %p33 = pneg %p27
      %p34 = scmp.eq.s32.totalorder %s18, 1
      %p35 = por %p33, %p34
      %p36 = scmp.ne.s32.totalorder %s28, %s31
      %p37 = scmp.eq.s32.totalorder %s18, 0
      %p38 = por %p36, %p37
      %p39 = scmp.ne.s32.totalorder %s28, %s31
      %p40 = scmp.eq.s32.totalorder %s23, 1
      %p41 = por %p39, %p40
      %p42 = scmp.ne.s32.totalorder %s31, %s32
      %p43 = scmp.eq.s32.totalorder %s23, 0
      %p44 = por %p42, %p43
      %p45 = scmp.ne.s32.totalorder %s31, %s32
      %p46 = scmp.eq.s32.totalorder %s24, 1
      %p47 = por %p45, %p46
      %p49 = scmp.ne.s32.totalorder %s32, %s48
      %p50 = scmp.eq.s32.totalorder %s24, 0
      %p51 = por %p49, %p50
      %s53 = sadd.s32 %s52, 1
      %p56 = scmp.eq.s32.totalorder %s18, 1
      %p57 = scmp.ne.s32.totalorder %s52, %s54
      %p58 = scmp.eq.s32.totalorder %s18, 0
      %p59 = por %p57, %p58
      %p60 = scmp.ne.s32.totalorder %s52, %s54
      %p61 = scmp.eq.s32.totalorder %s23, 1
      %p62 = por %p60, %p61
      %p63 = scmp.ne.s32.totalorder %s54, %s55
      %p64 = scmp.eq.s32.totalorder %s23, 0
      %p65 = por %p63, %p64
      %p66 = scmp.ne.s32.totalorder %s54, %s55
      %p67 = scmp.eq.s32.totalorder %s24, 1
      %p68 = por %p66, %p67
      %p70 = scmp.ne.s32.totalorder %s55, %s69
      %p71 = scmp.eq.s32.totalorder %s24, 0
      %p72 = por %p70, %p71
      %s74 = sadd.s32 %s73, 1
      %p77 = scmp.eq.s32.totalorder %s18, 1
      %p78 = scmp.ne.s32.totalorder %s73, %s75
      %p79 = scmp.eq.s32.totalorder %s18, 0
      %p80 = por %p78, %p79
      %p81 = scmp.ne.s32.totalorder %s73, %s75
      %p82 = scmp.eq.s32.totalorder %s23, 1
      %p83 = por %p81, %p82
      %p84 = scmp.ne.s32.totalorder %s75, %s76
      %p85 = scmp.eq.s32.totalorder %s23, 0
      %p86 = por %p84, %p85
      %p87 = scmp.ne.s32.totalorder %s75, %s76
      %p88 = scmp.eq.s32.totalorder %s24, 1
      %p89 = por %p87, %p88
      %p91 = scmp.ne.s32.totalorder %s76, %s90
      %p92 = scmp.eq.s32.totalorder %s24, 0
      %p93 = por %p91, %p92
      %s95 = sadd.s32 %s94, 1
      %p98 = scmp.eq.s32.totalorder %s18, 1
      %p99 = scmp.ne.s32.totalorder %s94, %s96
      %p100 = scmp.eq.s32.totalorder %s18, 0
      %p101 = por %p99, %p100
      %p102 = scmp.ne.s32.totalorder %s94, %s96
      %p103 = scmp.eq.s32.totalorder %s23, 1
      %p104 = por %p102, %p103
      %p105 = scmp.ne.s32.totalorder %s96, %s97
      %p106 = scmp.eq.s32.totalorder %s23, 0
      %p107 = por %p105, %p106
      %p108 = scmp.ne.s32.totalorder %s96, %s97
      %p109 = scmp.eq.s32.totalorder %s24, 1
      %p110 = por %p108, %p109
      %p112 = scmp.ne.s32.totalorder %s97, %s111
      %p113 = scmp.eq.s32.totalorder %s24, 0
      %p114 = por %p112, %p113
      %s116 = sadd.s32 %s115, 1
      %p119 = scmp.eq.s32.totalorder %s18, 1
      %p120 = scmp.ne.s32.totalorder %s115, %s117
      %p121 = scmp.eq.s32.totalorder %s18, 0
      %p122 = por %p120, %p121
      %p123 = scmp.ne.s32.totalorder %s115, %s117
      %p124 = scmp.eq.s32.totalorder %s23, 1
      %p125 = por %p123, %p124
      %p126 = scmp.ne.s32.totalorder %s117, %s118
      %p127 = scmp.eq.s32.totalorder %s23, 0
      %p128 = por %p126, %p127
      %p129 = scmp.ne.s32.totalorder %s117, %s118
      %p130 = scmp.eq.s32.totalorder %s24, 1
      %p131 = por %p129, %p130
      %p133 = scmp.ne.s32.totalorder %s118, %s132
      %p134 = scmp.eq.s32.totalorder %s24, 0
      %p135 = por %p133, %p134
      %s137 = sadd.s32 %s136, 1
      %p140 = scmp.eq.s32.totalorder %s18, 1
      %p141 = scmp.ne.s32.totalorder %s136, %s138
      %p142 = scmp.eq.s32.totalorder %s18, 0
      %p143 = por %p141, %p142
      %p144 = scmp.ne.s32.totalorder %s136, %s138
      %p145 = scmp.eq.s32.totalorder %s23, 1
      %p146 = por %p144, %p145
      %p147 = scmp.ne.s32.totalorder %s138, %s139
      %p148 = scmp.eq.s32.totalorder %s23, 0
      %p149 = por %p147, %p148
      %p150 = scmp.ne.s32.totalorder %s138, %s139
      %p151 = scmp.eq.s32.totalorder %s24, 1
      %p152 = por %p150, %p151
      %p154 = scmp.ne.s32.totalorder %s139, %s153
      %p155 = scmp.eq.s32.totalorder %s24, 0
      %p156 = por %p154, %p155
      %s158 = sadd.s32 %s157, 1
      %p161 = scmp.eq.s32.totalorder %s18, 1
      %p162 = scmp.ne.s32.totalorder %s157, %s159
      %p163 = scmp.eq.s32.totalorder %s18, 0
      %p164 = por %p162, %p163
      %p165 = scmp.ne.s32.totalorder %s157, %s159
      %p166 = scmp.eq.s32.totalorder %s23, 1
      %p167 = por %p165, %p166
      %p168 = scmp.ne.s32.totalorder %s159, %s160
      %p169 = scmp.eq.s32.totalorder %s23, 0
      %p170 = por %p168, %p169
      %p171 = scmp.ne.s32.totalorder %s159, %s160
      %p172 = scmp.eq.s32.totalorder %s24, 1
      %p173 = por %p171, %p172
      %p175 = scmp.ne.s32.totalorder %s160, %s174
      %p176 = scmp.eq.s32.totalorder %s24, 0
      %p177 = por %p175, %p176
      %s178 = ssub.s32 %s18, %s25
      %p179 = scmp.eq.s32.totalorder %s178, 0
      %s181 = sadd.s32 %s180, 1
      %s182 = scalar_select %p179, %s180, %s181
      %p185 = pneg %p179
      %p186 = scmp.eq.s32.totalorder %s18, 1
      %p187 = por %p185, %p186
      %p188 = scmp.ne.s32.totalorder %s180, %s183
      %p189 = scmp.eq.s32.totalorder %s18, 0
      %p190 = por %p188, %p189
      %p191 = scmp.ne.s32.totalorder %s180, %s183
      %p192 = scmp.eq.s32.totalorder %s23, 1
      %p193 = por %p191, %p192
      %p194 = scmp.ne.s32.totalorder %s183, %s184
      %p195 = scmp.eq.s32.totalorder %s23, 0
      %p196 = por %p194, %p195
      %p197 = scmp.ne.s32.totalorder %s183, %s184
      %p198 = scmp.eq.s32.totalorder %s24, 1
      %p199 = por %p197, %p198
      %p201 = scmp.ne.s32.totalorder %s184, %s200
      %p202 = scmp.eq.s32.totalorder %s24, 0
      %p203 = por %p201, %p202
      %p204 = scmp.le.s32.totalorder 1, %s18
      %p205 = scmp.lt.s32.totalorder %s18, 3
      %p206 = pnand %p204, %p205
      %p207 = pneg %p206
      // Predicated region
      $region9: #{tpu_custom_call.1} parent=5 // pred_check
        _
      $region10: #{tpu_custom_call.1} parent=5 // pred_check_branch
        %209 = sbr.rel (%p206) target = $region12
      $region11: #{tpu_custom_call.1} parent=5 // pred_region
        %s210 = ssub.s32 %s18, 1
        // Predicated region
        $region13: #{tpu_custom_call.1} parent=11 // pred_check
          %p211 = pneg %p65
        $region14: #{tpu_custom_call.1} parent=11 // pred_check_branch
          %213 = sbr.rel (%p211) target = $region16
        $region15: #{tpu_custom_call.1} parent=11 // pred_region
          _
        $region16: #{tpu_custom_call.1} parent=11 // pred_fallthru
          _
        // Predicated region
        $region17: #{tpu_custom_call.1} parent=11 // pred_check
          %p214 = pneg %p86
        $region18: #{tpu_custom_call.1} parent=11 // pred_check_branch
          %216 = sbr.rel (%p214) target = $region20
        $region19: #{tpu_custom_call.1} parent=11 // pred_region
          _
        $region20: #{tpu_custom_call.1} parent=11 // pred_fallthru
          _
        // Predicated region
        $region21: #{tpu_custom_call.1} parent=11 // pred_check
          %p217 = pneg %p107
        $region22: #{tpu_custom_call.1} parent=11 // pred_check_branch
          %219 = sbr.rel (%p217) target = $region24
        $region23: #{tpu_custom_call.1} parent=11 // pred_region
          _
        $region24: #{tpu_custom_call.1} parent=11 // pred_fallthru
          _
        // Predicated region
        $region25: #{tpu_custom_call.1} parent=11 // pred_check
          %p220 = pneg %p128
        $region26: #{tpu_custom_call.1} parent=11 // pred_check_branch
          %222 = sbr.rel (%p220) target = $region28
        $region27: #{tpu_custom_call.1} parent=11 // pred_region
          _
        $region28: #{tpu_custom_call.1} parent=11 // pred_fallthru
          _
        // Predicated region
        $region29: #{tpu_custom_call.1} parent=11 // pred_check
          %p223 = pneg %p149
        $region30: #{tpu_custom_call.1} parent=11 // pred_check_branch
          %225 = sbr.rel (%p223) target = $region32
        $region31: #{tpu_custom_call.1} parent=11 // pred_region
          _
        $region32: #{tpu_custom_call.1} parent=11 // pred_fallthru
          _
        // Predicated region
        $region33: #{tpu_custom_call.1} parent=11 // pred_check
          %p226 = pneg %p170
        $region34: #{tpu_custom_call.1} parent=11 // pred_check_branch
          %228 = sbr.rel (%p226) target = $region36
        $region35: #{tpu_custom_call.1} parent=11 // pred_region
          _
        $region36: #{tpu_custom_call.1} parent=11 // pred_fallthru
          _
      $region12: #{tpu_custom_call.1} parent=5 // pred_fallthru
        _
      %p229 = scmp.lt.s32.totalorder %s18, 2
      // Predicated region
      $region37: #{tpu_custom_call.1} parent=5 // pred_check
        %p230 = pneg %p229
      $region38: #{tpu_custom_call.1} parent=5 // pred_check_branch
        %232 = sbr.rel (%p230) target = $region40
      $region39: #{tpu_custom_call.1} parent=5 // pred_region
        // Predicated region
        $region41: #{tpu_custom_call.1} parent=39 // pred_check
          %p233 = pneg %p38
        $region42: #{tpu_custom_call.1} parent=39 // pred_check_branch
          %235 = sbr.rel (%p233) target = $region44
        $region43: #{tpu_custom_call.1} parent=39 // pred_region
          %s236 = smul.u32 128, %s18
          %p237 = scmp.lt.s32.totalorder %s236, 255
          %s238 = scalar_select %p237, %s236, 255
          %s239 = smul.addr %s238, 4
          %s240 = scalar_lea.vmem %s0, %s239
          %s241 = smul.u32 128, %s18
        $region44: #{tpu_custom_call.1} parent=39 // pred_fallthru
          _
      $region40: #{tpu_custom_call.1} parent=5 // pred_fallthru
        _
      %p242 = scmp.le.s32.totalorder 1, %s18
      %p243 = scmp.lt.s32.totalorder %s18, 3
      %p244 = pnand %p242, %p243
      %p245 = pneg %p244
      // Predicated region
      $region45: #{tpu_custom_call.1} parent=5 // pred_check
        _
      $region46: #{tpu_custom_call.1} parent=5 // pred_check_branch
        %247 = sbr.rel (%p244) target = $region48
      $region47: #{tpu_custom_call.1} parent=5 // pred_region
        %s248 = ssub.s32 %s18, 1
        %s249 = smul.u32 128, %s23
        %p250 = scmp.lt.s32.totalorder %s249, 255
        %s251 = scalar_select %p250, %s249, 255
        %s252 = smul.addr %s251, 4
        %s253 = scalar_lea.vmem %s0, %s252
        %p254 = pneg %p44
        %p255 = pneg %p41
        %p256 = pneg %p65
        %p257 = pneg %p62
        %p258 = pneg %p86
        %p259 = pneg %p83
        %p260 = pneg %p107
        %p261 = pneg %p104
        %p262 = pneg %p128
        %p263 = pneg %p125
        %p264 = pneg %p149
        %p265 = pneg %p146
        %p266 = pneg %p170
        %p267 = pneg %p167
        %p268 = pneg %p196
        %p269 = pneg %p193
        %s270 = sand.u32 %s183, 1
        %s271 = scalar_lea.sflag [#allocation4], %s270
        %s272 = sand.u32 %s183, 1
        %s273 = smul.addr %s272, 8
        %s274 = scalar_lea.vmem [#allocation3], %s273
        %s275 = smul.u32 128, %s23
        %p276 = scmp.lt.s32.totalorder %s275, 255
        %s277 = scalar_select %p276, %s275, 255
        %s278 = smul.addr %s277, 4
        %s279 = scalar_lea.vmem %s0, %s278
        %s280 = smul.u32 128, %s23
        %v282 = vld [vmem:[%s279] sm:$0xf]
        %v283 = vld [vmem:[%s279 + $0x4] sm:$0xf]
        %v284 = vld [vmem:[%s279 + $0x8] sm:$0xf]
        %v285 = vld [vmem:[%s279 + $0xc] sm:$0xf]
        %v286 = vld [vmem:[%s279 + $0x10] sm:$0xf]
        %v287 = vld [vmem:[%s279 + $0x14] sm:$0xf]
        %v288 = vld [vmem:[%s279 + $0x18] sm:$0xf]
        %v289 = vld [vmem:[%s279 + $0x1c] sm:$0xf]
        %v290 = vld [vmem:[%s279 + $0x20] sm:$0xf]
        %v291 = vld [vmem:[%s279 + $0x24] sm:$0xf]
        %v292 = vld [vmem:[%s279 + $0x28] sm:$0xf]
        %v293 = vld [vmem:[%s279 + $0x2c] sm:$0xf]
        %v294 = vld [vmem:[%s279 + $0x30] sm:$0xf]
        %v295 = vld [vmem:[%s279 + $0x34] sm:$0xf]
        %v296 = vld [vmem:[%s279 + $0x38] sm:$0xf]
        %v297 = vld [vmem:[%s279 + $0x3c] sm:$0xf]
        %v298 = vld [vmem:[%s279 + $0x40] sm:$0xf]
        %v299 = vld [vmem:[%s279 + $0x44] sm:$0xf]
        %v300 = vld [vmem:[%s279 + $0x48] sm:$0xf]
        %v301 = vld [vmem:[%s279 + $0x4c] sm:$0xf]
        %v302 = vld [vmem:[%s279 + $0x50] sm:$0xf]
        %v303 = vld [vmem:[%s279 + $0x54] sm:$0xf]
        %v304 = vld [vmem:[%s279 + $0x58] sm:$0xf]
        %v305 = vld [vmem:[%s279 + $0x5c] sm:$0xf]
        %v306 = vld [vmem:[%s279 + $0x60] sm:$0xf]
        %v307 = vld [vmem:[%s279 + $0x64] sm:$0xf]
        %v308 = vld [vmem:[%s279 + $0x68] sm:$0xf]
        %v309 = vld [vmem:[%s279 + $0x6c] sm:$0xf]
        %v310 = vld [vmem:[%s279 + $0x70] sm:$0xf]
        %v311 = vld [vmem:[%s279 + $0x74] sm:$0xf]
        %v312 = vld [vmem:[%s279 + $0x78] sm:$0xf]
        %v313 = vld [vmem:[%s279 + $0x7c] sm:$0xf]
        %v314 = vld [vmem:[%s279 + $0x80] sm:$0xf]
        %v315 = vld [vmem:[%s279 + $0x84] sm:$0xf]
        %v316 = vld [vmem:[%s279 + $0x88] sm:$0xf]
        %v317 = vld [vmem:[%s279 + $0x8c] sm:$0xf]
        %v318 = vld [vmem:[%s279 + $0x90] sm:$0xf]
        %v319 = vld [vmem:[%s279 + $0x94] sm:$0xf]
        %v320 = vld [vmem:[%s279 + $0x98] sm:$0xf]
        %v321 = vld [vmem:[%s279 + $0x9c] sm:$0xf]
        %v322 = vld [vmem:[%s279 + $0xa0] sm:$0xf]
        %v323 = vld [vmem:[%s279 + $0xa4] sm:$0xf]
        %v324 = vld [vmem:[%s279 + $0xa8] sm:$0xf]
        %v325 = vld [vmem:[%s279 + $0xac] sm:$0xf]
        %v326 = vld [vmem:[%s279 + $0xb0] sm:$0xf]
        %v327 = vld [vmem:[%s279 + $0xb4] sm:$0xf]
        %v328 = vld [vmem:[%s279 + $0xb8] sm:$0xf]
        %v329 = vld [vmem:[%s279 + $0xbc] sm:$0xf]
        %v330 = vld [vmem:[%s279 + $0xc0] sm:$0xf]
        %v331 = vld [vmem:[%s279 + $0xc4] sm:$0xf]
        %v332 = vld [vmem:[%s279 + $0xc8] sm:$0xf]
        %v333 = vld [vmem:[%s279 + $0xcc] sm:$0xf]
        %v334 = vld [vmem:[%s279 + $0xd0] sm:$0xf]
        %v335 = vld [vmem:[%s279 + $0xd4] sm:$0xf]
        %v336 = vld [vmem:[%s279 + $0xd8] sm:$0xf]
        %v337 = vld [vmem:[%s279 + $0xdc] sm:$0xf]
        %v338 = vld [vmem:[%s279 + $0xe0] sm:$0xf]
        %v339 = vld [vmem:[%s279 + $0xe4] sm:$0xf]
        %v340 = vld [vmem:[%s279 + $0xe8] sm:$0xf]
        %v341 = vld [vmem:[%s279 + $0xec] sm:$0xf]
        %v342 = vld [vmem:[%s279 + $0xf0] sm:$0xf]
        %v343 = vld [vmem:[%s279 + $0xf4] sm:$0xf]
        %v344 = vld [vmem:[%s279 + $0xf8] sm:$0xf]
        %v345 = vld [vmem:[%s279 + $0xfc] sm:$0xf]
        %v346 = vld [vmem:[%s279 + $0x100] sm:$0xf]
        %v347 = vld [vmem:[%s279 + $0x104] sm:$0xf]
        %v348 = vld [vmem:[%s279 + $0x108] sm:$0xf]
        %v349 = vld [vmem:[%s279 + $0x10c] sm:$0xf]
        %v350 = vld [vmem:[%s279 + $0x110] sm:$0xf]
        %v351 = vld [vmem:[%s279 + $0x114] sm:$0xf]
        %v352 = vld [vmem:[%s279 + $0x118] sm:$0xf]
        %v353 = vld [vmem:[%s279 + $0x11c] sm:$0xf]
        %v354 = vld [vmem:[%s279 + $0x120] sm:$0xf]
        %v355 = vld [vmem:[%s279 + $0x124] sm:$0xf]
        %v356 = vld [vmem:[%s279 + $0x128] sm:$0xf]
        %v357 = vld [vmem:[%s279 + $0x12c] sm:$0xf]
        %v358 = vld [vmem:[%s279 + $0x130] sm:$0xf]
        %v359 = vld [vmem:[%s279 + $0x134] sm:$0xf]
        %v360 = vld [vmem:[%s279 + $0x138] sm:$0xf]
        %v361 = vld [vmem:[%s279 + $0x13c] sm:$0xf]
        %v362 = vld [vmem:[%s279 + $0x140] sm:$0xf]
        %v363 = vld [vmem:[%s279 + $0x144] sm:$0xf]
        %v364 = vld [vmem:[%s279 + $0x148] sm:$0xf]
        %v365 = vld [vmem:[%s279 + $0x14c] sm:$0xf]
        %v366 = vld [vmem:[%s279 + $0x150] sm:$0xf]
        %v367 = vld [vmem:[%s279 + $0x154] sm:$0xf]
        %v368 = vld [vmem:[%s279 + $0x158] sm:$0xf]
        %v369 = vld [vmem:[%s279 + $0x15c] sm:$0xf]
        %v370 = vld [vmem:[%s279 + $0x160] sm:$0xf]
        %v371 = vld [vmem:[%s279 + $0x164] sm:$0xf]
        %v372 = vld [vmem:[%s279 + $0x168] sm:$0xf]
        %v373 = vld [vmem:[%s279 + $0x16c] sm:$0xf]
        %v374 = vld [vmem:[%s279 + $0x170] sm:$0xf]
        %v375 = vld [vmem:[%s279 + $0x174] sm:$0xf]
        %v376 = vld [vmem:[%s279 + $0x178] sm:$0xf]
        %v377 = vld [vmem:[%s279 + $0x17c] sm:$0xf]
        %v378 = vld [vmem:[%s279 + $0x180] sm:$0xf]
        %v379 = vld [vmem:[%s279 + $0x184] sm:$0xf]
        %v380 = vld [vmem:[%s279 + $0x188] sm:$0xf]
        %v381 = vld [vmem:[%s279 + $0x18c] sm:$0xf]
        %v382 = vld [vmem:[%s279 + $0x190] sm:$0xf]
        %v383 = vld [vmem:[%s279 + $0x194] sm:$0xf]
        %v384 = vld [vmem:[%s279 + $0x198] sm:$0xf]
        %v385 = vld [vmem:[%s279 + $0x19c] sm:$0xf]
        %v386 = vld [vmem:[%s279 + $0x1a0] sm:$0xf]
        %v387 = vld [vmem:[%s279 + $0x1a4] sm:$0xf]
        %v388 = vld [vmem:[%s279 + $0x1a8] sm:$0xf]
        %v389 = vld [vmem:[%s279 + $0x1ac] sm:$0xf]
        %v390 = vld [vmem:[%s279 + $0x1b0] sm:$0xf]
        %v391 = vld [vmem:[%s279 + $0x1b4] sm:$0xf]
        %v392 = vld [vmem:[%s279 + $0x1b8] sm:$0xf]
        %v393 = vld [vmem:[%s279 + $0x1bc] sm:$0xf]
        %v394 = vld [vmem:[%s279 + $0x1c0] sm:$0xf]
        %v395 = vld [vmem:[%s279 + $0x1c4] sm:$0xf]
        %v396 = vld [vmem:[%s279 + $0x1c8] sm:$0xf]
        %v397 = vld [vmem:[%s279 + $0x1cc] sm:$0xf]
        %v398 = vld [vmem:[%s279 + $0x1d0] sm:$0xf]
        %v399 = vld [vmem:[%s279 + $0x1d4] sm:$0xf]
        %v400 = vld [vmem:[%s279 + $0x1d8] sm:$0xf]
        %v401 = vld [vmem:[%s279 + $0x1dc] sm:$0xf]
        %v402 = vld [vmem:[%s279 + $0x1e0] sm:$0xf]
        %v403 = vld [vmem:[%s279 + $0x1e4] sm:$0xf]
        %v404 = vld [vmem:[%s279 + $0x1e8] sm:$0xf]
        %v405 = vld [vmem:[%s279 + $0x1ec] sm:$0xf]
        %v406 = vld [vmem:[%s279 + $0x1f0] sm:$0xf]
        %v407 = vld [vmem:[%s279 + $0x1f4] sm:$0xf]
        %v408 = vld [vmem:[%s279 + $0x1f8] sm:$0xf]
        %v409 = vld [vmem:[%s279 + $0x1fc] sm:$0xf]
        %v410 = vld [vmem:[%s1] sm:$0xf]
        %v411 = vld [vmem:[%s1 + $0x4] sm:$0xf]
        %v412 = vld [vmem:[%s2] sm:$0x1]
        %v414 = vlaneseq
        %v415 = vshrl.u32 %v414, 7
        %v416 = vsub.s32 0, %v415
        %v417 = vrot.slane %v412, %v416
        %v547 = vunpack.c.l.b16 %v282
        %v548 = vunpack.c.l.b16 %v283
        %v549 = vunpack.c.l.b16 %v284
        %v550 = vunpack.c.l.b16 %v285
        %v551 = vunpack.c.l.b16 %v286
        %v552 = vunpack.c.l.b16 %v287
        %v553 = vunpack.c.l.b16 %v288
        %v554 = vunpack.c.l.b16 %v289
        %v555 = vunpack.c.l.b16 %v290
        %v556 = vunpack.c.l.b16 %v291
        %v557 = vunpack.c.l.b16 %v292
        %v558 = vunpack.c.l.b16 %v293
        %v559 = vunpack.c.l.b16 %v294
        %v560 = vunpack.c.l.b16 %v295
        %v561 = vunpack.c.l.b16 %v296
        %v562 = vunpack.c.l.b16 %v297
        %v563 = vunpack.c.l.b16 %v298
        %v564 = vunpack.c.l.b16 %v299
        %v565 = vunpack.c.l.b16 %v300
        %v566 = vunpack.c.l.b16 %v301
        %v567 = vunpack.c.l.b16 %v302
        %v568 = vunpack.c.l.b16 %v303
        %v569 = vunpack.c.l.b16 %v304
        %v570 = vunpack.c.l.b16 %v305
        %v571 = vunpack.c.l.b16 %v306
        %v572 = vunpack.c.l.b16 %v307
        %v573 = vunpack.c.l.b16 %v308
        %v574 = vunpack.c.l.b16 %v309
        %v575 = vunpack.c.l.b16 %v310
        %v576 = vunpack.c.l.b16 %v311
        %v577 = vunpack.c.l.b16 %v312
        %v578 = vunpack.c.l.b16 %v313
        %v579 = vunpack.c.l.b16 %v314
        %v580 = vunpack.c.l.b16 %v315
        %v581 = vunpack.c.l.b16 %v316
        %v582 = vunpack.c.l.b16 %v317
        %v583 = vunpack.c.l.b16 %v318
        %v584 = vunpack.c.l.b16 %v319
        %v585 = vunpack.c.l.b16 %v320
        %v586 = vunpack.c.l.b16 %v321
        %v587 = vunpack.c.l.b16 %v322
        %v588 = vunpack.c.l.b16 %v323
        %v589 = vunpack.c.l.b16 %v324
        %v590 = vunpack.c.l.b16 %v325
        %v591 = vunpack.c.l.b16 %v326
        %v592 = vunpack.c.l.b16 %v327
        %v593 = vunpack.c.l.b16 %v328
        %v594 = vunpack.c.l.b16 %v329
        %v595 = vunpack.c.l.b16 %v330
        %v596 = vunpack.c.l.b16 %v331
        %v597 = vunpack.c.l.b16 %v332
        %v598 = vunpack.c.l.b16 %v333
        %v599 = vunpack.c.l.b16 %v334
        %v600 = vunpack.c.l.b16 %v335
        %v601 = vunpack.c.l.b16 %v336
        %v602 = vunpack.c.l.b16 %v337
        %v603 = vunpack.c.l.b16 %v338
        %v604 = vunpack.c.l.b16 %v339
        %v605 = vunpack.c.l.b16 %v340
        %v606 = vunpack.c.l.b16 %v341
        %v607 = vunpack.c.l.b16 %v342
        %v608 = vunpack.c.l.b16 %v343
        %v609 = vunpack.c.l.b16 %v344
        %v610 = vunpack.c.l.b16 %v345
        %v611 = vunpack.c.l.b16 %v346
        %v612 = vunpack.c.l.b16 %v347
        %v613 = vunpack.c.l.b16 %v348
        %v614 = vunpack.c.l.b16 %v349
        %v615 = vunpack.c.l.b16 %v350
        %v616 = vunpack.c.l.b16 %v351
        %v617 = vunpack.c.l.b16 %v352
        %v618 = vunpack.c.l.b16 %v353
        %v619 = vunpack.c.l.b16 %v354
        %v620 = vunpack.c.l.b16 %v355
        %v621 = vunpack.c.l.b16 %v356
        %v622 = vunpack.c.l.b16 %v357
        %v623 = vunpack.c.l.b16 %v358
        %v624 = vunpack.c.l.b16 %v359
        %v625 = vunpack.c.l.b16 %v360
        %v626 = vunpack.c.l.b16 %v361
        %v627 = vunpack.c.l.b16 %v362
        %v628 = vunpack.c.l.b16 %v363
        %v629 = vunpack.c.l.b16 %v364
        %v630 = vunpack.c.l.b16 %v365
        %v631 = vunpack.c.l.b16 %v366
        %v632 = vunpack.c.l.b16 %v367
        %v633 = vunpack.c.l.b16 %v368
        %v634 = vunpack.c.l.b16 %v369
        %v635 = vunpack.c.l.b16 %v370
        %v636 = vunpack.c.l.b16 %v371
        %v637 = vunpack.c.l.b16 %v372
        %v638 = vunpack.c.l.b16 %v373
        %v639 = vunpack.c.l.b16 %v374
        %v640 = vunpack.c.l.b16 %v375
        %v641 = vunpack.c.l.b16 %v376
        %v642 = vunpack.c.l.b16 %v377
        %v643 = vunpack.c.l.b16 %v378
        %v644 = vunpack.c.l.b16 %v379
        %v645 = vunpack.c.l.b16 %v380
        %v646 = vunpack.c.l.b16 %v381
        %v647 = vunpack.c.l.b16 %v382
        %v648 = vunpack.c.l.b16 %v383
        %v649 = vunpack.c.l.b16 %v384
        %v650 = vunpack.c.l.b16 %v385
        %v651 = vunpack.c.l.b16 %v386
        %v652 = vunpack.c.l.b16 %v387
        %v653 = vunpack.c.l.b16 %v388
        %v654 = vunpack.c.l.b16 %v389
        %v655 = vunpack.c.l.b16 %v390
        %v656 = vunpack.c.l.b16 %v391
        %v657 = vunpack.c.l.b16 %v392
        %v658 = vunpack.c.l.b16 %v393
        %v659 = vunpack.c.l.b16 %v394
        %v660 = vunpack.c.l.b16 %v395
        %v661 = vunpack.c.l.b16 %v396
        %v662 = vunpack.c.l.b16 %v397
        %v663 = vunpack.c.l.b16 %v398
        %v664 = vunpack.c.l.b16 %v399
        %v665 = vunpack.c.l.b16 %v400
        %v666 = vunpack.c.l.b16 %v401
        %v667 = vunpack.c.l.b16 %v402
        %v668 = vunpack.c.l.b16 %v403
        %v669 = vunpack.c.l.b16 %v404
        %v670 = vunpack.c.l.b16 %v405
        %v671 = vunpack.c.l.b16 %v406
        %v672 = vunpack.c.l.b16 %v407
        %v673 = vunpack.c.l.b16 %v408
        %v674 = vunpack.c.l.b16 %v409
        %v675 = vpack.c.b16 %v548, %v547
        %v676 = vpack.c.b16 %v550, %v549
        %v677 = vpack.c.b16 %v552, %v551
        %v678 = vpack.c.b16 %v554, %v553
        %v679 = vpack.c.b16 %v556, %v555
        %v680 = vpack.c.b16 %v558, %v557
        %v681 = vpack.c.b16 %v560, %v559
        %v682 = vpack.c.b16 %v562, %v561
        %v683 = vpack.c.b16 %v564, %v563
        %v684 = vpack.c.b16 %v566, %v565
        %v685 = vpack.c.b16 %v568, %v567
        %v686 = vpack.c.b16 %v570, %v569
        %v687 = vpack.c.b16 %v572, %v571
        %v688 = vpack.c.b16 %v574, %v573
        %v689 = vpack.c.b16 %v576, %v575
        %v690 = vpack.c.b16 %v578, %v577
        %v691 = vpack.c.b16 %v580, %v579
        %v692 = vpack.c.b16 %v582, %v581
        %v693 = vpack.c.b16 %v584, %v583
        %v694 = vpack.c.b16 %v586, %v585
        %v695 = vpack.c.b16 %v588, %v587
        %v696 = vpack.c.b16 %v590, %v589
        %v697 = vpack.c.b16 %v592, %v591
        %v698 = vpack.c.b16 %v594, %v593
        %v699 = vpack.c.b16 %v596, %v595
        %v700 = vpack.c.b16 %v598, %v597
        %v701 = vpack.c.b16 %v600, %v599
        %v702 = vpack.c.b16 %v602, %v601
        %v703 = vpack.c.b16 %v604, %v603
        %v704 = vpack.c.b16 %v606, %v605
        %v705 = vpack.c.b16 %v608, %v607
        %v706 = vpack.c.b16 %v610, %v609
        %v707 = vpack.c.b16 %v612, %v611
        %v708 = vpack.c.b16 %v614, %v613
        %v709 = vpack.c.b16 %v616, %v615
        %v710 = vpack.c.b16 %v618, %v617
        %v711 = vpack.c.b16 %v620, %v619
        %v712 = vpack.c.b16 %v622, %v621
        %v713 = vpack.c.b16 %v624, %v623
        %v714 = vpack.c.b16 %v626, %v625
        %v715 = vpack.c.b16 %v628, %v627
        %v716 = vpack.c.b16 %v630, %v629
        %v717 = vpack.c.b16 %v632, %v631
        %v718 = vpack.c.b16 %v634, %v633
        %v719 = vpack.c.b16 %v636, %v635
        %v720 = vpack.c.b16 %v638, %v637
        %v721 = vpack.c.b16 %v640, %v639
        %v722 = vpack.c.b16 %v642, %v641
        %v723 = vpack.c.b16 %v644, %v643
        %v724 = vpack.c.b16 %v646, %v645
        %v725 = vpack.c.b16 %v648, %v647
        %v726 = vpack.c.b16 %v650, %v649
        %v727 = vpack.c.b16 %v652, %v651
        %v728 = vpack.c.b16 %v654, %v653
        %v729 = vpack.c.b16 %v656, %v655
        %v730 = vpack.c.b16 %v658, %v657
        %v731 = vpack.c.b16 %v660, %v659
        %v732 = vpack.c.b16 %v662, %v661
        %v733 = vpack.c.b16 %v664, %v663
        %v734 = vpack.c.b16 %v666, %v665
        %v735 = vpack.c.b16 %v668, %v667
        %v736 = vpack.c.b16 %v670, %v669
        %v737 = vpack.c.b16 %v672, %v671
        %v738 = vpack.c.b16 %v674, %v673
        %v741 = vunpack.c.l.b16 %v410
        %v742 = vunpack.c.l.b16 %v411
        %v743 = vpack.c.b16 %v742, %v741
        %vm745 = vcmask 130048
        %v747 = vsel %vm745, %v675, 0
        %v750 = vsel %vm745, %v676, 0
        %v753 = vsel %vm745, %v677, 0
        %v756 = vsel %vm745, %v678, 0
        %v759 = vsel %vm745, %v679, 0
        %v762 = vsel %vm745, %v680, 0
        %v765 = vsel %vm745, %v681, 0
        %v768 = vsel %vm745, %v682, 0
        %v771 = vsel %vm745, %v683, 0
        %v774 = vsel %vm745, %v684, 0
        %v777 = vsel %vm745, %v685, 0
        %v780 = vsel %vm745, %v686, 0
        %v783 = vsel %vm745, %v687, 0
        %v786 = vsel %vm745, %v688, 0
        %v789 = vsel %vm745, %v689, 0
        %v792 = vsel %vm745, %v690, 0
        %v795 = vsel %vm745, %v691, 0
        %v798 = vsel %vm745, %v692, 0
        %v801 = vsel %vm745, %v693, 0
        %v804 = vsel %vm745, %v694, 0
        %v807 = vsel %vm745, %v695, 0
        %v810 = vsel %vm745, %v696, 0
        %v813 = vsel %vm745, %v697, 0
        %v816 = vsel %vm745, %v698, 0
        %v819 = vsel %vm745, %v699, 0
        %v822 = vsel %vm745, %v700, 0
        %v825 = vsel %vm745, %v701, 0
        %v828 = vsel %vm745, %v702, 0
        %v831 = vsel %vm745, %v703, 0
        %v834 = vsel %vm745, %v704, 0
        %v837 = vsel %vm745, %v705, 0
        %v840 = vsel %vm745, %v706, 0
        %v843 = vsel %vm745, %v707, 0
        %v846 = vsel %vm745, %v708, 0
        %v849 = vsel %vm745, %v709, 0
        %v852 = vsel %vm745, %v710, 0
        %v855 = vsel %vm745, %v711, 0
        %v858 = vsel %vm745, %v712, 0
        %v861 = vsel %vm745, %v713, 0
        %v864 = vsel %vm745, %v714, 0
        %v867 = vsel %vm745, %v715, 0
        %v870 = vsel %vm745, %v716, 0
        %v873 = vsel %vm745, %v717, 0
        %v876 = vsel %vm745, %v718, 0
        %v879 = vsel %vm745, %v719, 0
        %v882 = vsel %vm745, %v720, 0
        %v885 = vsel %vm745, %v721, 0
        %v888 = vsel %vm745, %v722, 0
        %v891 = vsel %vm745, %v723, 0
        %v894 = vsel %vm745, %v724, 0
        %v897 = vsel %vm745, %v725, 0
        %v900 = vsel %vm745, %v726, 0
        %v903 = vsel %vm745, %v727, 0
        %v906 = vsel %vm745, %v728, 0
        %v909 = vsel %vm745, %v729, 0
        %v912 = vsel %vm745, %v730, 0
        %v915 = vsel %vm745, %v731, 0
        %v918 = vsel %vm745, %v732, 0
        %v921 = vsel %vm745, %v733, 0
        %v924 = vsel %vm745, %v734, 0
        %v927 = vsel %vm745, %v735, 0
        %v930 = vsel %vm745, %v736, 0
        %v933 = vsel %vm745, %v737, 0
        %v936 = vsel %vm745, %v738, 0
        %938 = vmatprep.subr.bf16.mxu0 0
        %939 = vmatpush1.bf16.msra.mxu0 %v743
        %940 = vmatprep.subr.bf16.mxu0 0
        %941 = vmatpush1.bf16.msra.mxu0 0
        %942 = vmatprep.subr.bf16.mxu0 0
        %943 = vmatpush1.bf16.msra.mxu0 0
        %944 = vmatprep.subr.bf16.mxu0 0
        %945 = vmatpush1.bf16.msra.mxu0 0
        %946 = vmatprep.subr.bf16.mxu0 0
        %947 = vmatpush1.bf16.msra.mxu0 0
        %948 = vmatprep.subr.bf16.mxu0 0
        %949 = vmatpush1.bf16.msra.mxu0 0
        %950 = vmatprep.subr.bf16.mxu0 0
        %951 = vmatpush1.bf16.msra.mxu0 0
        %952 = vmatprep.subr.bf16.mxu0 0
        %953 = vmatpush1.bf16.msra.mxu0 0
        %954 = vmatprep.subr.bf16.mxu0 0
        %955 = vmatpush1.bf16.msra.mxu0 0
        %956 = vmatprep.subr.bf16.mxu0 0
        %957 = vmatpush1.bf16.msra.mxu0 0
        %958 = vmatprep.subr.bf16.mxu0 0
        %959 = vmatpush1.bf16.msra.mxu0 0
        %960 = vmatprep.subr.bf16.mxu0 0
        %961 = vmatpush1.bf16.msra.mxu0 0
        %962 = vmatprep.subr.bf16.mxu0 0
        %963 = vmatpush1.bf16.msra.mxu0 0
        %964 = vmatprep.subr.bf16.mxu0 0
        %965 = vmatpush1.bf16.msra.mxu0 0
        %966 = vmatprep.subr.bf16.mxu0 0
        %967 = vmatpush1.bf16.msra.mxu0 0
        %968 = vmatprep.subr.bf16.mxu0 0
        %969 = vmatpush1.bf16.msra.mxu0 0
        %970 = vmatprep.mubr.bf16.mxu0 0
        %971 = vmatmul.mubr.bf16.gmra.mrb[0].mxu0 %v747
        %v972 = vpop.f32.mrb[0].mxu0
        %v973 = vadd.f32 %v417, %v972
        %v974 = vpop.f32.mrb[0].mxu0
        %v975 = vpop.f32.mrb[0].mxu0
        %v976 = vadd.f32 %v417, %v975
        %v977 = vpop.f32.mrb[0].mxu0
        %978 = vmatprep.mubr.bf16.mxu0 0
        %979 = vmatmul.mubr.bf16.gmra.mrb[0].mxu0 %v750
        %v980 = vpop.f32.mrb[0].mxu0
        %v981 = vadd.f32 %v417, %v980
        %v982 = vpop.f32.mrb[0].mxu0
        %v983 = vpop.f32.mrb[0].mxu0
        %v984 = vadd.f32 %v417, %v983
        %v985 = vpop.f32.mrb[0].mxu0
        %986 = vmatprep.mubr.bf16.mxu0 0
        %987 = vmatmul.mubr.bf16.gmra.mrb[0].mxu0 %v753
        %v988 = vpop.f32.mrb[0].mxu0
        %v989 = vadd.f32 %v417, %v988
        %v990 = vpop.f32.mrb[0].mxu0
        %v991 = vpop.f32.mrb[0].mxu0
        %v992 = vadd.f32 %v417, %v991
        %v993 = vpop.f32.mrb[0].mxu0
        %994 = vmatprep.mubr.bf16.mxu0 0
        %995 = vmatmul.mubr.bf16.gmra.mrb[0].mxu0 %v756
        %v996 = vpop.f32.mrb[0].mxu0
        %v997 = vadd.f32 %v417, %v996
        %v998 = vpop.f32.mrb[0].mxu0
        %v999 = vpop.f32.mrb[0].mxu0
        %v1000 = vadd.f32 %v417, %v999
        %v1001 = vpop.f32.mrb[0].mxu0
        %1002 = vmatprep.mubr.bf16.mxu0 0
        %1003 = vmatmul.mubr.bf16.gmra.mrb[0].mxu0 %v759
        %v1004 = vpop.f32.mrb[0].mxu0
        %v1005 = vadd.f32 %v417, %v1004
        %v1006 = vpop.f32.mrb[0].mxu0
        %v1007 = vpop.f32.mrb[0].mxu0
        %v1008 = vadd.f32 %v417, %v1007
        %v1009 = vpop.f32.mrb[0].mxu0
        %1010 = vmatprep.mubr.bf16.mxu0 0
        %1011 = vmatmul.mubr.bf16.gmra.mrb[0].mxu0 %v762
        %v1012 = vpop.f32.mrb[0].mxu0
        %v1013 = vadd.f32 %v417, %v1012
        %v1014 = vpop.f32.mrb[0].mxu0
        %v1015 = vpop.f32.mrb[0].mxu0
        %v1016 = vadd.f32 %v417, %v1015
        %v1017 = vpop.f32.mrb[0].mxu0
        %1018 = vmatprep.mubr.bf16.mxu0 0
        %1019 = vmatmul.mubr.bf16.gmra.mrb[0].mxu0 %v765
        %v1020 = vpop.f32.mrb[0].mxu0
        %v1021 = vadd.f32 %v417, %v1020
        %v1022 = vpop.f32.mrb[0].mxu0
        %v1023 = vpop.f32.mrb[0].mxu0
        %v1024 = vadd.f32 %v417, %v1023
        %v1025 = vpop.f32.mrb[0].mxu0
        %1026 = vmatprep.mubr.bf16.mxu0 0
        %1027 = vmatmul.mubr.bf16.gmra.mrb[0].mxu0 %v768
        %v1028 = vpop.f32.mrb[0].mxu0
        %v1029 = vadd.f32 %v417, %v1028
        %v1030 = vpop.f32.mrb[0].mxu0
        %v1031 = vpop.f32.mrb[0].mxu0
        %v1032 = vadd.f32 %v417, %v1031
        %v1033 = vpop.f32.mrb[0].mxu0
        %1034 = vmatprep.mubr.bf16.mxu0 0
        %1035 = vmatmul.mubr.bf16.gmra.mrb[0].mxu0 %v771
        %v1036 = vpop.f32.mrb[0].mxu0
        %v1037 = vadd.f32 %v417, %v1036
        %v1038 = vpop.f32.mrb[0].mxu0
        %v1039 = vpop.f32.mrb[0].mxu0
        %v1040 = vadd.f32 %v417, %v1039
        %v1041 = vpop.f32.mrb[0].mxu0
        %1042 = vmatprep.mubr.bf16.mxu0 0
        %1043 = vmatmul.mubr.bf16.gmra.mrb[0].mxu0 %v774
        %v1044 = vpop.f32.mrb[0].mxu0
        %v1045 = vadd.f32 %v417, %v1044
        %v1046 = vpop.f32.mrb[0].mxu0
        %v1047 = vpop.f32.mrb[0].mxu0
        %v1048 = vadd.f32 %v417, %v1047
        %v1049 = vpop.f32.mrb[0].mxu0
        %1050 = vmatprep.mubr.bf16.mxu0 0
        %1051 = vmatmul.mubr.bf16.gmra.mrb[0].mxu0 %v777
        %v1052 = vpop.f32.mrb[0].mxu0
        %v1053 = vadd.f32 %v417, %v1052
        %v1054 = vpop.f32.mrb[0].mxu0
        %v1055 = vpop.f32.mrb[0].mxu0
        %v1056 = vadd.f32 %v417, %v1055
        %v1057 = vpop.f32.mrb[0].mxu0
        %1058 = vmatprep.mubr.bf16.mxu0 0
        %1059 = vmatmul.mubr.bf16.gmra.mrb[0].mxu0 %v780
        %v1060 = vpop.f32.mrb[0].mxu0
        %v1061 = vadd.f32 %v417, %v1060
        %v1062 = vpop.f32.mrb[0].mxu0
        %v1063 = vpop.f32.mrb[0].mxu0
        %v1064 = vadd.f32 %v417, %v1063
        %v1065 = vpop.f32.mrb[0].mxu0
        %1066 = vmatprep.mubr.bf16.mxu0 0
        %1067 = vmatmul.mubr.bf16.gmra.mrb[0].mxu0 %v783
        %v1068 = vpop.f32.mrb[0].mxu0
        %v1069 = vadd.f32 %v417, %v1068
        %v1070 = vpop.f32.mrb[0].mxu0
        %v1071 = vpop.f32.mrb[0].mxu0
        %v1072 = vadd.f32 %v417, %v1071
        %v1073 = vpop.f32.mrb[0].mxu0
        %1074 = vmatprep.mubr.bf16.mxu0 0
        %1075 = vmatmul.mubr.bf16.gmra.mrb[0].mxu0 %v786
        %v1076 = vpop.f32.mrb[0].mxu0
        %v1077 = vadd.f32 %v417, %v1076
        %v1078 = vpop.f32.mrb[0].mxu0
        %v1079 = vpop.f32.mrb[0].mxu0
        %v1080 = vadd.f32 %v417, %v1079
        %v1081 = vpop.f32.mrb[0].mxu0
        %1082 = vmatprep.mubr.bf16.mxu0 0
        %1083 = vmatmul.mubr.bf16.gmra.mrb[0].mxu0 %v789
        %v1084 = vpop.f32.mrb[0].mxu0
        %v1085 = vadd.f32 %v417, %v1084
        %v1086 = vpop.f32.mrb[0].mxu0
        %v1087 = vpop.f32.mrb[0].mxu0
        %v1088 = vadd.f32 %v417, %v1087
        %v1089 = vpop.f32.mrb[0].mxu0
        %1090 = vmatprep.mubr.bf16.mxu0 0
        %1091 = vmatmul.mubr.bf16.gmra.mrb[0].mxu0 %v792
        %v1092 = vpop.f32.mrb[0].mxu0
        %v1093 = vadd.f32 %v417, %v1092
        %v1094 = vpop.f32.mrb[0].mxu0
        %v1095 = vpop.f32.mrb[0].mxu0
        %v1096 = vadd.f32 %v417, %v1095
        %v1097 = vpop.f32.mrb[0].mxu0
        %1098 = vmatprep.mubr.bf16.mxu0 0
        %1099 = vmatmul.mubr.bf16.gmra.mrb[0].mxu0 %v795
        %v1100 = vpop.f32.mrb[0].mxu0
        %v1101 = vadd.f32 %v417, %v1100
        %v1102 = vpop.f32.mrb[0].mxu0
        %v1103 = vpop.f32.mrb[0].mxu0
        %v1104 = vadd.f32 %v417, %v1103
        %v1105 = vpop.f32.mrb[0].mxu0
        %1106 = vmatprep.mubr.bf16.mxu0 0
        %1107 = vmatmul.mubr.bf16.gmra.mrb[0].mxu0 %v798
        %v1108 = vpop.f32.mrb[0].mxu0
        %v1109 = vadd.f32 %v417, %v1108
        %v1110 = vpop.f32.mrb[0].mxu0
        %v1111 = vpop.f32.mrb[0].mxu0
        %v1112 = vadd.f32 %v417, %v1111
        %v1113 = vpop.f32.mrb[0].mxu0
        %1114 = vmatprep.mubr.bf16.mxu0 0
        %1115 = vmatmul.mubr.bf16.gmra.mrb[0].mxu0 %v801
        %v1116 = vpop.f32.mrb[0].mxu0
        %v1117 = vadd.f32 %v417, %v1116
        %v1118 = vpop.f32.mrb[0].mxu0
        %v1119 = vpop.f32.mrb[0].mxu0
        %v1120 = vadd.f32 %v417, %v1119
        %v1121 = vpop.f32.mrb[0].mxu0
        %1122 = vmatprep.mubr.bf16.mxu0 0
        %1123 = vmatmul.mubr.bf16.gmra.mrb[0].mxu0 %v804
        %v1124 = vpop.f32.mrb[0].mxu0
        %v1125 = vadd.f32 %v417, %v1124
        %v1126 = vpop.f32.mrb[0].mxu0
        %v1127 = vpop.f32.mrb[0].mxu0
        %v1128 = vadd.f32 %v417, %v1127
        %v1129 = vpop.f32.mrb[0].mxu0
        %1130 = vmatprep.mubr.bf16.mxu0 0
        %1131 = vmatmul.mubr.bf16.gmra.mrb[0].mxu0 %v807
        %v1132 = vpop.f32.mrb[0].mxu0
        %v1133 = vadd.f32 %v417, %v1132
        %v1134 = vpop.f32.mrb[0].mxu0
        %v1135 = vpop.f32.mrb[0].mxu0
        %v1136 = vadd.f32 %v417, %v1135
        %v1137 = vpop.f32.mrb[0].mxu0
        %1138 = vmatprep.mubr.bf16.mxu0 0
        %1139 = vmatmul.mubr.bf16.gmra.mrb[0].mxu0 %v810
        %v1140 = vpop.f32.mrb[0].mxu0
        %v1141 = vadd.f32 %v417, %v1140
        %v1142 = vpop.f32.mrb[0].mxu0
        %v1143 = vpop.f32.mrb[0].mxu0
        %v1144 = vadd.f32 %v417, %v1143
        %v1145 = vpop.f32.mrb[0].mxu0
        %1146 = vmatprep.mubr.bf16.mxu0 0
        %1147 = vmatmul.mubr.bf16.gmra.mrb[0].mxu0 %v813
        %v1148 = vpop.f32.mrb[0].mxu0
        %v1149 = vadd.f32 %v417, %v1148
        %v1150 = vpop.f32.mrb[0].mxu0
        %v1151 = vpop.f32.mrb[0].mxu0
        %v1152 = vadd.f32 %v417, %v1151
        %v1153 = vpop.f32.mrb[0].mxu0
        %1154 = vmatprep.mubr.bf16.mxu0 0
        %1155 = vmatmul.mubr.bf16.gmra.mrb[0].mxu0 %v816
        %v1156 = vpop.f32.mrb[0].mxu0
        %v1157 = vadd.f32 %v417, %v1156
        %v1158 = vpop.f32.mrb[0].mxu0
        %v1159 = vpop.f32.mrb[0].mxu0
        %v1160 = vadd.f32 %v417, %v1159
        %v1161 = vpop.f32.mrb[0].mxu0
        %1162 = vmatprep.mubr.bf16.mxu0 0
        %1163 = vmatmul.mubr.bf16.gmra.mrb[0].mxu0 %v819
        %v1164 = vpop.f32.mrb[0].mxu0
        %v1165 = vadd.f32 %v417, %v1164
        %v1166 = vpop.f32.mrb[0].mxu0
        %v1167 = vpop.f32.mrb[0].mxu0
        %v1168 = vadd.f32 %v417, %v1167
        %v1169 = vpop.f32.mrb[0].mxu0
        %1170 = vmatprep.mubr.bf16.mxu0 0
        %1171 = vmatmul.mubr.bf16.gmra.mrb[0].mxu0 %v822
        %v1172 = vpop.f32.mrb[0].mxu0
        %v1173 = vadd.f32 %v417, %v1172
        %v1174 = vpop.f32.mrb[0].mxu0
        %v1175 = vpop.f32.mrb[0].mxu0
        %v1176 = vadd.f32 %v417, %v1175
        %v1177 = vpop.f32.mrb[0].mxu0
        %1178 = vmatprep.mubr.bf16.mxu0 0
        %1179 = vmatmul.mubr.bf16.gmra.mrb[0].mxu0 %v825
        %v1180 = vpop.f32.mrb[0].mxu0
        %v1181 = vadd.f32 %v417, %v1180
        %v1182 = vpop.f32.mrb[0].mxu0
        %v1183 = vpop.f32.mrb[0].mxu0
        %v1184 = vadd.f32 %v417, %v1183
        %v1185 = vpop.f32.mrb[0].mxu0
        %1186 = vmatprep.mubr.bf16.mxu0 0
        %1187 = vmatmul.mubr.bf16.gmra.mrb[0].mxu0 %v828
        %v1188 = vpop.f32.mrb[0].mxu0
        %v1189 = vadd.f32 %v417, %v1188
        %v1190 = vpop.f32.mrb[0].mxu0
        %v1191 = vpop.f32.mrb[0].mxu0
        %v1192 = vadd.f32 %v417, %v1191
        %v1193 = vpop.f32.mrb[0].mxu0
        %1194 = vmatprep.mubr.bf16.mxu0 0
        %1195 = vmatmul.mubr.bf16.gmra.mrb[0].mxu0 %v831
        %v1196 = vpop.f32.mrb[0].mxu0
        %v1197 = vadd.f32 %v417, %v1196
        %v1198 = vpop.f32.mrb[0].mxu0
        %v1199 = vpop.f32.mrb[0].mxu0
        %v1200 = vadd.f32 %v417, %v1199
        %v1201 = vpop.f32.mrb[0].mxu0
        %1202 = vmatprep.mubr.bf16.mxu0 0
        %1203 = vmatmul.mubr.bf16.gmra.mrb[0].mxu0 %v834
        %v1204 = vpop.f32.mrb[0].mxu0
        %v1205 = vadd.f32 %v417, %v1204
        %v1206 = vpop.f32.mrb[0].mxu0
        %v1207 = vpop.f32.mrb[0].mxu0
        %v1208 = vadd.f32 %v417, %v1207
        %v1209 = vpop.f32.mrb[0].mxu0
        %1210 = vmatprep.mubr.bf16.mxu0 0
        %1211 = vmatmul.mubr.bf16.gmra.mrb[0].mxu0 %v837
        %v1212 = vpop.f32.mrb[0].mxu0
        %v1213 = vadd.f32 %v417, %v1212
        %v1214 = vpop.f32.mrb[0].mxu0
        %v1215 = vpop.f32.mrb[0].mxu0
        %v1216 = vadd.f32 %v417, %v1215
        %v1217 = vpop.f32.mrb[0].mxu0
        %1218 = vmatprep.mubr.bf16.mxu0 0
        %1219 = vmatmul.mubr.bf16.gmra.mrb[0].mxu0 %v840
        %v1220 = vpop.f32.mrb[0].mxu0
        %v1221 = vadd.f32 %v417, %v1220
        %v1222 = vpop.f32.mrb[0].mxu0
        %v1223 = vpop.f32.mrb[0].mxu0
        %v1224 = vadd.f32 %v417, %v1223
        %v1225 = vpop.f32.mrb[0].mxu0
        %1226 = vmatprep.mubr.bf16.mxu0 0
        %1227 = vmatmul.mubr.bf16.gmra.mrb[0].mxu0 %v843
        %v1228 = vpop.f32.mrb[0].mxu0
        %v1229 = vadd.f32 %v417, %v1228
        %v1230 = vpop.f32.mrb[0].mxu0
        %v1231 = vpop.f32.mrb[0].mxu0
        %v1232 = vadd.f32 %v417, %v1231
        %v1233 = vpop.f32.mrb[0].mxu0
        %1234 = vmatprep.mubr.bf16.mxu0 0
        %1235 = vmatmul.mubr.bf16.gmra.mrb[0].mxu0 %v846
        %v1236 = vpop.f32.mrb[0].mxu0
        %v1237 = vadd.f32 %v417, %v1236
        %v1238 = vpop.f32.mrb[0].mxu0
        %v1239 = vpop.f32.mrb[0].mxu0
        %v1240 = vadd.f32 %v417, %v1239
        %v1241 = vpop.f32.mrb[0].mxu0
        %1242 = vmatprep.mubr.bf16.mxu0 0
        %1243 = vmatmul.mubr.bf16.gmra.mrb[0].mxu0 %v849
        %v1244 = vpop.f32.mrb[0].mxu0
        %v1245 = vadd.f32 %v417, %v1244
        %v1246 = vpop.f32.mrb[0].mxu0
        %v1247 = vpop.f32.mrb[0].mxu0
        %v1248 = vadd.f32 %v417, %v1247
        %v1249 = vpop.f32.mrb[0].mxu0
        %1250 = vmatprep.mubr.bf16.mxu0 0
        %1251 = vmatmul.mubr.bf16.gmra.mrb[0].mxu0 %v852
        %v1252 = vpop.f32.mrb[0].mxu0
        %v1253 = vadd.f32 %v417, %v1252
        %v1254 = vpop.f32.mrb[0].mxu0
        %v1255 = vpop.f32.mrb[0].mxu0
        %v1256 = vadd.f32 %v417, %v1255
        %v1257 = vpop.f32.mrb[0].mxu0
        %1258 = vmatprep.mubr.bf16.mxu0 0
        %1259 = vmatmul.mubr.bf16.gmra.mrb[0].mxu0 %v855
        %v1260 = vpop.f32.mrb[0].mxu0
        %v1261 = vadd.f32 %v417, %v1260
        %v1262 = vpop.f32.mrb[0].mxu0
        %v1263 = vpop.f32.mrb[0].mxu0
        %v1264 = vadd.f32 %v417, %v1263
        %v1265 = vpop.f32.mrb[0].mxu0
        %1266 = vmatprep.mubr.bf16.mxu0 0
        %1267 = vmatmul.mubr.bf16.gmra.mrb[0].mxu0 %v858
        %v1268 = vpop.f32.mrb[0].mxu0
        %v1269 = vadd.f32 %v417, %v1268
        %v1270 = vpop.f32.mrb[0].mxu0
        %v1271 = vpop.f32.mrb[0].mxu0
        %v1272 = vadd.f32 %v417, %v1271
        %v1273 = vpop.f32.mrb[0].mxu0
        %1274 = vmatprep.mubr.bf16.mxu0 0
        %1275 = vmatmul.mubr.bf16.gmra.mrb[0].mxu0 %v861
        %v1276 = vpop.f32.mrb[0].mxu0
        %v1277 = vadd.f32 %v417, %v1276
        %v1278 = vpop.f32.mrb[0].mxu0
        %v1279 = vpop.f32.mrb[0].mxu0
        %v1280 = vadd.f32 %v417, %v1279
        %v1281 = vpop.f32.mrb[0].mxu0
        %1282 = vmatprep.mubr.bf16.mxu0 0
        %1283 = vmatmul.mubr.bf16.gmra.mrb[0].mxu0 %v864
        %v1284 = vpop.f32.mrb[0].mxu0
        %v1285 = vadd.f32 %v417, %v1284
        %v1286 = vpop.f32.mrb[0].mxu0
        %v1287 = vpop.f32.mrb[0].mxu0
        %v1288 = vadd.f32 %v417, %v1287
        %v1289 = vpop.f32.mrb[0].mxu0
        %1290 = vmatprep.mubr.bf16.mxu0 0
        %1291 = vmatmul.mubr.bf16.gmra.mrb[0].mxu0 %v867
        %v1292 = vpop.f32.mrb[0].mxu0
        %v1293 = vadd.f32 %v417, %v1292
        %v1294 = vpop.f32.mrb[0].mxu0
        %v1295 = vpop.f32.mrb[0].mxu0
        %v1296 = vadd.f32 %v417, %v1295
        %v1297 = vpop.f32.mrb[0].mxu0
        %1298 = vmatprep.mubr.bf16.mxu0 0
        %1299 = vmatmul.mubr.bf16.gmra.mrb[0].mxu0 %v870
        %v1300 = vpop.f32.mrb[0].mxu0
        %v1301 = vadd.f32 %v417, %v1300
        %v1302 = vpop.f32.mrb[0].mxu0
        %v1303 = vpop.f32.mrb[0].mxu0
        %v1304 = vadd.f32 %v417, %v1303
        %v1305 = vpop.f32.mrb[0].mxu0
        %1306 = vmatprep.mubr.bf16.mxu0 0
        %1307 = vmatmul.mubr.bf16.gmra.mrb[0].mxu0 %v873
        %v1308 = vpop.f32.mrb[0].mxu0
        %v1309 = vadd.f32 %v417, %v1308
        %v1310 = vpop.f32.mrb[0].mxu0
        %v1311 = vpop.f32.mrb[0].mxu0
        %v1312 = vadd.f32 %v417, %v1311
        %v1313 = vpop.f32.mrb[0].mxu0
        %1314 = vmatprep.mubr.bf16.mxu0 0
        %1315 = vmatmul.mubr.bf16.gmra.mrb[0].mxu0 %v876
        %v1316 = vpop.f32.mrb[0].mxu0
        %v1317 = vadd.f32 %v417, %v1316
        %v1318 = vpop.f32.mrb[0].mxu0
        %v1319 = vpop.f32.mrb[0].mxu0
        %v1320 = vadd.f32 %v417, %v1319
        %v1321 = vpop.f32.mrb[0].mxu0
        %1322 = vmatprep.mubr.bf16.mxu0 0
        %1323 = vmatmul.mubr.bf16.gmra.mrb[0].mxu0 %v879
        %v1324 = vpop.f32.mrb[0].mxu0
        %v1325 = vadd.f32 %v417, %v1324
        %v1326 = vpop.f32.mrb[0].mxu0
        %v1327 = vpop.f32.mrb[0].mxu0
        %v1328 = vadd.f32 %v417, %v1327
        %v1329 = vpop.f32.mrb[0].mxu0
        %1330 = vmatprep.mubr.bf16.mxu0 0
        %1331 = vmatmul.mubr.bf16.gmra.mrb[0].mxu0 %v882
        %v1332 = vpop.f32.mrb[0].mxu0
        %v1333 = vadd.f32 %v417, %v1332
        %v1334 = vpop.f32.mrb[0].mxu0
        %v1335 = vpop.f32.mrb[0].mxu0
        %v1336 = vadd.f32 %v417, %v1335
        %v1337 = vpop.f32.mrb[0].mxu0
        %1338 = vmatprep.mubr.bf16.mxu0 0
        %1339 = vmatmul.mubr.bf16.gmra.mrb[0].mxu0 %v885
        %v1340 = vpop.f32.mrb[0].mxu0
        %v1341 = vadd.f32 %v417, %v1340
        %v1342 = vpop.f32.mrb[0].mxu0
        %v1343 = vpop.f32.mrb[0].mxu0
        %v1344 = vadd.f32 %v417, %v1343
        %v1345 = vpop.f32.mrb[0].mxu0
        %1346 = vmatprep.mubr.bf16.mxu0 0
        %1347 = vmatmul.mubr.bf16.gmra.mrb[0].mxu0 %v888
        %v1348 = vpop.f32.mrb[0].mxu0
        %v1349 = vadd.f32 %v417, %v1348
        %v1350 = vpop.f32.mrb[0].mxu0
        %v1351 = vpop.f32.mrb[0].mxu0
        %v1352 = vadd.f32 %v417, %v1351
        %v1353 = vpop.f32.mrb[0].mxu0
        %1354 = vmatprep.mubr.bf16.mxu0 0
        %1355 = vmatmul.mubr.bf16.gmra.mrb[0].mxu0 %v891
        %v1356 = vpop.f32.mrb[0].mxu0
        %v1357 = vadd.f32 %v417, %v1356
        %v1358 = vpop.f32.mrb[0].mxu0
        %v1359 = vpop.f32.mrb[0].mxu0
        %v1360 = vadd.f32 %v417, %v1359
        %v1361 = vpop.f32.mrb[0].mxu0
        %1362 = vmatprep.mubr.bf16.mxu0 0
        %1363 = vmatmul.mubr.bf16.gmra.mrb[0].mxu0 %v894
        %v1364 = vpop.f32.mrb[0].mxu0
        %v1365 = vadd.f32 %v417, %v1364
        %v1366 = vpop.f32.mrb[0].mxu0
        %v1367 = vpop.f32.mrb[0].mxu0
        %v1368 = vadd.f32 %v417, %v1367
        %v1369 = vpop.f32.mrb[0].mxu0
        %1370 = vmatprep.mubr.bf16.mxu0 0
        %1371 = vmatmul.mubr.bf16.gmra.mrb[0].mxu0 %v897
        %v1372 = vpop.f32.mrb[0].mxu0
        %v1373 = vadd.f32 %v417, %v1372
        %v1374 = vpop.f32.mrb[0].mxu0
        %v1375 = vpop.f32.mrb[0].mxu0
        %v1376 = vadd.f32 %v417, %v1375
        %v1377 = vpop.f32.mrb[0].mxu0
        %1378 = vmatprep.mubr.bf16.mxu0 0
        %1379 = vmatmul.mubr.bf16.gmra.mrb[0].mxu0 %v900
        %v1380 = vpop.f32.mrb[0].mxu0
        %v1381 = vadd.f32 %v417, %v1380
        %v1382 = vpop.f32.mrb[0].mxu0
        %v1383 = vpop.f32.mrb[0].mxu0
        %v1384 = vadd.f32 %v417, %v1383
        %v1385 = vpop.f32.mrb[0].mxu0
        %1386 = vmatprep.mubr.bf16.mxu0 0
        %1387 = vmatmul.mubr.bf16.gmra.mrb[0].mxu0 %v903
        %v1388 = vpop.f32.mrb[0].mxu0
        %v1389 = vadd.f32 %v417, %v1388
        %v1390 = vpop.f32.mrb[0].mxu0
        %v1391 = vpop.f32.mrb[0].mxu0
        %v1392 = vadd.f32 %v417, %v1391
        %v1393 = vpop.f32.mrb[0].mxu0
        %1394 = vmatprep.mubr.bf16.mxu0 0
        %1395 = vmatmul.mubr.bf16.gmra.mrb[0].mxu0 %v906
        %v1396 = vpop.f32.mrb[0].mxu0
        %v1397 = vadd.f32 %v417, %v1396
        %v1398 = vpop.f32.mrb[0].mxu0
        %v1399 = vpop.f32.mrb[0].mxu0
        %v1400 = vadd.f32 %v417, %v1399
        %v1401 = vpop.f32.mrb[0].mxu0
        %1402 = vmatprep.mubr.bf16.mxu0 0
        %1403 = vmatmul.mubr.bf16.gmra.mrb[0].mxu0 %v909
        %v1404 = vpop.f32.mrb[0].mxu0
        %v1405 = vadd.f32 %v417, %v1404
        %v1406 = vpop.f32.mrb[0].mxu0
        %v1407 = vpop.f32.mrb[0].mxu0
        %v1408 = vadd.f32 %v417, %v1407
        %v1409 = vpop.f32.mrb[0].mxu0
        %1410 = vmatprep.mubr.bf16.mxu0 0
        %1411 = vmatmul.mubr.bf16.gmra.mrb[0].mxu0 %v912
        %v1412 = vpop.f32.mrb[0].mxu0
        %v1413 = vadd.f32 %v417, %v1412
        %v1414 = vpop.f32.mrb[0].mxu0
        %v1415 = vpop.f32.mrb[0].mxu0
        %v1416 = vadd.f32 %v417, %v1415
        %v1417 = vpop.f32.mrb[0].mxu0
        %1418 = vmatprep.mubr.bf16.mxu0 0
        %1419 = vmatmul.mubr.bf16.gmra.mrb[0].mxu0 %v915
        %v1420 = vpop.f32.mrb[0].mxu0
        %v1421 = vadd.f32 %v417, %v1420
        %v1422 = vpop.f32.mrb[0].mxu0
        %v1423 = vpop.f32.mrb[0].mxu0
        %v1424 = vadd.f32 %v417, %v1423
        %v1425 = vpop.f32.mrb[0].mxu0
        %1426 = vmatprep.mubr.bf16.mxu0 0
        %1427 = vmatmul.mubr.bf16.gmra.mrb[0].mxu0 %v918
        %v1428 = vpop.f32.mrb[0].mxu0
        %v1429 = vadd.f32 %v417, %v1428
        %v1430 = vpop.f32.mrb[0].mxu0
        %v1431 = vpop.f32.mrb[0].mxu0
        %v1432 = vadd.f32 %v417, %v1431
        %v1433 = vpop.f32.mrb[0].mxu0
        %1434 = vmatprep.mubr.bf16.mxu0 0
        %1435 = vmatmul.mubr.bf16.gmra.mrb[0].mxu0 %v921
        %v1436 = vpop.f32.mrb[0].mxu0
        %v1437 = vadd.f32 %v417, %v1436
        %v1438 = vpop.f32.mrb[0].mxu0
        %v1439 = vpop.f32.mrb[0].mxu0
        %v1440 = vadd.f32 %v417, %v1439
        %v1441 = vpop.f32.mrb[0].mxu0
        %1442 = vmatprep.mubr.bf16.mxu0 0
        %1443 = vmatmul.mubr.bf16.gmra.mrb[0].mxu0 %v924
        %v1444 = vpop.f32.mrb[0].mxu0
        %v1445 = vadd.f32 %v417, %v1444
        %v1446 = vpop.f32.mrb[0].mxu0
        %v1447 = vpop.f32.mrb[0].mxu0
        %v1448 = vadd.f32 %v417, %v1447
        %v1449 = vpop.f32.mrb[0].mxu0
        %1450 = vmatprep.mubr.bf16.mxu0 0
        %1451 = vmatmul.mubr.bf16.gmra.mrb[0].mxu0 %v927
        %v1452 = vpop.f32.mrb[0].mxu0
        %v1453 = vadd.f32 %v417, %v1452
        %v1454 = vpop.f32.mrb[0].mxu0
        %v1455 = vpop.f32.mrb[0].mxu0
        %v1456 = vadd.f32 %v417, %v1455
        %v1457 = vpop.f32.mrb[0].mxu0
        %1458 = vmatprep.mubr.bf16.mxu0 0
        %1459 = vmatmul.mubr.bf16.gmra.mrb[0].mxu0 %v930
        %v1460 = vpop.f32.mrb[0].mxu0
        %v1461 = vadd.f32 %v417, %v1460
        %v1462 = vpop.f32.mrb[0].mxu0
        %v1463 = vpop.f32.mrb[0].mxu0
        %v1464 = vadd.f32 %v417, %v1463
        %v1465 = vpop.f32.mrb[0].mxu0
        %1466 = vmatprep.mubr.bf16.mxu0 0
        %1467 = vmatmul.mubr.bf16.gmra.mrb[0].mxu0 %v933
        %v1468 = vpop.f32.mrb[0].mxu0
        %v1469 = vadd.f32 %v417, %v1468
        %v1470 = vpop.f32.mrb[0].mxu0
        %v1471 = vpop.f32.mrb[0].mxu0
        %v1472 = vadd.f32 %v417, %v1471
        %v1473 = vpop.f32.mrb[0].mxu0
        %1474 = vmatprep.mubr.bf16.mxu0 0
        %1475 = vmatmul.mubr.bf16.gmra.mrb[0].mxu0 %v936
        %v1476 = vpop.f32.mrb[0].mxu0
        %v1477 = vadd.f32 %v417, %v1476
        %v1478 = vpop.f32.mrb[0].mxu0
        %v1479 = vpop.f32.mrb[0].mxu0
        %v1480 = vadd.f32 %v417, %v1479
        %v1481 = vpop.f32.mrb[0].mxu0
        %1482 = vdwg.mxu0
        %v1483 = vsub.f32 0.0, %v973
        %v1484 = vsub.f32 0.0, %v976
        %v1485 = vsub.f32 0.0, %v981
        %v1486 = vsub.f32 0.0, %v984
        %v1487 = vsub.f32 0.0, %v989
        %v1488 = vsub.f32 0.0, %v992
        %v1489 = vsub.f32 0.0, %v997
        %v1490 = vsub.f32 0.0, %v1000
        %v1491 = vsub.f32 0.0, %v1005
        %v1492 = vsub.f32 0.0, %v1008
        %v1493 = vsub.f32 0.0, %v1013
        %v1494 = vsub.f32 0.0, %v1016
        %v1495 = vsub.f32 0.0, %v1021
        %v1496 = vsub.f32 0.0, %v1024
        %v1497 = vsub.f32 0.0, %v1029
        %v1498 = vsub.f32 0.0, %v1032
        %v1499 = vsub.f32 0.0, %v1037
        %v1500 = vsub.f32 0.0, %v1040
        %v1501 = vsub.f32 0.0, %v1045
        %v1502 = vsub.f32 0.0, %v1048
        %v1503 = vsub.f32 0.0, %v1053
        %v1504 = vsub.f32 0.0, %v1056
        %v1505 = vsub.f32 0.0, %v1061
        %v1506 = vsub.f32 0.0, %v1064
        %v1507 = vsub.f32 0.0, %v1069
        %v1508 = vsub.f32 0.0, %v1072
        %v1509 = vsub.f32 0.0, %v1077
        %v1510 = vsub.f32 0.0, %v1080
        %v1511 = vsub.f32 0.0, %v1085
        %v1512 = vsub.f32 0.0, %v1088
        %v1513 = vsub.f32 0.0, %v1093
        %v1514 = vsub.f32 0.0, %v1096
        %v1515 = vsub.f32 0.0, %v1101
        %v1516 = vsub.f32 0.0, %v1104
        %v1517 = vsub.f32 0.0, %v1109
        %v1518 = vsub.f32 0.0, %v1112
        %v1519 = vsub.f32 0.0, %v1117
        %v1520 = vsub.f32 0.0, %v1120
        %v1521 = vsub.f32 0.0, %v1125
        %v1522 = vsub.f32 0.0, %v1128
        %v1523 = vsub.f32 0.0, %v1133
        %v1524 = vsub.f32 0.0, %v1136
        %v1525 = vsub.f32 0.0, %v1141
        %v1526 = vsub.f32 0.0, %v1144
        %v1527 = vsub.f32 0.0, %v1149
        %v1528 = vsub.f32 0.0, %v1152
        %v1529 = vsub.f32 0.0, %v1157
        %v1530 = vsub.f32 0.0, %v1160
        %v1531 = vsub.f32 0.0, %v1165
        %v1532 = vsub.f32 0.0, %v1168
        %v1533 = vsub.f32 0.0, %v1173
        %v1534 = vsub.f32 0.0, %v1176
        %v1535 = vsub.f32 0.0, %v1181
        %v1536 = vsub.f32 0.0, %v1184
        %v1537 = vsub.f32 0.0, %v1189
        %v1538 = vsub.f32 0.0, %v1192
        %v1539 = vsub.f32 0.0, %v1197
        %v1540 = vsub.f32 0.0, %v1200
        %v1541 = vsub.f32 0.0, %v1205
        %v1542 = vsub.f32 0.0, %v1208
        %v1543 = vsub.f32 0.0, %v1213
        %v1544 = vsub.f32 0.0, %v1216
        %v1545 = vsub.f32 0.0, %v1221
        %v1546 = vsub.f32 0.0, %v1224
        %v1547 = vsub.f32 0.0, %v1229
        %v1548 = vsub.f32 0.0, %v1232
        %v1549 = vsub.f32 0.0, %v1237
        %v1550 = vsub.f32 0.0, %v1240
        %v1551 = vsub.f32 0.0, %v1245
        %v1552 = vsub.f32 0.0, %v1248
        %v1553 = vsub.f32 0.0, %v1253
        %v1554 = vsub.f32 0.0, %v1256
        %v1555 = vsub.f32 0.0, %v1261
        %v1556 = vsub.f32 0.0, %v1264
        %v1557 = vsub.f32 0.0, %v1269
        %v1558 = vsub.f32 0.0, %v1272
        %v1559 = vsub.f32 0.0, %v1277
        %v1560 = vsub.f32 0.0, %v1280
        %v1561 = vsub.f32 0.0, %v1285
        %v1562 = vsub.f32 0.0, %v1288
        %v1563 = vsub.f32 0.0, %v1293
        %v1564 = vsub.f32 0.0, %v1296
        %v1565 = vsub.f32 0.0, %v1301
        %v1566 = vsub.f32 0.0, %v1304
        %v1567 = vsub.f32 0.0, %v1309
        %v1568 = vsub.f32 0.0, %v1312
        %v1569 = vsub.f32 0.0, %v1317
        %v1570 = vsub.f32 0.0, %v1320
        %v1571 = vsub.f32 0.0, %v1325
        %v1572 = vsub.f32 0.0, %v1328
        %v1573 = vsub.f32 0.0, %v1333
        %v1574 = vsub.f32 0.0, %v1336
        %v1575 = vsub.f32 0.0, %v1341
        %v1576 = vsub.f32 0.0, %v1344
        %v1577 = vsub.f32 0.0, %v1349
        %v1578 = vsub.f32 0.0, %v1352
        %v1579 = vsub.f32 0.0, %v1357
        %v1580 = vsub.f32 0.0, %v1360
        %v1581 = vsub.f32 0.0, %v1365
        %v1582 = vsub.f32 0.0, %v1368
        %v1583 = vsub.f32 0.0, %v1373
        %v1584 = vsub.f32 0.0, %v1376
        %v1585 = vsub.f32 0.0, %v1381
        %v1586 = vsub.f32 0.0, %v1384
        %v1587 = vsub.f32 0.0, %v1389
        %v1588 = vsub.f32 0.0, %v1392
        %v1589 = vsub.f32 0.0, %v1397
        %v1590 = vsub.f32 0.0, %v1400
        %v1591 = vsub.f32 0.0, %v1405
        %v1592 = vsub.f32 0.0, %v1408
        %v1593 = vsub.f32 0.0, %v1413
        %v1594 = vsub.f32 0.0, %v1416
        %v1595 = vsub.f32 0.0, %v1421
        %v1596 = vsub.f32 0.0, %v1424
        %v1597 = vsub.f32 0.0, %v1429
        %v1598 = vsub.f32 0.0, %v1432
        %v1599 = vsub.f32 0.0, %v1437
        %v1600 = vsub.f32 0.0, %v1440
        %v1601 = vsub.f32 0.0, %v1445
        %v1602 = vsub.f32 0.0, %v1448
        %v1603 = vsub.f32 0.0, %v1453
        %v1604 = vsub.f32 0.0, %v1456
        %v1605 = vsub.f32 0.0, %v1461
        %v1606 = vsub.f32 0.0, %v1464
        %v1607 = vsub.f32 0.0, %v1469
        %v1608 = vsub.f32 0.0, %v1472
        %v1609 = vsub.f32 0.0, %v1477
        %v1610 = vsub.f32 0.0, %v1480
        %v1611 = vmul.f32 %v1483, 1.442695
        %v1612 = vpow.pop %v1611
        %v1613 = vmul.f32 %v1484, 1.442695
        %v1614 = vpow.pop %v1613
        %v1615 = vmul.f32 %v1485, 1.442695
        %v1616 = vpow.pop %v1615
        %v1617 = vmul.f32 %v1486, 1.442695
        %v1618 = vpow.pop %v1617
        %v1619 = vmul.f32 %v1487, 1.442695
        %v1620 = vpow.pop %v1619
        %v1621 = vmul.f32 %v1488, 1.442695
        %v1622 = vpow.pop %v1621
        %v1623 = vmul.f32 %v1489, 1.442695
        %v1624 = vpow.pop %v1623
        %v1625 = vmul.f32 %v1490, 1.442695
        %v1626 = vpow.pop %v1625
        %v1627 = vmul.f32 %v1491, 1.442695
        %v1628 = vpow.pop %v1627
        %v1629 = vmul.f32 %v1492, 1.442695
        %v1630 = vpow.pop %v1629
        %v1631 = vmul.f32 %v1493, 1.442695
        %v1632 = vpow.pop %v1631
        %v1633 = vmul.f32 %v1494, 1.442695
        %v1634 = vpow.pop %v1633
        %v1635 = vmul.f32 %v1495, 1.442695
        %v1636 = vpow.pop %v1635
        %v1637 = vmul.f32 %v1496, 1.442695
        %v1638 = vpow.pop %v1637
        %v1639 = vmul.f32 %v1497, 1.442695
        %v1640 = vpow.pop %v1639
        %v1641 = vmul.f32 %v1498, 1.442695
        %v1642 = vpow.pop %v1641
        %v1643 = vmul.f32 %v1499, 1.442695
        %v1644 = vpow.pop %v1643
        %v1645 = vmul.f32 %v1500, 1.442695
        %v1646 = vpow.pop %v1645
        %v1647 = vmul.f32 %v1501, 1.442695
        %v1648 = vpow.pop %v1647
        %v1649 = vmul.f32 %v1502, 1.442695
        %v1650 = vpow.pop %v1649
        %v1651 = vmul.f32 %v1503, 1.442695
        %v1652 = vpow.pop %v1651
        %v1653 = vmul.f32 %v1504, 1.442695
        %v1654 = vpow.pop %v1653
        %v1655 = vmul.f32 %v1505, 1.442695
        %v1656 = vpow.pop %v1655
        %v1657 = vmul.f32 %v1506, 1.442695
        %v1658 = vpow.pop %v1657
        %v1659 = vmul.f32 %v1507, 1.442695
        %v1660 = vpow.pop %v1659
        %v1661 = vmul.f32 %v1508, 1.442695
        %v1662 = vpow.pop %v1661
        %v1663 = vmul.f32 %v1509, 1.442695
        %v1664 = vpow.pop %v1663
        %v1665 = vmul.f32 %v1510, 1.442695
        %v1666 = vpow.pop %v1665
        %v1667 = vmul.f32 %v1511, 1.442695
        %v1668 = vpow.pop %v1667
        %v1669 = vmul.f32 %v1512, 1.442695
        %v1670 = vpow.pop %v1669
        %v1671 = vmul.f32 %v1513, 1.442695
        %v1672 = vpow.pop %v1671
        %v1673 = vmul.f32 %v1514, 1.442695
        %v1674 = vpow.pop %v1673
        %v1675 = vmul.f32 %v1515, 1.442695
        %v1676 = vpow.pop %v1675
        %v1677 = vmul.f32 %v1516, 1.442695
        %v1678 = vpow.pop %v1677
        %v1679 = vmul.f32 %v1517, 1.442695
        %v1680 = vpow.pop %v1679
        %v1681 = vmul.f32 %v1518, 1.442695
        %v1682 = vpow.pop %v1681
        %v1683 = vmul.f32 %v1519, 1.442695
        %v1684 = vpow.pop %v1683
        %v1685 = vmul.f32 %v1520, 1.442695
        %v1686 = vpow.pop %v1685
        %v1687 = vmul.f32 %v1521, 1.442695
        %v1688 = vpow.pop %v1687
        %v1689 = vmul.f32 %v1522, 1.442695
        %v1690 = vpow.pop %v1689
        %v1691 = vmul.f32 %v1523, 1.442695
        %v1692 = vpow.pop %v1691
        %v1693 = vmul.f32 %v1524, 1.442695
        %v1694 = vpow.pop %v1693
        %v1695 = vmul.f32 %v1525, 1.442695
        %v1696 = vpow.pop %v1695
        %v1697 = vmul.f32 %v1526, 1.442695
        %v1698 = vpow.pop %v1697
        %v1699 = vmul.f32 %v1527, 1.442695
        %v1700 = vpow.pop %v1699
        %v1701 = vmul.f32 %v1528, 1.442695
        %v1702 = vpow.pop %v1701
        %v1703 = vmul.f32 %v1529, 1.442695
        %v1704 = vpow.pop %v1703
        %v1705 = vmul.f32 %v1530, 1.442695
        %v1706 = vpow.pop %v1705
        %v1707 = vmul.f32 %v1531, 1.442695
        %v1708 = vpow.pop %v1707
        %v1709 = vmul.f32 %v1532, 1.442695
        %v1710 = vpow.pop %v1709
        %v1711 = vmul.f32 %v1533, 1.442695
        %v1712 = vpow.pop %v1711
        %v1713 = vmul.f32 %v1534, 1.442695
        %v1714 = vpow.pop %v1713
        %v1715 = vmul.f32 %v1535, 1.442695
        %v1716 = vpow.pop %v1715
        %v1717 = vmul.f32 %v1536, 1.442695
        %v1718 = vpow.pop %v1717
        %v1719 = vmul.f32 %v1537, 1.442695
        %v1720 = vpow.pop %v1719
        %v1721 = vmul.f32 %v1538, 1.442695
        %v1722 = vpow.pop %v1721
        %v1723 = vmul.f32 %v1539, 1.442695
        %v1724 = vpow.pop %v1723
        %v1725 = vmul.f32 %v1540, 1.442695
        %v1726 = vpow.pop %v1725
        %v1727 = vmul.f32 %v1541, 1.442695
        %v1728 = vpow.pop %v1727
        %v1729 = vmul.f32 %v1542, 1.442695
        %v1730 = vpow.pop %v1729
        %v1731 = vmul.f32 %v1543, 1.442695
        %v1732 = vpow.pop %v1731
        %v1733 = vmul.f32 %v1544, 1.442695
        %v1734 = vpow.pop %v1733
        %v1735 = vmul.f32 %v1545, 1.442695
        %v1736 = vpow.pop %v1735
        %v1737 = vmul.f32 %v1546, 1.442695
        %v1738 = vpow.pop %v1737
        %v1739 = vmul.f32 %v1547, 1.442695
        %v1740 = vpow.pop %v1739
        %v1741 = vmul.f32 %v1548, 1.442695
        %v1742 = vpow.pop %v1741
        %v1743 = vmul.f32 %v1549, 1.442695
        %v1744 = vpow.pop %v1743
        %v1745 = vmul.f32 %v1550, 1.442695
        %v1746 = vpow.pop %v1745
        %v1747 = vmul.f32 %v1551, 1.442695
        %v1748 = vpow.pop %v1747
        %v1749 = vmul.f32 %v1552, 1.442695
        %v1750 = vpow.pop %v1749
        %v1751 = vmul.f32 %v1553, 1.442695
        %v1752 = vpow.pop %v1751
        %v1753 = vmul.f32 %v1554, 1.442695
        %v1754 = vpow.pop %v1753
        %v1755 = vmul.f32 %v1555, 1.442695
        %v1756 = vpow.pop %v1755
        %v1757 = vmul.f32 %v1556, 1.442695
        %v1758 = vpow.pop %v1757
        %v1759 = vmul.f32 %v1557, 1.442695
        %v1760 = vpow.pop %v1759
        %v1761 = vmul.f32 %v1558, 1.442695
        %v1762 = vpow.pop %v1761
        %v1763 = vmul.f32 %v1559, 1.442695
        %v1764 = vpow.pop %v1763
        %v1765 = vmul.f32 %v1560, 1.442695
        %v1766 = vpow.pop %v1765
        %v1767 = vmul.f32 %v1561, 1.442695
        %v1768 = vpow.pop %v1767
        %v1769 = vmul.f32 %v1562, 1.442695
        %v1770 = vpow.pop %v1769
        %v1771 = vmul.f32 %v1563, 1.442695
        %v1772 = vpow.pop %v1771
        %v1773 = vmul.f32 %v1564, 1.442695
        %v1774 = vpow.pop %v1773
        %v1775 = vmul.f32 %v1565, 1.442695
        %v1776 = vpow.pop %v1775
        %v1777 = vmul.f32 %v1566, 1.442695
        %v1778 = vpow.pop %v1777
        %v1779 = vmul.f32 %v1567, 1.442695
        %v1780 = vpow.pop %v1779
        %v1781 = vmul.f32 %v1568, 1.442695
        %v1782 = vpow.pop %v1781
        %v1783 = vmul.f32 %v1569, 1.442695
        %v1784 = vpow.pop %v1783
        %v1785 = vmul.f32 %v1570, 1.442695
        %v1786 = vpow.pop %v1785
        %v1787 = vmul.f32 %v1571, 1.442695
        %v1788 = vpow.pop %v1787
        %v1789 = vmul.f32 %v1572, 1.442695
        %v1790 = vpow.pop %v1789
        %v1791 = vmul.f32 %v1573, 1.442695
        %v1792 = vpow.pop %v1791
        %v1793 = vmul.f32 %v1574, 1.442695
        %v1794 = vpow.pop %v1793
        %v1795 = vmul.f32 %v1575, 1.442695
        %v1796 = vpow.pop %v1795
        %v1797 = vmul.f32 %v1576, 1.442695
        %v1798 = vpow.pop %v1797
        %v1799 = vmul.f32 %v1577, 1.442695
        %v1800 = vpow.pop %v1799
        %v1801 = vmul.f32 %v1578, 1.442695
        %v1802 = vpow.pop %v1801
        %v1803 = vmul.f32 %v1579, 1.442695
        %v1804 = vpow.pop %v1803
        %v1805 = vmul.f32 %v1580, 1.442695
        %v1806 = vpow.pop %v1805
        %v1807 = vmul.f32 %v1581, 1.442695
        %v1808 = vpow.pop %v1807
        %v1809 = vmul.f32 %v1582, 1.442695
        %v1810 = vpow.pop %v1809
        %v1811 = vmul.f32 %v1583, 1.442695
        %v1812 = vpow.pop %v1811
        %v1813 = vmul.f32 %v1584, 1.442695
        %v1814 = vpow.pop %v1813
        %v1815 = vmul.f32 %v1585, 1.442695
        %v1816 = vpow.pop %v1815
        %v1817 = vmul.f32 %v1586, 1.442695
        %v1818 = vpow.pop %v1817
        %v1819 = vmul.f32 %v1587, 1.442695
        %v1820 = vpow.pop %v1819
        %v1821 = vmul.f32 %v1588, 1.442695
        %v1822 = vpow.pop %v1821
        %v1823 = vmul.f32 %v1589, 1.442695
        %v1824 = vpow.pop %v1823
        %v1825 = vmul.f32 %v1590, 1.442695
        %v1826 = vpow.pop %v1825
        %v1827 = vmul.f32 %v1591, 1.442695
        %v1828 = vpow.pop %v1827
        %v1829 = vmul.f32 %v1592, 1.442695
        %v1830 = vpow.pop %v1829
        %v1831 = vmul.f32 %v1593, 1.442695
        %v1832 = vpow.pop %v1831
        %v1833 = vmul.f32 %v1594, 1.442695
        %v1834 = vpow.pop %v1833
        %v1835 = vmul.f32 %v1595, 1.442695
        %v1836 = vpow.pop %v1835
        %v1837 = vmul.f32 %v1596, 1.442695
        %v1838 = vpow.pop %v1837
        %v1839 = vmul.f32 %v1597, 1.442695
        %v1840 = vpow.pop %v1839
        %v1841 = vmul.f32 %v1598, 1.442695
        %v1842 = vpow.pop %v1841
        %v1843 = vmul.f32 %v1599, 1.442695
        %v1844 = vpow.pop %v1843
        %v1845 = vmul.f32 %v1600, 1.442695
        %v1846 = vpow.pop %v1845
        %v1847 = vmul.f32 %v1601, 1.442695
        %v1848 = vpow.pop %v1847
        %v1849 = vmul.f32 %v1602, 1.442695
        %v1850 = vpow.pop %v1849
        %v1851 = vmul.f32 %v1603, 1.442695
        %v1852 = vpow.pop %v1851
        %v1853 = vmul.f32 %v1604, 1.442695
        %v1854 = vpow.pop %v1853
        %v1855 = vmul.f32 %v1605, 1.442695
        %v1856 = vpow.pop %v1855
        %v1857 = vmul.f32 %v1606, 1.442695
        %v1858 = vpow.pop %v1857
        %v1859 = vmul.f32 %v1607, 1.442695
        %v1860 = vpow.pop %v1859
        %v1861 = vmul.f32 %v1608, 1.442695
        %v1862 = vpow.pop %v1861
        %v1863 = vmul.f32 %v1609, 1.442695
        %v1864 = vpow.pop %v1863
        %v1865 = vmul.f32 %v1610, 1.442695
        %v1866 = vpow.pop %v1865
        %v1867 = vadd.f32 %v1612, 1.0
        %v1868 = vadd.f32 %v1614, 1.0
        %v1869 = vadd.f32 %v1616, 1.0
        %v1870 = vadd.f32 %v1618, 1.0
        %v1871 = vadd.f32 %v1620, 1.0
        %v1872 = vadd.f32 %v1622, 1.0
        %v1873 = vadd.f32 %v1624, 1.0
        %v1874 = vadd.f32 %v1626, 1.0
        %v1875 = vadd.f32 %v1628, 1.0
        %v1876 = vadd.f32 %v1630, 1.0
        %v1877 = vadd.f32 %v1632, 1.0
        %v1878 = vadd.f32 %v1634, 1.0
        %v1879 = vadd.f32 %v1636, 1.0
        %v1880 = vadd.f32 %v1638, 1.0
        %v1881 = vadd.f32 %v1640, 1.0
        %v1882 = vadd.f32 %v1642, 1.0
        %v1883 = vadd.f32 %v1644, 1.0
        %v1884 = vadd.f32 %v1646, 1.0
        %v1885 = vadd.f32 %v1648, 1.0
        %v1886 = vadd.f32 %v1650, 1.0
        %v1887 = vadd.f32 %v1652, 1.0
        %v1888 = vadd.f32 %v1654, 1.0
        %v1889 = vadd.f32 %v1656, 1.0
        %v1890 = vadd.f32 %v1658, 1.0
        %v1891 = vadd.f32 %v1660, 1.0
        %v1892 = vadd.f32 %v1662, 1.0
        %v1893 = vadd.f32 %v1664, 1.0
        %v1894 = vadd.f32 %v1666, 1.0
        %v1895 = vadd.f32 %v1668, 1.0
        %v1896 = vadd.f32 %v1670, 1.0
        %v1897 = vadd.f32 %v1672, 1.0
        %v1898 = vadd.f32 %v1674, 1.0
        %v1899 = vadd.f32 %v1676, 1.0
        %v1900 = vadd.f32 %v1678, 1.0
        %v1901 = vadd.f32 %v1680, 1.0
        %v1902 = vadd.f32 %v1682, 1.0
        %v1903 = vadd.f32 %v1684, 1.0
        %v1904 = vadd.f32 %v1686, 1.0
        %v1905 = vadd.f32 %v1688, 1.0
        %v1906 = vadd.f32 %v1690, 1.0
        %v1907 = vadd.f32 %v1692, 1.0
        %v1908 = vadd.f32 %v1694, 1.0
        %v1909 = vadd.f32 %v1696, 1.0
        %v1910 = vadd.f32 %v1698, 1.0
        %v1911 = vadd.f32 %v1700, 1.0
        %v1912 = vadd.f32 %v1702, 1.0
        %v1913 = vadd.f32 %v1704, 1.0
        %v1914 = vadd.f32 %v1706, 1.0
        %v1915 = vadd.f32 %v1708, 1.0
        %v1916 = vadd.f32 %v1710, 1.0
        %v1917 = vadd.f32 %v1712, 1.0
        %v1918 = vadd.f32 %v1714, 1.0
        %v1919 = vadd.f32 %v1716, 1.0
        %v1920 = vadd.f32 %v1718, 1.0
        %v1921 = vadd.f32 %v1720, 1.0
        %v1922 = vadd.f32 %v1722, 1.0
        %v1923 = vadd.f32 %v1724, 1.0
        %v1924 = vadd.f32 %v1726, 1.0
        %v1925 = vadd.f32 %v1728, 1.0
        %v1926 = vadd.f32 %v1730, 1.0
        %v1927 = vadd.f32 %v1732, 1.0
        %v1928 = vadd.f32 %v1734, 1.0
        %v1929 = vadd.f32 %v1736, 1.0
        %v1930 = vadd.f32 %v1738, 1.0
        %v1931 = vadd.f32 %v1740, 1.0
        %v1932 = vadd.f32 %v1742, 1.0
        %v1933 = vadd.f32 %v1744, 1.0
        %v1934 = vadd.f32 %v1746, 1.0
        %v1935 = vadd.f32 %v1748, 1.0
        %v1936 = vadd.f32 %v1750, 1.0
        %v1937 = vadd.f32 %v1752, 1.0
        %v1938 = vadd.f32 %v1754, 1.0
        %v1939 = vadd.f32 %v1756, 1.0
        %v1940 = vadd.f32 %v1758, 1.0
        %v1941 = vadd.f32 %v1760, 1.0
        %v1942 = vadd.f32 %v1762, 1.0
        %v1943 = vadd.f32 %v1764, 1.0
        %v1944 = vadd.f32 %v1766, 1.0
        %v1945 = vadd.f32 %v1768, 1.0
        %v1946 = vadd.f32 %v1770, 1.0
        %v1947 = vadd.f32 %v1772, 1.0
        %v1948 = vadd.f32 %v1774, 1.0
        %v1949 = vadd.f32 %v1776, 1.0
        %v1950 = vadd.f32 %v1778, 1.0
        %v1951 = vadd.f32 %v1780, 1.0
        %v1952 = vadd.f32 %v1782, 1.0
        %v1953 = vadd.f32 %v1784, 1.0
        %v1954 = vadd.f32 %v1786, 1.0
        %v1955 = vadd.f32 %v1788, 1.0
        %v1956 = vadd.f32 %v1790, 1.0
        %v1957 = vadd.f32 %v1792, 1.0
        %v1958 = vadd.f32 %v1794, 1.0
        %v1959 = vadd.f32 %v1796, 1.0
        %v1960 = vadd.f32 %v1798, 1.0
        %v1961 = vadd.f32 %v1800, 1.0
        %v1962 = vadd.f32 %v1802, 1.0
        %v1963 = vadd.f32 %v1804, 1.0
        %v1964 = vadd.f32 %v1806, 1.0
        %v1965 = vadd.f32 %v1808, 1.0
        %v1966 = vadd.f32 %v1810, 1.0
        %v1967 = vadd.f32 %v1812, 1.0
        %v1968 = vadd.f32 %v1814, 1.0
        %v1969 = vadd.f32 %v1816, 1.0
        %v1970 = vadd.f32 %v1818, 1.0
        %v1971 = vadd.f32 %v1820, 1.0
        %v1972 = vadd.f32 %v1822, 1.0
        %v1973 = vadd.f32 %v1824, 1.0
        %v1974 = vadd.f32 %v1826, 1.0
        %v1975 = vadd.f32 %v1828, 1.0
        %v1976 = vadd.f32 %v1830, 1.0
        %v1977 = vadd.f32 %v1832, 1.0
        %v1978 = vadd.f32 %v1834, 1.0
        %v1979 = vadd.f32 %v1836, 1.0
        %v1980 = vadd.f32 %v1838, 1.0
        %v1981 = vadd.f32 %v1840, 1.0
        %v1982 = vadd.f32 %v1842, 1.0
        %v1983 = vadd.f32 %v1844, 1.0
        %v1984 = vadd.f32 %v1846, 1.0
        %v1985 = vadd.f32 %v1848, 1.0
        %v1986 = vadd.f32 %v1850, 1.0
        %v1987 = vadd.f32 %v1852, 1.0
        %v1988 = vadd.f32 %v1854, 1.0
        %v1989 = vadd.f32 %v1856, 1.0
        %v1990 = vadd.f32 %v1858, 1.0
        %v1991 = vadd.f32 %v1860, 1.0
        %v1992 = vadd.f32 %v1862, 1.0
        %v1993 = vadd.f32 %v1864, 1.0
        %v1994 = vadd.f32 %v1866, 1.0
        %v1995 = vrcp.pop %v1867
        %v1996 = vrcp.pop %v1868
        %v1997 = vrcp.pop %v1869
        %v1998 = vrcp.pop %v1870
        %v1999 = vrcp.pop %v1871
        %v2000 = vrcp.pop %v1872
        %v2001 = vrcp.pop %v1873
        %v2002 = vrcp.pop %v1874
        %v2003 = vrcp.pop %v1875
        %v2004 = vrcp.pop %v1876
        %v2005 = vrcp.pop %v1877
        %v2006 = vrcp.pop %v1878
        %v2007 = vrcp.pop %v1879
        %v2008 = vrcp.pop %v1880
        %v2009 = vrcp.pop %v1881
        %v2010 = vrcp.pop %v1882
        %v2011 = vrcp.pop %v1883
        %v2012 = vrcp.pop %v1884
        %v2013 = vrcp.pop %v1885
        %v2014 = vrcp.pop %v1886
        %v2015 = vrcp.pop %v1887
        %v2016 = vrcp.pop %v1888
        %v2017 = vrcp.pop %v1889
        %v2018 = vrcp.pop %v1890
        %v2019 = vrcp.pop %v1891
        %v2020 = vrcp.pop %v1892
        %v2021 = vrcp.pop %v1893
        %v2022 = vrcp.pop %v1894
        %v2023 = vrcp.pop %v1895
        %v2024 = vrcp.pop %v1896
        %v2025 = vrcp.pop %v1897
        %v2026 = vrcp.pop %v1898
        %v2027 = vrcp.pop %v1899
        %v2028 = vrcp.pop %v1900
        %v2029 = vrcp.pop %v1901
        %v2030 = vrcp.pop %v1902
        %v2031 = vrcp.pop %v1903
        %v2032 = vrcp.pop %v1904
        %v2033 = vrcp.pop %v1905
        %v2034 = vrcp.pop %v1906
        %v2035 = vrcp.pop %v1907
        %v2036 = vrcp.pop %v1908
        %v2037 = vrcp.pop %v1909
        %v2038 = vrcp.pop %v1910
        %v2039 = vrcp.pop %v1911
        %v2040 = vrcp.pop %v1912
        %v2041 = vrcp.pop %v1913
        %v2042 = vrcp.pop %v1914
        %v2043 = vrcp.pop %v1915
        %v2044 = vrcp.pop %v1916
        %v2045 = vrcp.pop %v1917
        %v2046 = vrcp.pop %v1918
        %v2047 = vrcp.pop %v1919
        %v2048 = vrcp.pop %v1920
        %v2049 = vrcp.pop %v1921
        %v2050 = vrcp.pop %v1922
        %v2051 = vrcp.pop %v1923
        %v2052 = vrcp.pop %v1924
        %v2053 = vrcp.pop %v1925
        %v2054 = vrcp.pop %v1926
        %v2055 = vrcp.pop %v1927
        %v2056 = vrcp.pop %v1928
        %v2057 = vrcp.pop %v1929
        %v2058 = vrcp.pop %v1930
        %v2059 = vrcp.pop %v1931
        %v2060 = vrcp.pop %v1932
        %v2061 = vrcp.pop %v1933
        %v2062 = vrcp.pop %v1934
        %v2063 = vrcp.pop %v1935
        %v2064 = vrcp.pop %v1936
        %v2065 = vrcp.pop %v1937
        %v2066 = vrcp.pop %v1938
        %v2067 = vrcp.pop %v1939
        %v2068 = vrcp.pop %v1940
        %v2069 = vrcp.pop %v1941
        %v2070 = vrcp.pop %v1942
        %v2071 = vrcp.pop %v1943
        %v2072 = vrcp.pop %v1944
        %v2073 = vrcp.pop %v1945
        %v2074 = vrcp.pop %v1946
        %v2075 = vrcp.pop %v1947
        %v2076 = vrcp.pop %v1948
        %v2077 = vrcp.pop %v1949
        %v2078 = vrcp.pop %v1950
        %v2079 = vrcp.pop %v1951
        %v2080 = vrcp.pop %v1952
        %v2081 = vrcp.pop %v1953
        %v2082 = vrcp.pop %v1954
        %v2083 = vrcp.pop %v1955
        %v2084 = vrcp.pop %v1956
        %v2085 = vrcp.pop %v1957
        %v2086 = vrcp.pop %v1958
        %v2087 = vrcp.pop %v1959
        %v2088 = vrcp.pop %v1960
        %v2089 = vrcp.pop %v1961
        %v2090 = vrcp.pop %v1962
        %v2091 = vrcp.pop %v1963
        %v2092 = vrcp.pop %v1964
        %v2093 = vrcp.pop %v1965
        %v2094 = vrcp.pop %v1966
        %v2095 = vrcp.pop %v1967
        %v2096 = vrcp.pop %v1968
        %v2097 = vrcp.pop %v1969
        %v2098 = vrcp.pop %v1970
        %v2099 = vrcp.pop %v1971
        %v2100 = vrcp.pop %v1972
        %v2101 = vrcp.pop %v1973
        %v2102 = vrcp.pop %v1974
        %v2103 = vrcp.pop %v1975
        %v2104 = vrcp.pop %v1976
        %v2105 = vrcp.pop %v1977
        %v2106 = vrcp.pop %v1978
        %v2107 = vrcp.pop %v1979
        %v2108 = vrcp.pop %v1980
        %v2109 = vrcp.pop %v1981
        %v2110 = vrcp.pop %v1982
        %v2111 = vrcp.pop %v1983
        %v2112 = vrcp.pop %v1984
        %v2113 = vrcp.pop %v1985
        %v2114 = vrcp.pop %v1986
        %v2115 = vrcp.pop %v1987
        %v2116 = vrcp.pop %v1988
        %v2117 = vrcp.pop %v1989
        %v2118 = vrcp.pop %v1990
        %v2119 = vrcp.pop %v1991
        %v2120 = vrcp.pop %v1992
        %v2121 = vrcp.pop %v1993
        %v2122 = vrcp.pop %v1994
        %v2123 = vmul.f32 %v973, %v1995
        %v2124 = vmul.f32 %v976, %v1996
        %v2125 = vmul.f32 %v981, %v1997
        %v2126 = vmul.f32 %v984, %v1998
        %v2127 = vmul.f32 %v989, %v1999
        %v2128 = vmul.f32 %v992, %v2000
        %v2129 = vmul.f32 %v997, %v2001
        %v2130 = vmul.f32 %v1000, %v2002
        %v2131 = vmul.f32 %v1005, %v2003
        %v2132 = vmul.f32 %v1008, %v2004
        %v2133 = vmul.f32 %v1013, %v2005
        %v2134 = vmul.f32 %v1016, %v2006
        %v2135 = vmul.f32 %v1021, %v2007
        %v2136 = vmul.f32 %v1024, %v2008
        %v2137 = vmul.f32 %v1029, %v2009
        %v2138 = vmul.f32 %v1032, %v2010
        %v2139 = vmul.f32 %v1037, %v2011
        %v2140 = vmul.f32 %v1040, %v2012
        %v2141 = vmul.f32 %v1045, %v2013
        %v2142 = vmul.f32 %v1048, %v2014
        %v2143 = vmul.f32 %v1053, %v2015
        %v2144 = vmul.f32 %v1056, %v2016
        %v2145 = vmul.f32 %v1061, %v2017
        %v2146 = vmul.f32 %v1064, %v2018
        %v2147 = vmul.f32 %v1069, %v2019
        %v2148 = vmul.f32 %v1072, %v2020
        %v2149 = vmul.f32 %v1077, %v2021
        %v2150 = vmul.f32 %v1080, %v2022
        %v2151 = vmul.f32 %v1085, %v2023
        %v2152 = vmul.f32 %v1088, %v2024
        %v2153 = vmul.f32 %v1093, %v2025
        %v2154 = vmul.f32 %v1096, %v2026
        %v2155 = vmul.f32 %v1101, %v2027
        %v2156 = vmul.f32 %v1104, %v2028
        %v2157 = vmul.f32 %v1109, %v2029
        %v2158 = vmul.f32 %v1112, %v2030
        %v2159 = vmul.f32 %v1117, %v2031
        %v2160 = vmul.f32 %v1120, %v2032
        %v2161 = vmul.f32 %v1125, %v2033
        %v2162 = vmul.f32 %v1128, %v2034
        %v2163 = vmul.f32 %v1133, %v2035
        %v2164 = vmul.f32 %v1136, %v2036
        %v2165 = vmul.f32 %v1141, %v2037
        %v2166 = vmul.f32 %v1144, %v2038
        %v2167 = vmul.f32 %v1149, %v2039
        %v2168 = vmul.f32 %v1152, %v2040
        %v2169 = vmul.f32 %v1157, %v2041
        %v2170 = vmul.f32 %v1160, %v2042
        %v2171 = vmul.f32 %v1165, %v2043
        %v2172 = vmul.f32 %v1168, %v2044
        %v2173 = vmul.f32 %v1173, %v2045
        %v2174 = vmul.f32 %v1176, %v2046
        %v2175 = vmul.f32 %v1181, %v2047
        %v2176 = vmul.f32 %v1184, %v2048
        %v2177 = vmul.f32 %v1189, %v2049
        %v2178 = vmul.f32 %v1192, %v2050
        %v2179 = vmul.f32 %v1197, %v2051
        %v2180 = vmul.f32 %v1200, %v2052
        %v2181 = vmul.f32 %v1205, %v2053
        %v2182 = vmul.f32 %v1208, %v2054
        %v2183 = vmul.f32 %v1213, %v2055
        %v2184 = vmul.f32 %v1216, %v2056
        %v2185 = vmul.f32 %v1221, %v2057
        %v2186 = vmul.f32 %v1224, %v2058
        %v2187 = vmul.f32 %v1229, %v2059
        %v2188 = vmul.f32 %v1232, %v2060
        %v2189 = vmul.f32 %v1237, %v2061
        %v2190 = vmul.f32 %v1240, %v2062
        %v2191 = vmul.f32 %v1245, %v2063
        %v2192 = vmul.f32 %v1248, %v2064
        %v2193 = vmul.f32 %v1253, %v2065
        %v2194 = vmul.f32 %v1256, %v2066
        %v2195 = vmul.f32 %v1261, %v2067
        %v2196 = vmul.f32 %v1264, %v2068
        %v2197 = vmul.f32 %v1269, %v2069
        %v2198 = vmul.f32 %v1272, %v2070
        %v2199 = vmul.f32 %v1277, %v2071
        %v2200 = vmul.f32 %v1280, %v2072
        %v2201 = vmul.f32 %v1285, %v2073
        %v2202 = vmul.f32 %v1288, %v2074
        %v2203 = vmul.f32 %v1293, %v2075
        %v2204 = vmul.f32 %v1296, %v2076
        %v2205 = vmul.f32 %v1301, %v2077
        %v2206 = vmul.f32 %v1304, %v2078
        %v2207 = vmul.f32 %v1309, %v2079
        %v2208 = vmul.f32 %v1312, %v2080
        %v2209 = vmul.f32 %v1317, %v2081
        %v2210 = vmul.f32 %v1320, %v2082
        %v2211 = vmul.f32 %v1325, %v2083
        %v2212 = vmul.f32 %v1328, %v2084
        %v2213 = vmul.f32 %v1333, %v2085
        %v2214 = vmul.f32 %v1336, %v2086
        %v2215 = vmul.f32 %v1341, %v2087
        %v2216 = vmul.f32 %v1344, %v2088
        %v2217 = vmul.f32 %v1349, %v2089
        %v2218 = vmul.f32 %v1352, %v2090
        %v2219 = vmul.f32 %v1357, %v2091
        %v2220 = vmul.f32 %v1360, %v2092
        %v2221 = vmul.f32 %v1365, %v2093
        %v2222 = vmul.f32 %v1368, %v2094
        %v2223 = vmul.f32 %v1373, %v2095
        %v2224 = vmul.f32 %v1376, %v2096
        %v2225 = vmul.f32 %v1381, %v2097
        %v2226 = vmul.f32 %v1384, %v2098
        %v2227 = vmul.f32 %v1389, %v2099
        %v2228 = vmul.f32 %v1392, %v2100
        %v2229 = vmul.f32 %v1397, %v2101
        %v2230 = vmul.f32 %v1400, %v2102
        %v2231 = vmul.f32 %v1405, %v2103
        %v2232 = vmul.f32 %v1408, %v2104
        %v2233 = vmul.f32 %v1413, %v2105
        %v2234 = vmul.f32 %v1416, %v2106
        %v2235 = vmul.f32 %v1421, %v2107
        %v2236 = vmul.f32 %v1424, %v2108
        %v2237 = vmul.f32 %v1429, %v2109
        %v2238 = vmul.f32 %v1432, %v2110
        %v2239 = vmul.f32 %v1437, %v2111
        %v2240 = vmul.f32 %v1440, %v2112
        %v2241 = vmul.f32 %v1445, %v2113
        %v2242 = vmul.f32 %v1448, %v2114
        %v2243 = vmul.f32 %v1453, %v2115
        %v2244 = vmul.f32 %v1456, %v2116
        %v2245 = vmul.f32 %v1461, %v2117
        %v2246 = vmul.f32 %v1464, %v2118
        %v2247 = vmul.f32 %v1469, %v2119
        %v2248 = vmul.f32 %v1472, %v2120
        %v2249 = vmul.f32 %v1477, %v2121
        %v2250 = vmul.f32 %v1480, %v2122
        %v2251 = vpack.c.bf16 %v2124, %v2123
        %v2252 = vpack.c.bf16 %v2126, %v2125
        %v2253 = vpack.c.bf16 %v2128, %v2127
        %v2254 = vpack.c.bf16 %v2130, %v2129
        %v2255 = vpack.c.bf16 %v2132, %v2131
        %v2256 = vpack.c.bf16 %v2134, %v2133
        %v2257 = vpack.c.bf16 %v2136, %v2135
        %v2258 = vpack.c.bf16 %v2138, %v2137
        %v2259 = vpack.c.bf16 %v2140, %v2139
        %v2260 = vpack.c.bf16 %v2142, %v2141
        %v2261 = vpack.c.bf16 %v2144, %v2143
        %v2262 = vpack.c.bf16 %v2146, %v2145
        %v2263 = vpack.c.bf16 %v2148, %v2147
        %v2264 = vpack.c.bf16 %v2150, %v2149
        %v2265 = vpack.c.bf16 %v2152, %v2151
        %v2266 = vpack.c.bf16 %v2154, %v2153
        %v2267 = vpack.c.bf16 %v2156, %v2155
        %v2268 = vpack.c.bf16 %v2158, %v2157
        %v2269 = vpack.c.bf16 %v2160, %v2159
        %v2270 = vpack.c.bf16 %v2162, %v2161
        %v2271 = vpack.c.bf16 %v2164, %v2163
        %v2272 = vpack.c.bf16 %v2166, %v2165
        %v2273 = vpack.c.bf16 %v2168, %v2167
        %v2274 = vpack.c.bf16 %v2170, %v2169
        %v2275 = vpack.c.bf16 %v2172, %v2171
        %v2276 = vpack.c.bf16 %v2174, %v2173
        %v2277 = vpack.c.bf16 %v2176, %v2175
        %v2278 = vpack.c.bf16 %v2178, %v2177
        %v2279 = vpack.c.bf16 %v2180, %v2179
        %v2280 = vpack.c.bf16 %v2182, %v2181
        %v2281 = vpack.c.bf16 %v2184, %v2183
        %v2282 = vpack.c.bf16 %v2186, %v2185
        %v2283 = vpack.c.bf16 %v2188, %v2187
        %v2284 = vpack.c.bf16 %v2190, %v2189
        %v2285 = vpack.c.bf16 %v2192, %v2191
        %v2286 = vpack.c.bf16 %v2194, %v2193
        %v2287 = vpack.c.bf16 %v2196, %v2195
        %v2288 = vpack.c.bf16 %v2198, %v2197
        %v2289 = vpack.c.bf16 %v2200, %v2199
        %v2290 = vpack.c.bf16 %v2202, %v2201
        %v2291 = vpack.c.bf16 %v2204, %v2203
        %v2292 = vpack.c.bf16 %v2206, %v2205
        %v2293 = vpack.c.bf16 %v2208, %v2207
        %v2294 = vpack.c.bf16 %v2210, %v2209
        %v2295 = vpack.c.bf16 %v2212, %v2211
        %v2296 = vpack.c.bf16 %v2214, %v2213
        %v2297 = vpack.c.bf16 %v2216, %v2215
        %v2298 = vpack.c.bf16 %v2218, %v2217
        %v2299 = vpack.c.bf16 %v2220, %v2219
        %v2300 = vpack.c.bf16 %v2222, %v2221
        %v2301 = vpack.c.bf16 %v2224, %v2223
        %v2302 = vpack.c.bf16 %v2226, %v2225
        %v2303 = vpack.c.bf16 %v2228, %v2227
        %v2304 = vpack.c.bf16 %v2230, %v2229
        %v2305 = vpack.c.bf16 %v2232, %v2231
        %v2306 = vpack.c.bf16 %v2234, %v2233
        %v2307 = vpack.c.bf16 %v2236, %v2235
        %v2308 = vpack.c.bf16 %v2238, %v2237
        %v2309 = vpack.c.bf16 %v2240, %v2239
        %v2310 = vpack.c.bf16 %v2242, %v2241
        %v2311 = vpack.c.bf16 %v2244, %v2243
        %v2312 = vpack.c.bf16 %v2246, %v2245
        %v2313 = vpack.c.bf16 %v2248, %v2247
        %v2314 = vpack.c.bf16 %v2250, %v2249
        %v2315 = vld [vmem:[%s3] sm:$0xf]
        %v2316 = vld [vmem:[%s3 + $0x4] sm:$0xf]
        %v2317 = vld [vmem:[%s3 + $0x8] sm:$0xf]
        %v2318 = vld [vmem:[%s3 + $0xc] sm:$0xf]
        %v2319 = vld [vmem:[%s4] sm:$0x1]
        %v2321 = vlaneseq
        %v2322 = vshrl.u32 %v2321, 7
        %v2323 = vsub.s32 0, %v2322
        %v2324 = vrot.slane %v2319, %v2323
        %v2330 = vunpack.c.l.b16 %v2315
        %v2331 = vunpack.c.l.b16 %v2316
        %v2332 = vunpack.c.l.b16 %v2317
        %v2333 = vunpack.c.l.b16 %v2318
        %v2334 = vpack.c.b16 %v2331, %v2330
        %v2335 = vpack.c.b16 %v2333, %v2332
        %vm2338 = vcmask 261120
        %v2340 = vsel %vm2338, %v2251, 0
        %v2343 = vsel %vm2338, %v2252, 0
        %v2346 = vsel %vm2338, %v2253, 0
        %v2349 = vsel %vm2338, %v2254, 0
        %v2352 = vsel %vm2338, %v2255, 0
        %v2355 = vsel %vm2338, %v2256, 0
        %v2358 = vsel %vm2338, %v2257, 0
        %v2361 = vsel %vm2338, %v2258, 0
        %v2364 = vsel %vm2338, %v2259, 0
        %v2367 = vsel %vm2338, %v2260, 0
        %v2370 = vsel %vm2338, %v2261, 0
        %v2373 = vsel %vm2338, %v2262, 0
        %v2376 = vsel %vm2338, %v2263, 0
        %v2379 = vsel %vm2338, %v2264, 0
        %v2382 = vsel %vm2338, %v2265, 0
        %v2385 = vsel %vm2338, %v2266, 0
        %v2388 = vsel %vm2338, %v2267, 0
        %v2391 = vsel %vm2338, %v2268, 0
        %v2394 = vsel %vm2338, %v2269, 0
        %v2397 = vsel %vm2338, %v2270, 0
        %v2400 = vsel %vm2338, %v2271, 0
        %v2403 = vsel %vm2338, %v2272, 0
        %v2406 = vsel %vm2338, %v2273, 0
        %v2409 = vsel %vm2338, %v2274, 0
        %v2412 = vsel %vm2338, %v2275, 0
        %v2415 = vsel %vm2338, %v2276, 0
        %v2418 = vsel %vm2338, %v2277, 0
        %v2421 = vsel %vm2338, %v2278, 0
        %v2424 = vsel %vm2338, %v2279, 0
        %v2427 = vsel %vm2338, %v2280, 0
        %v2430 = vsel %vm2338, %v2281, 0
        %v2433 = vsel %vm2338, %v2282, 0
        %v2436 = vsel %vm2338, %v2283, 0
        %v2439 = vsel %vm2338, %v2284, 0
        %v2442 = vsel %vm2338, %v2285, 0
        %v2445 = vsel %vm2338, %v2286, 0
        %v2448 = vsel %vm2338, %v2287, 0
        %v2451 = vsel %vm2338, %v2288, 0
        %v2454 = vsel %vm2338, %v2289, 0
        %v2457 = vsel %vm2338, %v2290, 0
        %v2460 = vsel %vm2338, %v2291, 0
        %v2463 = vsel %vm2338, %v2292, 0
        %v2466 = vsel %vm2338, %v2293, 0
        %v2469 = vsel %vm2338, %v2294, 0
        %v2472 = vsel %vm2338, %v2295, 0
        %v2475 = vsel %vm2338, %v2296, 0
        %v2478 = vsel %vm2338, %v2297, 0
        %v2481 = vsel %vm2338, %v2298, 0
        %v2484 = vsel %vm2338, %v2299, 0
        %v2487 = vsel %vm2338, %v2300, 0
        %v2490 = vsel %vm2338, %v2301, 0
        %v2493 = vsel %vm2338, %v2302, 0
        %v2496 = vsel %vm2338, %v2303, 0
        %v2499 = vsel %vm2338, %v2304, 0
        %v2502 = vsel %vm2338, %v2305, 0
        %v2505 = vsel %vm2338, %v2306, 0
        %v2508 = vsel %vm2338, %v2307, 0
        %v2511 = vsel %vm2338, %v2308, 0
        %v2514 = vsel %vm2338, %v2309, 0
        %v2517 = vsel %vm2338, %v2310, 0
        %v2520 = vsel %vm2338, %v2311, 0
        %v2523 = vsel %vm2338, %v2312, 0
        %v2526 = vsel %vm2338, %v2313, 0
        %v2529 = vsel %vm2338, %v2314, 0
        %2531 = vmatprep.subr.bf16.mxu0 0
        %2532 = vmatpush1.bf16.msra.mxu0 %v2334
        %2533 = vmatprep.subr.bf16.mxu0 0
        %2534 = vmatpush1.bf16.msra.mxu0 %v2335
        %2535 = vmatprep.subr.bf16.mxu0 0
        %2536 = vmatpush1.bf16.msra.mxu0 0
        %2537 = vmatprep.subr.bf16.mxu0 0
        %2538 = vmatpush1.bf16.msra.mxu0 0
        %2539 = vmatprep.subr.bf16.mxu0 0
        %2540 = vmatpush1.bf16.msra.mxu0 0
        %2541 = vmatprep.subr.bf16.mxu0 0
        %2542 = vmatpush1.bf16.msra.mxu0 0
        %2543 = vmatprep.subr.bf16.mxu0 0
        %2544 = vmatpush1.bf16.msra.mxu0 0
        %2545 = vmatprep.subr.bf16.mxu0 0
        %2546 = vmatpush1.bf16.msra.mxu0 0
        %2547 = vmatprep.subr.bf16.mxu0 0
        %2548 = vmatpush1.bf16.msra.mxu0 0
        %2549 = vmatprep.subr.bf16.mxu0 0
        %2550 = vmatpush1.bf16.msra.mxu0 0
        %2551 = vmatprep.subr.bf16.mxu0 0
        %2552 = vmatpush1.bf16.msra.mxu0 0
        %2553 = vmatprep.subr.bf16.mxu0 0
        %2554 = vmatpush1.bf16.msra.mxu0 0
        %2555 = vmatprep.subr.bf16.mxu0 0
        %2556 = vmatpush1.bf16.msra.mxu0 0
        %2557 = vmatprep.subr.bf16.mxu0 0
        %2558 = vmatpush1.bf16.msra.mxu0 0
        %2559 = vmatprep.subr.bf16.mxu0 0
        %2560 = vmatpush1.bf16.msra.mxu0 0
        %2561 = vmatprep.subr.bf16.mxu0 0
        %2562 = vmatpush1.bf16.msra.mxu0 0
        %2563 = vmatprep.mubr.bf16.mxu0 0
        %2564 = vmatmul.mubr.bf16.gmra.mrb[0].mxu0 %v2340
        %v2565 = vpop.f32.mrb[0].mxu0
        %v2566 = vadd.f32 %v2324, %v2565
        %v2567 = vpop.f32.mrb[0].mxu0
        %v2568 = vpop.f32.mrb[0].mxu0
        %v2569 = vadd.f32 %v2324, %v2568
        %v2570 = vpop.f32.mrb[0].mxu0
        %2571 = vmatprep.mubr.bf16.mxu0 0
        %2572 = vmatmul.mubr.bf16.gmra.mrb[0].mxu0 %v2343
        %v2573 = vpop.f32.mrb[0].mxu0
        %v2574 = vadd.f32 %v2324, %v2573
        %v2575 = vpop.f32.mrb[0].mxu0
        %v2576 = vpop.f32.mrb[0].mxu0
        %v2577 = vadd.f32 %v2324, %v2576
        %v2578 = vpop.f32.mrb[0].mxu0
        %2579 = vmatprep.mubr.bf16.mxu0 0
        %2580 = vmatmul.mubr.bf16.gmra.mrb[0].mxu0 %v2346
        %v2581 = vpop.f32.mrb[0].mxu0
        %v2582 = vadd.f32 %v2324, %v2581
        %v2583 = vpop.f32.mrb[0].mxu0
        %v2584 = vpop.f32.mrb[0].mxu0
        %v2585 = vadd.f32 %v2324, %v2584
        %v2586 = vpop.f32.mrb[0].mxu0
        %2587 = vmatprep.mubr.bf16.mxu0 0
        %2588 = vmatmul.mubr.bf16.gmra.mrb[0].mxu0 %v2349
        %v2589 = vpop.f32.mrb[0].mxu0
        %v2590 = vadd.f32 %v2324, %v2589
        %v2591 = vpop.f32.mrb[0].mxu0
        %v2592 = vpop.f32.mrb[0].mxu0
        %v2593 = vadd.f32 %v2324, %v2592
        %v2594 = vpop.f32.mrb[0].mxu0
        %2595 = vmatprep.mubr.bf16.mxu0 0
        %2596 = vmatmul.mubr.bf16.gmra.mrb[0].mxu0 %v2352
        %v2597 = vpop.f32.mrb[0].mxu0
        %v2598 = vadd.f32 %v2324, %v2597
        %v2599 = vpop.f32.mrb[0].mxu0
        %v2600 = vpop.f32.mrb[0].mxu0
        %v2601 = vadd.f32 %v2324, %v2600
        %v2602 = vpop.f32.mrb[0].mxu0
        %2603 = vmatprep.mubr.bf16.mxu0 0
        %2604 = vmatmul.mubr.bf16.gmra.mrb[0].mxu0 %v2355
        %v2605 = vpop.f32.mrb[0].mxu0
        %v2606 = vadd.f32 %v2324, %v2605
        %v2607 = vpop.f32.mrb[0].mxu0
        %v2608 = vpop.f32.mrb[0].mxu0
        %v2609 = vadd.f32 %v2324, %v2608
        %v2610 = vpop.f32.mrb[0].mxu0
        %2611 = vmatprep.mubr.bf16.mxu0 0
        %2612 = vmatmul.mubr.bf16.gmra.mrb[0].mxu0 %v2358
        %v2613 = vpop.f32.mrb[0].mxu0
        %v2614 = vadd.f32 %v2324, %v2613
        %v2615 = vpop.f32.mrb[0].mxu0
        %v2616 = vpop.f32.mrb[0].mxu0
        %v2617 = vadd.f32 %v2324, %v2616
        %v2618 = vpop.f32.mrb[0].mxu0
        %2619 = vmatprep.mubr.bf16.mxu0 0
        %2620 = vmatmul.mubr.bf16.gmra.mrb[0].mxu0 %v2361
        %v2621 = vpop.f32.mrb[0].mxu0
        %v2622 = vadd.f32 %v2324, %v2621
        %v2623 = vpop.f32.mrb[0].mxu0
        %v2624 = vpop.f32.mrb[0].mxu0
        %v2625 = vadd.f32 %v2324, %v2624
        %v2626 = vpop.f32.mrb[0].mxu0
        %2627 = vmatprep.mubr.bf16.mxu0 0
        %2628 = vmatmul.mubr.bf16.gmra.mrb[0].mxu0 %v2364
        %v2629 = vpop.f32.mrb[0].mxu0
        %v2630 = vadd.f32 %v2324, %v2629
        %v2631 = vpop.f32.mrb[0].mxu0
        %v2632 = vpop.f32.mrb[0].mxu0
        %v2633 = vadd.f32 %v2324, %v2632
        %v2634 = vpop.f32.mrb[0].mxu0
        %2635 = vmatprep.mubr.bf16.mxu0 0
        %2636 = vmatmul.mubr.bf16.gmra.mrb[0].mxu0 %v2367
        %v2637 = vpop.f32.mrb[0].mxu0
        %v2638 = vadd.f32 %v2324, %v2637
        %v2639 = vpop.f32.mrb[0].mxu0
        %v2640 = vpop.f32.mrb[0].mxu0
        %v2641 = vadd.f32 %v2324, %v2640
        %v2642 = vpop.f32.mrb[0].mxu0
        %2643 = vmatprep.mubr.bf16.mxu0 0
        %2644 = vmatmul.mubr.bf16.gmra.mrb[0].mxu0 %v2370
        %v2645 = vpop.f32.mrb[0].mxu0
        %v2646 = vadd.f32 %v2324, %v2645
        %v2647 = vpop.f32.mrb[0].mxu0
        %v2648 = vpop.f32.mrb[0].mxu0
        %v2649 = vadd.f32 %v2324, %v2648
        %v2650 = vpop.f32.mrb[0].mxu0
        %2651 = vmatprep.mubr.bf16.mxu0 0
        %2652 = vmatmul.mubr.bf16.gmra.mrb[0].mxu0 %v2373
        %v2653 = vpop.f32.mrb[0].mxu0
        %v2654 = vadd.f32 %v2324, %v2653
        %v2655 = vpop.f32.mrb[0].mxu0
        %v2656 = vpop.f32.mrb[0].mxu0
        %v2657 = vadd.f32 %v2324, %v2656
        %v2658 = vpop.f32.mrb[0].mxu0
        %2659 = vmatprep.mubr.bf16.mxu0 0
        %2660 = vmatmul.mubr.bf16.gmra.mrb[0].mxu0 %v2376
        %v2661 = vpop.f32.mrb[0].mxu0
        %v2662 = vadd.f32 %v2324, %v2661
        %v2663 = vpop.f32.mrb[0].mxu0
        %v2664 = vpop.f32.mrb[0].mxu0
        %v2665 = vadd.f32 %v2324, %v2664
        %v2666 = vpop.f32.mrb[0].mxu0
        %2667 = vmatprep.mubr.bf16.mxu0 0
        %2668 = vmatmul.mubr.bf16.gmra.mrb[0].mxu0 %v2379
        %v2669 = vpop.f32.mrb[0].mxu0
        %v2670 = vadd.f32 %v2324, %v2669
        %v2671 = vpop.f32.mrb[0].mxu0
        %v2672 = vpop.f32.mrb[0].mxu0
        %v2673 = vadd.f32 %v2324, %v2672
        %v2674 = vpop.f32.mrb[0].mxu0
        %2675 = vmatprep.mubr.bf16.mxu0 0
        %2676 = vmatmul.mubr.bf16.gmra.mrb[0].mxu0 %v2382
        %v2677 = vpop.f32.mrb[0].mxu0
        %v2678 = vadd.f32 %v2324, %v2677
        %v2679 = vpop.f32.mrb[0].mxu0
        %v2680 = vpop.f32.mrb[0].mxu0
        %v2681 = vadd.f32 %v2324, %v2680
        %v2682 = vpop.f32.mrb[0].mxu0
        %2683 = vmatprep.mubr.bf16.mxu0 0
        %2684 = vmatmul.mubr.bf16.gmra.mrb[0].mxu0 %v2385
        %v2685 = vpop.f32.mrb[0].mxu0
        %v2686 = vadd.f32 %v2324, %v2685
        %v2687 = vpop.f32.mrb[0].mxu0
        %v2688 = vpop.f32.mrb[0].mxu0
        %v2689 = vadd.f32 %v2324, %v2688
        %v2690 = vpop.f32.mrb[0].mxu0
        %2691 = vmatprep.mubr.bf16.mxu0 0
        %2692 = vmatmul.mubr.bf16.gmra.mrb[0].mxu0 %v2388
        %v2693 = vpop.f32.mrb[0].mxu0
        %v2694 = vadd.f32 %v2324, %v2693
        %v2695 = vpop.f32.mrb[0].mxu0
        %v2696 = vpop.f32.mrb[0].mxu0
        %v2697 = vadd.f32 %v2324, %v2696
        %v2698 = vpop.f32.mrb[0].mxu0
        %2699 = vmatprep.mubr.bf16.mxu0 0
        %2700 = vmatmul.mubr.bf16.gmra.mrb[0].mxu0 %v2391
        %v2701 = vpop.f32.mrb[0].mxu0
        %v2702 = vadd.f32 %v2324, %v2701
        %v2703 = vpop.f32.mrb[0].mxu0
        %v2704 = vpop.f32.mrb[0].mxu0
        %v2705 = vadd.f32 %v2324, %v2704
        %v2706 = vpop.f32.mrb[0].mxu0
        %2707 = vmatprep.mubr.bf16.mxu0 0
        %2708 = vmatmul.mubr.bf16.gmra.mrb[0].mxu0 %v2394
        %v2709 = vpop.f32.mrb[0].mxu0
        %v2710 = vadd.f32 %v2324, %v2709
        %v2711 = vpop.f32.mrb[0].mxu0
        %v2712 = vpop.f32.mrb[0].mxu0
        %v2713 = vadd.f32 %v2324, %v2712
        %v2714 = vpop.f32.mrb[0].mxu0
        %2715 = vmatprep.mubr.bf16.mxu0 0
        %2716 = vmatmul.mubr.bf16.gmra.mrb[0].mxu0 %v2397
        %v2717 = vpop.f32.mrb[0].mxu0
        %v2718 = vadd.f32 %v2324, %v2717
        %v2719 = vpop.f32.mrb[0].mxu0
        %v2720 = vpop.f32.mrb[0].mxu0
        %v2721 = vadd.f32 %v2324, %v2720
        %v2722 = vpop.f32.mrb[0].mxu0
        %2723 = vmatprep.mubr.bf16.mxu0 0
        %2724 = vmatmul.mubr.bf16.gmra.mrb[0].mxu0 %v2400
        %v2725 = vpop.f32.mrb[0].mxu0
        %v2726 = vadd.f32 %v2324, %v2725
        %v2727 = vpop.f32.mrb[0].mxu0
        %v2728 = vpop.f32.mrb[0].mxu0
        %v2729 = vadd.f32 %v2324, %v2728
        %v2730 = vpop.f32.mrb[0].mxu0
        %2731 = vmatprep.mubr.bf16.mxu0 0
        %2732 = vmatmul.mubr.bf16.gmra.mrb[0].mxu0 %v2403
        %v2733 = vpop.f32.mrb[0].mxu0
        %v2734 = vadd.f32 %v2324, %v2733
        %v2735 = vpop.f32.mrb[0].mxu0
        %v2736 = vpop.f32.mrb[0].mxu0
        %v2737 = vadd.f32 %v2324, %v2736
        %v2738 = vpop.f32.mrb[0].mxu0
        %2739 = vmatprep.mubr.bf16.mxu0 0
        %2740 = vmatmul.mubr.bf16.gmra.mrb[0].mxu0 %v2406
        %v2741 = vpop.f32.mrb[0].mxu0
        %v2742 = vadd.f32 %v2324, %v2741
        %v2743 = vpop.f32.mrb[0].mxu0
        %v2744 = vpop.f32.mrb[0].mxu0
        %v2745 = vadd.f32 %v2324, %v2744
        %v2746 = vpop.f32.mrb[0].mxu0
        %2747 = vmatprep.mubr.bf16.mxu0 0
        %2748 = vmatmul.mubr.bf16.gmra.mrb[0].mxu0 %v2409
        %v2749 = vpop.f32.mrb[0].mxu0
        %v2750 = vadd.f32 %v2324, %v2749
        %v2751 = vpop.f32.mrb[0].mxu0
        %v2752 = vpop.f32.mrb[0].mxu0
        %v2753 = vadd.f32 %v2324, %v2752
        %v2754 = vpop.f32.mrb[0].mxu0
        %2755 = vmatprep.mubr.bf16.mxu0 0
        %2756 = vmatmul.mubr.bf16.gmra.mrb[0].mxu0 %v2412
        %v2757 = vpop.f32.mrb[0].mxu0
        %v2758 = vadd.f32 %v2324, %v2757
        %v2759 = vpop.f32.mrb[0].mxu0
        %v2760 = vpop.f32.mrb[0].mxu0
        %v2761 = vadd.f32 %v2324, %v2760
        %v2762 = vpop.f32.mrb[0].mxu0
        %2763 = vmatprep.mubr.bf16.mxu0 0
        %2764 = vmatmul.mubr.bf16.gmra.mrb[0].mxu0 %v2415
        %v2765 = vpop.f32.mrb[0].mxu0
        %v2766 = vadd.f32 %v2324, %v2765
        %v2767 = vpop.f32.mrb[0].mxu0
        %v2768 = vpop.f32.mrb[0].mxu0
        %v2769 = vadd.f32 %v2324, %v2768
        %v2770 = vpop.f32.mrb[0].mxu0
        %2771 = vmatprep.mubr.bf16.mxu0 0
        %2772 = vmatmul.mubr.bf16.gmra.mrb[0].mxu0 %v2418
        %v2773 = vpop.f32.mrb[0].mxu0
        %v2774 = vadd.f32 %v2324, %v2773
        %v2775 = vpop.f32.mrb[0].mxu0
        %v2776 = vpop.f32.mrb[0].mxu0
        %v2777 = vadd.f32 %v2324, %v2776
        %v2778 = vpop.f32.mrb[0].mxu0
        %2779 = vmatprep.mubr.bf16.mxu0 0
        %2780 = vmatmul.mubr.bf16.gmra.mrb[0].mxu0 %v2421
        %v2781 = vpop.f32.mrb[0].mxu0
        %v2782 = vadd.f32 %v2324, %v2781
        %v2783 = vpop.f32.mrb[0].mxu0
        %v2784 = vpop.f32.mrb[0].mxu0
        %v2785 = vadd.f32 %v2324, %v2784
        %v2786 = vpop.f32.mrb[0].mxu0
        %2787 = vmatprep.mubr.bf16.mxu0 0
        %2788 = vmatmul.mubr.bf16.gmra.mrb[0].mxu0 %v2424
        %v2789 = vpop.f32.mrb[0].mxu0
        %v2790 = vadd.f32 %v2324, %v2789
        %v2791 = vpop.f32.mrb[0].mxu0
        %v2792 = vpop.f32.mrb[0].mxu0
        %v2793 = vadd.f32 %v2324, %v2792
        %v2794 = vpop.f32.mrb[0].mxu0
        %2795 = vmatprep.mubr.bf16.mxu0 0
        %2796 = vmatmul.mubr.bf16.gmra.mrb[0].mxu0 %v2427
        %v2797 = vpop.f32.mrb[0].mxu0
        %v2798 = vadd.f32 %v2324, %v2797
        %v2799 = vpop.f32.mrb[0].mxu0
        %v2800 = vpop.f32.mrb[0].mxu0
        %v2801 = vadd.f32 %v2324, %v2800
        %v2802 = vpop.f32.mrb[0].mxu0
        %2803 = vmatprep.mubr.bf16.mxu0 0
        %2804 = vmatmul.mubr.bf16.gmra.mrb[0].mxu0 %v2430
        %v2805 = vpop.f32.mrb[0].mxu0
        %v2806 = vadd.f32 %v2324, %v2805
        %v2807 = vpop.f32.mrb[0].mxu0
        %v2808 = vpop.f32.mrb[0].mxu0
        %v2809 = vadd.f32 %v2324, %v2808
        %v2810 = vpop.f32.mrb[0].mxu0
        %2811 = vmatprep.mubr.bf16.mxu0 0
        %2812 = vmatmul.mubr.bf16.gmra.mrb[0].mxu0 %v2433
        %v2813 = vpop.f32.mrb[0].mxu0
        %v2814 = vadd.f32 %v2324, %v2813
        %v2815 = vpop.f32.mrb[0].mxu0
        %v2816 = vpop.f32.mrb[0].mxu0
        %v2817 = vadd.f32 %v2324, %v2816
        %v2818 = vpop.f32.mrb[0].mxu0
        %2819 = vmatprep.mubr.bf16.mxu0 0
        %2820 = vmatmul.mubr.bf16.gmra.mrb[0].mxu0 %v2436
        %v2821 = vpop.f32.mrb[0].mxu0
        %v2822 = vadd.f32 %v2324, %v2821
        %v2823 = vpop.f32.mrb[0].mxu0
        %v2824 = vpop.f32.mrb[0].mxu0
        %v2825 = vadd.f32 %v2324, %v2824
        %v2826 = vpop.f32.mrb[0].mxu0
        %2827 = vmatprep.mubr.bf16.mxu0 0
        %2828 = vmatmul.mubr.bf16.gmra.mrb[0].mxu0 %v2439
        %v2829 = vpop.f32.mrb[0].mxu0
        %v2830 = vadd.f32 %v2324, %v2829
        %v2831 = vpop.f32.mrb[0].mxu0
        %v2832 = vpop.f32.mrb[0].mxu0
        %v2833 = vadd.f32 %v2324, %v2832
        %v2834 = vpop.f32.mrb[0].mxu0
        %2835 = vmatprep.mubr.bf16.mxu0 0
        %2836 = vmatmul.mubr.bf16.gmra.mrb[0].mxu0 %v2442
        %v2837 = vpop.f32.mrb[0].mxu0
        %v2838 = vadd.f32 %v2324, %v2837
        %v2839 = vpop.f32.mrb[0].mxu0
        %v2840 = vpop.f32.mrb[0].mxu0
        %v2841 = vadd.f32 %v2324, %v2840
        %v2842 = vpop.f32.mrb[0].mxu0
        %2843 = vmatprep.mubr.bf16.mxu0 0
        %2844 = vmatmul.mubr.bf16.gmra.mrb[0].mxu0 %v2445
        %v2845 = vpop.f32.mrb[0].mxu0
        %v2846 = vadd.f32 %v2324, %v2845
        %v2847 = vpop.f32.mrb[0].mxu0
        %v2848 = vpop.f32.mrb[0].mxu0
        %v2849 = vadd.f32 %v2324, %v2848
        %v2850 = vpop.f32.mrb[0].mxu0
        %2851 = vmatprep.mubr.bf16.mxu0 0
        %2852 = vmatmul.mubr.bf16.gmra.mrb[0].mxu0 %v2448
        %v2853 = vpop.f32.mrb[0].mxu0
        %v2854 = vadd.f32 %v2324, %v2853
        %v2855 = vpop.f32.mrb[0].mxu0
        %v2856 = vpop.f32.mrb[0].mxu0
        %v2857 = vadd.f32 %v2324, %v2856
        %v2858 = vpop.f32.mrb[0].mxu0
        %2859 = vmatprep.mubr.bf16.mxu0 0
        %2860 = vmatmul.mubr.bf16.gmra.mrb[0].mxu0 %v2451
        %v2861 = vpop.f32.mrb[0].mxu0
        %v2862 = vadd.f32 %v2324, %v2861
        %v2863 = vpop.f32.mrb[0].mxu0
        %v2864 = vpop.f32.mrb[0].mxu0
        %v2865 = vadd.f32 %v2324, %v2864
        %v2866 = vpop.f32.mrb[0].mxu0
        %2867 = vmatprep.mubr.bf16.mxu0 0
        %2868 = vmatmul.mubr.bf16.gmra.mrb[0].mxu0 %v2454
        %v2869 = vpop.f32.mrb[0].mxu0
        %v2870 = vadd.f32 %v2324, %v2869
        %v2871 = vpop.f32.mrb[0].mxu0
        %v2872 = vpop.f32.mrb[0].mxu0
        %v2873 = vadd.f32 %v2324, %v2872
        %v2874 = vpop.f32.mrb[0].mxu0
        %2875 = vmatprep.mubr.bf16.mxu0 0
        %2876 = vmatmul.mubr.bf16.gmra.mrb[0].mxu0 %v2457
        %v2877 = vpop.f32.mrb[0].mxu0
        %v2878 = vadd.f32 %v2324, %v2877
        %v2879 = vpop.f32.mrb[0].mxu0
        %v2880 = vpop.f32.mrb[0].mxu0
        %v2881 = vadd.f32 %v2324, %v2880
        %v2882 = vpop.f32.mrb[0].mxu0
        %2883 = vmatprep.mubr.bf16.mxu0 0
        %2884 = vmatmul.mubr.bf16.gmra.mrb[0].mxu0 %v2460
        %v2885 = vpop.f32.mrb[0].mxu0
        %v2886 = vadd.f32 %v2324, %v2885
        %v2887 = vpop.f32.mrb[0].mxu0
        %v2888 = vpop.f32.mrb[0].mxu0
        %v2889 = vadd.f32 %v2324, %v2888
        %v2890 = vpop.f32.mrb[0].mxu0
        %2891 = vmatprep.mubr.bf16.mxu0 0
        %2892 = vmatmul.mubr.bf16.gmra.mrb[0].mxu0 %v2463
        %v2893 = vpop.f32.mrb[0].mxu0
        %v2894 = vadd.f32 %v2324, %v2893
        %v2895 = vpop.f32.mrb[0].mxu0
        %v2896 = vpop.f32.mrb[0].mxu0
        %v2897 = vadd.f32 %v2324, %v2896
        %v2898 = vpop.f32.mrb[0].mxu0
        %2899 = vmatprep.mubr.bf16.mxu0 0
        %2900 = vmatmul.mubr.bf16.gmra.mrb[0].mxu0 %v2466
        %v2901 = vpop.f32.mrb[0].mxu0
        %v2902 = vadd.f32 %v2324, %v2901
        %v2903 = vpop.f32.mrb[0].mxu0
        %v2904 = vpop.f32.mrb[0].mxu0
        %v2905 = vadd.f32 %v2324, %v2904
        %v2906 = vpop.f32.mrb[0].mxu0
        %2907 = vmatprep.mubr.bf16.mxu0 0
        %2908 = vmatmul.mubr.bf16.gmra.mrb[0].mxu0 %v2469
        %v2909 = vpop.f32.mrb[0].mxu0
        %v2910 = vadd.f32 %v2324, %v2909
        %v2911 = vpop.f32.mrb[0].mxu0
        %v2912 = vpop.f32.mrb[0].mxu0
        %v2913 = vadd.f32 %v2324, %v2912
        %v2914 = vpop.f32.mrb[0].mxu0
        %2915 = vmatprep.mubr.bf16.mxu0 0
        %2916 = vmatmul.mubr.bf16.gmra.mrb[0].mxu0 %v2472
        %v2917 = vpop.f32.mrb[0].mxu0
        %v2918 = vadd.f32 %v2324, %v2917
        %v2919 = vpop.f32.mrb[0].mxu0
        %v2920 = vpop.f32.mrb[0].mxu0
        %v2921 = vadd.f32 %v2324, %v2920
        %v2922 = vpop.f32.mrb[0].mxu0
        %2923 = vmatprep.mubr.bf16.mxu0 0
        %2924 = vmatmul.mubr.bf16.gmra.mrb[0].mxu0 %v2475
        %v2925 = vpop.f32.mrb[0].mxu0
        %v2926 = vadd.f32 %v2324, %v2925
        %v2927 = vpop.f32.mrb[0].mxu0
        %v2928 = vpop.f32.mrb[0].mxu0
        %v2929 = vadd.f32 %v2324, %v2928
        %v2930 = vpop.f32.mrb[0].mxu0
        %2931 = vmatprep.mubr.bf16.mxu0 0
        %2932 = vmatmul.mubr.bf16.gmra.mrb[0].mxu0 %v2478
        %v2933 = vpop.f32.mrb[0].mxu0
        %v2934 = vadd.f32 %v2324, %v2933
        %v2935 = vpop.f32.mrb[0].mxu0
        %v2936 = vpop.f32.mrb[0].mxu0
        %v2937 = vadd.f32 %v2324, %v2936
        %v2938 = vpop.f32.mrb[0].mxu0
        %2939 = vmatprep.mubr.bf16.mxu0 0
        %2940 = vmatmul.mubr.bf16.gmra.mrb[0].mxu0 %v2481
        %v2941 = vpop.f32.mrb[0].mxu0
        %v2942 = vadd.f32 %v2324, %v2941
        %v2943 = vpop.f32.mrb[0].mxu0
        %v2944 = vpop.f32.mrb[0].mxu0
        %v2945 = vadd.f32 %v2324, %v2944
        %v2946 = vpop.f32.mrb[0].mxu0
        %2947 = vmatprep.mubr.bf16.mxu0 0
        %2948 = vmatmul.mubr.bf16.gmra.mrb[0].mxu0 %v2484
        %v2949 = vpop.f32.mrb[0].mxu0
        %v2950 = vadd.f32 %v2324, %v2949
        %v2951 = vpop.f32.mrb[0].mxu0
        %v2952 = vpop.f32.mrb[0].mxu0
        %v2953 = vadd.f32 %v2324, %v2952
        %v2954 = vpop.f32.mrb[0].mxu0
        %2955 = vmatprep.mubr.bf16.mxu0 0
        %2956 = vmatmul.mubr.bf16.gmra.mrb[0].mxu0 %v2487
        %v2957 = vpop.f32.mrb[0].mxu0
        %v2958 = vadd.f32 %v2324, %v2957
        %v2959 = vpop.f32.mrb[0].mxu0
        %v2960 = vpop.f32.mrb[0].mxu0
        %v2961 = vadd.f32 %v2324, %v2960
        %v2962 = vpop.f32.mrb[0].mxu0
        %2963 = vmatprep.mubr.bf16.mxu0 0
        %2964 = vmatmul.mubr.bf16.gmra.mrb[0].mxu0 %v2490
        %v2965 = vpop.f32.mrb[0].mxu0
        %v2966 = vadd.f32 %v2324, %v2965
        %v2967 = vpop.f32.mrb[0].mxu0
        %v2968 = vpop.f32.mrb[0].mxu0
        %v2969 = vadd.f32 %v2324, %v2968
        %v2970 = vpop.f32.mrb[0].mxu0
        %2971 = vmatprep.mubr.bf16.mxu0 0
        %2972 = vmatmul.mubr.bf16.gmra.mrb[0].mxu0 %v2493
        %v2973 = vpop.f32.mrb[0].mxu0
        %v2974 = vadd.f32 %v2324, %v2973
        %v2975 = vpop.f32.mrb[0].mxu0
        %v2976 = vpop.f32.mrb[0].mxu0
        %v2977 = vadd.f32 %v2324, %v2976
        %v2978 = vpop.f32.mrb[0].mxu0
        %2979 = vmatprep.mubr.bf16.mxu0 0
        %2980 = vmatmul.mubr.bf16.gmra.mrb[0].mxu0 %v2496
        %v2981 = vpop.f32.mrb[0].mxu0
        %v2982 = vadd.f32 %v2324, %v2981
        %v2983 = vpop.f32.mrb[0].mxu0
        %v2984 = vpop.f32.mrb[0].mxu0
        %v2985 = vadd.f32 %v2324, %v2984
        %v2986 = vpop.f32.mrb[0].mxu0
        %2987 = vmatprep.mubr.bf16.mxu0 0
        %2988 = vmatmul.mubr.bf16.gmra.mrb[0].mxu0 %v2499
        %v2989 = vpop.f32.mrb[0].mxu0
        %v2990 = vadd.f32 %v2324, %v2989
        %v2991 = vpop.f32.mrb[0].mxu0
        %v2992 = vpop.f32.mrb[0].mxu0
        %v2993 = vadd.f32 %v2324, %v2992
        %v2994 = vpop.f32.mrb[0].mxu0
        %2995 = vmatprep.mubr.bf16.mxu0 0
        %2996 = vmatmul.mubr.bf16.gmra.mrb[0].mxu0 %v2502
        %v2997 = vpop.f32.mrb[0].mxu0
        %v2998 = vadd.f32 %v2324, %v2997
        %v2999 = vpop.f32.mrb[0].mxu0
        %v3000 = vpop.f32.mrb[0].mxu0
        %v3001 = vadd.f32 %v2324, %v3000
        %v3002 = vpop.f32.mrb[0].mxu0
        %3003 = vmatprep.mubr.bf16.mxu0 0
        %3004 = vmatmul.mubr.bf16.gmra.mrb[0].mxu0 %v2505
        %v3005 = vpop.f32.mrb[0].mxu0
        %v3006 = vadd.f32 %v2324, %v3005
        %v3007 = vpop.f32.mrb[0].mxu0
        %v3008 = vpop.f32.mrb[0].mxu0
        %v3009 = vadd.f32 %v2324, %v3008
        %v3010 = vpop.f32.mrb[0].mxu0
        %3011 = vmatprep.mubr.bf16.mxu0 0
        %3012 = vmatmul.mubr.bf16.gmra.mrb[0].mxu0 %v2508
        %v3013 = vpop.f32.mrb[0].mxu0
        %v3014 = vadd.f32 %v2324, %v3013
        %v3015 = vpop.f32.mrb[0].mxu0
        %v3016 = vpop.f32.mrb[0].mxu0
        %v3017 = vadd.f32 %v2324, %v3016
        %v3018 = vpop.f32.mrb[0].mxu0
        %3019 = vmatprep.mubr.bf16.mxu0 0
        %3020 = vmatmul.mubr.bf16.gmra.mrb[0].mxu0 %v2511
        %v3021 = vpop.f32.mrb[0].mxu0
        %v3022 = vadd.f32 %v2324, %v3021
        %v3023 = vpop.f32.mrb[0].mxu0
        %v3024 = vpop.f32.mrb[0].mxu0
        %v3025 = vadd.f32 %v2324, %v3024
        %v3026 = vpop.f32.mrb[0].mxu0
        %3027 = vmatprep.mubr.bf16.mxu0 0
        %3028 = vmatmul.mubr.bf16.gmra.mrb[0].mxu0 %v2514
        %v3029 = vpop.f32.mrb[0].mxu0
        %v3030 = vadd.f32 %v2324, %v3029
        %v3031 = vpop.f32.mrb[0].mxu0
        %v3032 = vpop.f32.mrb[0].mxu0
        %v3033 = vadd.f32 %v2324, %v3032
        %v3034 = vpop.f32.mrb[0].mxu0
        %3035 = vmatprep.mubr.bf16.mxu0 0
        %3036 = vmatmul.mubr.bf16.gmra.mrb[0].mxu0 %v2517
        %v3037 = vpop.f32.mrb[0].mxu0
        %v3038 = vadd.f32 %v2324, %v3037
        %v3039 = vpop.f32.mrb[0].mxu0
        %v3040 = vpop.f32.mrb[0].mxu0
        %v3041 = vadd.f32 %v2324, %v3040
        %v3042 = vpop.f32.mrb[0].mxu0
        %3043 = vmatprep.mubr.bf16.mxu0 0
        %3044 = vmatmul.mubr.bf16.gmra.mrb[0].mxu0 %v2520
        %v3045 = vpop.f32.mrb[0].mxu0
        %v3046 = vadd.f32 %v2324, %v3045
        %v3047 = vpop.f32.mrb[0].mxu0
        %v3048 = vpop.f32.mrb[0].mxu0
        %v3049 = vadd.f32 %v2324, %v3048
        %v3050 = vpop.f32.mrb[0].mxu0
        %3051 = vmatprep.mubr.bf16.mxu0 0
        %3052 = vmatmul.mubr.bf16.gmra.mrb[0].mxu0 %v2523
        %v3053 = vpop.f32.mrb[0].mxu0
        %v3054 = vadd.f32 %v2324, %v3053
        %v3055 = vpop.f32.mrb[0].mxu0
        %v3056 = vpop.f32.mrb[0].mxu0
        %v3057 = vadd.f32 %v2324, %v3056
        %v3058 = vpop.f32.mrb[0].mxu0
        %3059 = vmatprep.mubr.bf16.mxu0 0
        %3060 = vmatmul.mubr.bf16.gmra.mrb[0].mxu0 %v2526
        %v3061 = vpop.f32.mrb[0].mxu0
        %v3062 = vadd.f32 %v2324, %v3061
        %v3063 = vpop.f32.mrb[0].mxu0
        %v3064 = vpop.f32.mrb[0].mxu0
        %v3065 = vadd.f32 %v2324, %v3064
        %v3066 = vpop.f32.mrb[0].mxu0
        %3067 = vmatprep.mubr.bf16.mxu0 0
        %3068 = vmatmul.mubr.bf16.gmra.mrb[0].mxu0 %v2529
        %v3069 = vpop.f32.mrb[0].mxu0
        %v3070 = vadd.f32 %v2324, %v3069
        %v3071 = vpop.f32.mrb[0].mxu0
        %v3072 = vpop.f32.mrb[0].mxu0
        %v3073 = vadd.f32 %v2324, %v3072
        %v3074 = vpop.f32.mrb[0].mxu0
        %3075 = vdwg.mxu0
        %v3076 = vsub.f32 0.0, %v2566
        %v3077 = vsub.f32 0.0, %v2569
        %v3078 = vsub.f32 0.0, %v2574
        %v3079 = vsub.f32 0.0, %v2577
        %v3080 = vsub.f32 0.0, %v2582
        %v3081 = vsub.f32 0.0, %v2585
        %v3082 = vsub.f32 0.0, %v2590
        %v3083 = vsub.f32 0.0, %v2593
        %v3084 = vsub.f32 0.0, %v2598
        %v3085 = vsub.f32 0.0, %v2601
        %v3086 = vsub.f32 0.0, %v2606
        %v3087 = vsub.f32 0.0, %v2609
        %v3088 = vsub.f32 0.0, %v2614
        %v3089 = vsub.f32 0.0, %v2617
        %v3090 = vsub.f32 0.0, %v2622
        %v3091 = vsub.f32 0.0, %v2625
        %v3092 = vsub.f32 0.0, %v2630
        %v3093 = vsub.f32 0.0, %v2633
        %v3094 = vsub.f32 0.0, %v2638
        %v3095 = vsub.f32 0.0, %v2641
        %v3096 = vsub.f32 0.0, %v2646
        %v3097 = vsub.f32 0.0, %v2649
        %v3098 = vsub.f32 0.0, %v2654
        %v3099 = vsub.f32 0.0, %v2657
        %v3100 = vsub.f32 0.0, %v2662
        %v3101 = vsub.f32 0.0, %v2665
        %v3102 = vsub.f32 0.0, %v2670
        %v3103 = vsub.f32 0.0, %v2673
        %v3104 = vsub.f32 0.0, %v2678
        %v3105 = vsub.f32 0.0, %v2681
        %v3106 = vsub.f32 0.0, %v2686
        %v3107 = vsub.f32 0.0, %v2689
        %v3108 = vsub.f32 0.0, %v2694
        %v3109 = vsub.f32 0.0, %v2697
        %v3110 = vsub.f32 0.0, %v2702
        %v3111 = vsub.f32 0.0, %v2705
        %v3112 = vsub.f32 0.0, %v2710
        %v3113 = vsub.f32 0.0, %v2713
        %v3114 = vsub.f32 0.0, %v2718
        %v3115 = vsub.f32 0.0, %v2721
        %v3116 = vsub.f32 0.0, %v2726
        %v3117 = vsub.f32 0.0, %v2729
        %v3118 = vsub.f32 0.0, %v2734
        %v3119 = vsub.f32 0.0, %v2737
        %v3120 = vsub.f32 0.0, %v2742
        %v3121 = vsub.f32 0.0, %v2745
        %v3122 = vsub.f32 0.0, %v2750
        %v3123 = vsub.f32 0.0, %v2753
        %v3124 = vsub.f32 0.0, %v2758
        %v3125 = vsub.f32 0.0, %v2761
        %v3126 = vsub.f32 0.0, %v2766
        %v3127 = vsub.f32 0.0, %v2769
        %v3128 = vsub.f32 0.0, %v2774
        %v3129 = vsub.f32 0.0, %v2777
        %v3130 = vsub.f32 0.0, %v2782
        %v3131 = vsub.f32 0.0, %v2785
        %v3132 = vsub.f32 0.0, %v2790
        %v3133 = vsub.f32 0.0, %v2793
        %v3134 = vsub.f32 0.0, %v2798
        %v3135 = vsub.f32 0.0, %v2801
        %v3136 = vsub.f32 0.0, %v2806
        %v3137 = vsub.f32 0.0, %v2809
        %v3138 = vsub.f32 0.0, %v2814
        %v3139 = vsub.f32 0.0, %v2817
        %v3140 = vsub.f32 0.0, %v2822
        %v3141 = vsub.f32 0.0, %v2825
        %v3142 = vsub.f32 0.0, %v2830
        %v3143 = vsub.f32 0.0, %v2833
        %v3144 = vsub.f32 0.0, %v2838
        %v3145 = vsub.f32 0.0, %v2841
        %v3146 = vsub.f32 0.0, %v2846
        %v3147 = vsub.f32 0.0, %v2849
        %v3148 = vsub.f32 0.0, %v2854
        %v3149 = vsub.f32 0.0, %v2857
        %v3150 = vsub.f32 0.0, %v2862
        %v3151 = vsub.f32 0.0, %v2865
        %v3152 = vsub.f32 0.0, %v2870
        %v3153 = vsub.f32 0.0, %v2873
        %v3154 = vsub.f32 0.0, %v2878
        %v3155 = vsub.f32 0.0, %v2881
        %v3156 = vsub.f32 0.0, %v2886
        %v3157 = vsub.f32 0.0, %v2889
        %v3158 = vsub.f32 0.0, %v2894
        %v3159 = vsub.f32 0.0, %v2897
        %v3160 = vsub.f32 0.0, %v2902
        %v3161 = vsub.f32 0.0, %v2905
        %v3162 = vsub.f32 0.0, %v2910
        %v3163 = vsub.f32 0.0, %v2913
        %v3164 = vsub.f32 0.0, %v2918
        %v3165 = vsub.f32 0.0, %v2921
        %v3166 = vsub.f32 0.0, %v2926
        %v3167 = vsub.f32 0.0, %v2929
        %v3168 = vsub.f32 0.0, %v2934
        %v3169 = vsub.f32 0.0, %v2937
        %v3170 = vsub.f32 0.0, %v2942
        %v3171 = vsub.f32 0.0, %v2945
        %v3172 = vsub.f32 0.0, %v2950
        %v3173 = vsub.f32 0.0, %v2953
        %v3174 = vsub.f32 0.0, %v2958
        %v3175 = vsub.f32 0.0, %v2961
        %v3176 = vsub.f32 0.0, %v2966
        %v3177 = vsub.f32 0.0, %v2969
        %v3178 = vsub.f32 0.0, %v2974
        %v3179 = vsub.f32 0.0, %v2977
        %v3180 = vsub.f32 0.0, %v2982
        %v3181 = vsub.f32 0.0, %v2985
        %v3182 = vsub.f32 0.0, %v2990
        %v3183 = vsub.f32 0.0, %v2993
        %v3184 = vsub.f32 0.0, %v2998
        %v3185 = vsub.f32 0.0, %v3001
        %v3186 = vsub.f32 0.0, %v3006
        %v3187 = vsub.f32 0.0, %v3009
        %v3188 = vsub.f32 0.0, %v3014
        %v3189 = vsub.f32 0.0, %v3017
        %v3190 = vsub.f32 0.0, %v3022
        %v3191 = vsub.f32 0.0, %v3025
        %v3192 = vsub.f32 0.0, %v3030
        %v3193 = vsub.f32 0.0, %v3033
        %v3194 = vsub.f32 0.0, %v3038
        %v3195 = vsub.f32 0.0, %v3041
        %v3196 = vsub.f32 0.0, %v3046
        %v3197 = vsub.f32 0.0, %v3049
        %v3198 = vsub.f32 0.0, %v3054
        %v3199 = vsub.f32 0.0, %v3057
        %v3200 = vsub.f32 0.0, %v3062
        %v3201 = vsub.f32 0.0, %v3065
        %v3202 = vsub.f32 0.0, %v3070
        %v3203 = vsub.f32 0.0, %v3073
        %v3204 = vmul.f32 %v3076, 1.442695
        %v3205 = vpow.pop %v3204
        %v3206 = vmul.f32 %v3077, 1.442695
        %v3207 = vpow.pop %v3206
        %v3208 = vmul.f32 %v3078, 1.442695
        %v3209 = vpow.pop %v3208
        %v3210 = vmul.f32 %v3079, 1.442695
        %v3211 = vpow.pop %v3210
        %v3212 = vmul.f32 %v3080, 1.442695
        %v3213 = vpow.pop %v3212
        %v3214 = vmul.f32 %v3081, 1.442695
        %v3215 = vpow.pop %v3214
        %v3216 = vmul.f32 %v3082, 1.442695
        %v3217 = vpow.pop %v3216
        %v3218 = vmul.f32 %v3083, 1.442695
        %v3219 = vpow.pop %v3218
        %v3220 = vmul.f32 %v3084, 1.442695
        %v3221 = vpow.pop %v3220
        %v3222 = vmul.f32 %v3085, 1.442695
        %v3223 = vpow.pop %v3222
        %v3224 = vmul.f32 %v3086, 1.442695
        %v3225 = vpow.pop %v3224
        %v3226 = vmul.f32 %v3087, 1.442695
        %v3227 = vpow.pop %v3226
        %v3228 = vmul.f32 %v3088, 1.442695
        %v3229 = vpow.pop %v3228
        %v3230 = vmul.f32 %v3089, 1.442695
        %v3231 = vpow.pop %v3230
        %v3232 = vmul.f32 %v3090, 1.442695
        %v3233 = vpow.pop %v3232
        %v3234 = vmul.f32 %v3091, 1.442695
        %v3235 = vpow.pop %v3234
        %v3236 = vmul.f32 %v3092, 1.442695
        %v3237 = vpow.pop %v3236
        %v3238 = vmul.f32 %v3093, 1.442695
        %v3239 = vpow.pop %v3238
        %v3240 = vmul.f32 %v3094, 1.442695
        %v3241 = vpow.pop %v3240
        %v3242 = vmul.f32 %v3095, 1.442695
        %v3243 = vpow.pop %v3242
        %v3244 = vmul.f32 %v3096, 1.442695
        %v3245 = vpow.pop %v3244
        %v3246 = vmul.f32 %v3097, 1.442695
        %v3247 = vpow.pop %v3246
        %v3248 = vmul.f32 %v3098, 1.442695
        %v3249 = vpow.pop %v3248
        %v3250 = vmul.f32 %v3099, 1.442695
        %v3251 = vpow.pop %v3250
        %v3252 = vmul.f32 %v3100, 1.442695
        %v3253 = vpow.pop %v3252
        %v3254 = vmul.f32 %v3101, 1.442695
        %v3255 = vpow.pop %v3254
        %v3256 = vmul.f32 %v3102, 1.442695
        %v3257 = vpow.pop %v3256
        %v3258 = vmul.f32 %v3103, 1.442695
        %v3259 = vpow.pop %v3258
        %v3260 = vmul.f32 %v3104, 1.442695
        %v3261 = vpow.pop %v3260
        %v3262 = vmul.f32 %v3105, 1.442695
        %v3263 = vpow.pop %v3262
        %v3264 = vmul.f32 %v3106, 1.442695
        %v3265 = vpow.pop %v3264
        %v3266 = vmul.f32 %v3107, 1.442695
        %v3267 = vpow.pop %v3266
        %v3268 = vmul.f32 %v3108, 1.442695
        %v3269 = vpow.pop %v3268
        %v3270 = vmul.f32 %v3109, 1.442695
        %v3271 = vpow.pop %v3270
        %v3272 = vmul.f32 %v3110, 1.442695
        %v3273 = vpow.pop %v3272
        %v3274 = vmul.f32 %v3111, 1.442695
        %v3275 = vpow.pop %v3274
        %v3276 = vmul.f32 %v3112, 1.442695
        %v3277 = vpow.pop %v3276
        %v3278 = vmul.f32 %v3113, 1.442695
        %v3279 = vpow.pop %v3278
        %v3280 = vmul.f32 %v3114, 1.442695
        %v3281 = vpow.pop %v3280
        %v3282 = vmul.f32 %v3115, 1.442695
        %v3283 = vpow.pop %v3282
        %v3284 = vmul.f32 %v3116, 1.442695
        %v3285 = vpow.pop %v3284
        %v3286 = vmul.f32 %v3117, 1.442695
        %v3287 = vpow.pop %v3286
        %v3288 = vmul.f32 %v3118, 1.442695
        %v3289 = vpow.pop %v3288
        %v3290 = vmul.f32 %v3119, 1.442695
        %v3291 = vpow.pop %v3290
        %v3292 = vmul.f32 %v3120, 1.442695
        %v3293 = vpow.pop %v3292
        %v3294 = vmul.f32 %v3121, 1.442695
        %v3295 = vpow.pop %v3294
        %v3296 = vmul.f32 %v3122, 1.442695
        %v3297 = vpow.pop %v3296
        %v3298 = vmul.f32 %v3123, 1.442695
        %v3299 = vpow.pop %v3298
        %v3300 = vmul.f32 %v3124, 1.442695
        %v3301 = vpow.pop %v3300
        %v3302 = vmul.f32 %v3125, 1.442695
        %v3303 = vpow.pop %v3302
        %v3304 = vmul.f32 %v3126, 1.442695
        %v3305 = vpow.pop %v3304
        %v3306 = vmul.f32 %v3127, 1.442695
        %v3307 = vpow.pop %v3306
        %v3308 = vmul.f32 %v3128, 1.442695
        %v3309 = vpow.pop %v3308
        %v3310 = vmul.f32 %v3129, 1.442695
        %v3311 = vpow.pop %v3310
        %v3312 = vmul.f32 %v3130, 1.442695
        %v3313 = vpow.pop %v3312
        %v3314 = vmul.f32 %v3131, 1.442695
        %v3315 = vpow.pop %v3314
        %v3316 = vmul.f32 %v3132, 1.442695
        %v3317 = vpow.pop %v3316
        %v3318 = vmul.f32 %v3133, 1.442695
        %v3319 = vpow.pop %v3318
        %v3320 = vmul.f32 %v3134, 1.442695
        %v3321 = vpow.pop %v3320
        %v3322 = vmul.f32 %v3135, 1.442695
        %v3323 = vpow.pop %v3322
        %v3324 = vmul.f32 %v3136, 1.442695
        %v3325 = vpow.pop %v3324
        %v3326 = vmul.f32 %v3137, 1.442695
        %v3327 = vpow.pop %v3326
        %v3328 = vmul.f32 %v3138, 1.442695
        %v3329 = vpow.pop %v3328
        %v3330 = vmul.f32 %v3139, 1.442695
        %v3331 = vpow.pop %v3330
        %v3332 = vmul.f32 %v3140, 1.442695
        %v3333 = vpow.pop %v3332
        %v3334 = vmul.f32 %v3141, 1.442695
        %v3335 = vpow.pop %v3334
        %v3336 = vmul.f32 %v3142, 1.442695
        %v3337 = vpow.pop %v3336
        %v3338 = vmul.f32 %v3143, 1.442695
        %v3339 = vpow.pop %v3338
        %v3340 = vmul.f32 %v3144, 1.442695
        %v3341 = vpow.pop %v3340
        %v3342 = vmul.f32 %v3145, 1.442695
        %v3343 = vpow.pop %v3342
        %v3344 = vmul.f32 %v3146, 1.442695
        %v3345 = vpow.pop %v3344
        %v3346 = vmul.f32 %v3147, 1.442695
        %v3347 = vpow.pop %v3346
        %v3348 = vmul.f32 %v3148, 1.442695
        %v3349 = vpow.pop %v3348
        %v3350 = vmul.f32 %v3149, 1.442695
        %v3351 = vpow.pop %v3350
        %v3352 = vmul.f32 %v3150, 1.442695
        %v3353 = vpow.pop %v3352
        %v3354 = vmul.f32 %v3151, 1.442695
        %v3355 = vpow.pop %v3354
        %v3356 = vmul.f32 %v3152, 1.442695
        %v3357 = vpow.pop %v3356
        %v3358 = vmul.f32 %v3153, 1.442695
        %v3359 = vpow.pop %v3358
        %v3360 = vmul.f32 %v3154, 1.442695
        %v3361 = vpow.pop %v3360
        %v3362 = vmul.f32 %v3155, 1.442695
        %v3363 = vpow.pop %v3362
        %v3364 = vmul.f32 %v3156, 1.442695
        %v3365 = vpow.pop %v3364
        %v3366 = vmul.f32 %v3157, 1.442695
        %v3367 = vpow.pop %v3366
        %v3368 = vmul.f32 %v3158, 1.442695
        %v3369 = vpow.pop %v3368
        %v3370 = vmul.f32 %v3159, 1.442695
        %v3371 = vpow.pop %v3370
        %v3372 = vmul.f32 %v3160, 1.442695
        %v3373 = vpow.pop %v3372
        %v3374 = vmul.f32 %v3161, 1.442695
        %v3375 = vpow.pop %v3374
        %v3376 = vmul.f32 %v3162, 1.442695
        %v3377 = vpow.pop %v3376
        %v3378 = vmul.f32 %v3163, 1.442695
        %v3379 = vpow.pop %v3378
        %v3380 = vmul.f32 %v3164, 1.442695
        %v3381 = vpow.pop %v3380
        %v3382 = vmul.f32 %v3165, 1.442695
        %v3383 = vpow.pop %v3382
        %v3384 = vmul.f32 %v3166, 1.442695
        %v3385 = vpow.pop %v3384
        %v3386 = vmul.f32 %v3167, 1.442695
        %v3387 = vpow.pop %v3386
        %v3388 = vmul.f32 %v3168, 1.442695
        %v3389 = vpow.pop %v3388
        %v3390 = vmul.f32 %v3169, 1.442695
        %v3391 = vpow.pop %v3390
        %v3392 = vmul.f32 %v3170, 1.442695
        %v3393 = vpow.pop %v3392
        %v3394 = vmul.f32 %v3171, 1.442695
        %v3395 = vpow.pop %v3394
        %v3396 = vmul.f32 %v3172, 1.442695
        %v3397 = vpow.pop %v3396
        %v3398 = vmul.f32 %v3173, 1.442695
        %v3399 = vpow.pop %v3398
        %v3400 = vmul.f32 %v3174, 1.442695
        %v3401 = vpow.pop %v3400
        %v3402 = vmul.f32 %v3175, 1.442695
        %v3403 = vpow.pop %v3402
        %v3404 = vmul.f32 %v3176, 1.442695
        %v3405 = vpow.pop %v3404
        %v3406 = vmul.f32 %v3177, 1.442695
        %v3407 = vpow.pop %v3406
        %v3408 = vmul.f32 %v3178, 1.442695
        %v3409 = vpow.pop %v3408
        %v3410 = vmul.f32 %v3179, 1.442695
        %v3411 = vpow.pop %v3410
        %v3412 = vmul.f32 %v3180, 1.442695
        %v3413 = vpow.pop %v3412
        %v3414 = vmul.f32 %v3181, 1.442695
        %v3415 = vpow.pop %v3414
        %v3416 = vmul.f32 %v3182, 1.442695
        %v3417 = vpow.pop %v3416
        %v3418 = vmul.f32 %v3183, 1.442695
        %v3419 = vpow.pop %v3418
        %v3420 = vmul.f32 %v3184, 1.442695
        %v3421 = vpow.pop %v3420
        %v3422 = vmul.f32 %v3185, 1.442695
        %v3423 = vpow.pop %v3422
        %v3424 = vmul.f32 %v3186, 1.442695
        %v3425 = vpow.pop %v3424
        %v3426 = vmul.f32 %v3187, 1.442695
        %v3427 = vpow.pop %v3426
        %v3428 = vmul.f32 %v3188, 1.442695
        %v3429 = vpow.pop %v3428
        %v3430 = vmul.f32 %v3189, 1.442695
        %v3431 = vpow.pop %v3430
        %v3432 = vmul.f32 %v3190, 1.442695
        %v3433 = vpow.pop %v3432
        %v3434 = vmul.f32 %v3191, 1.442695
        %v3435 = vpow.pop %v3434
        %v3436 = vmul.f32 %v3192, 1.442695
        %v3437 = vpow.pop %v3436
        %v3438 = vmul.f32 %v3193, 1.442695
        %v3439 = vpow.pop %v3438
        %v3440 = vmul.f32 %v3194, 1.442695
        %v3441 = vpow.pop %v3440
        %v3442 = vmul.f32 %v3195, 1.442695
        %v3443 = vpow.pop %v3442
        %v3444 = vmul.f32 %v3196, 1.442695
        %v3445 = vpow.pop %v3444
        %v3446 = vmul.f32 %v3197, 1.442695
        %v3447 = vpow.pop %v3446
        %v3448 = vmul.f32 %v3198, 1.442695
        %v3449 = vpow.pop %v3448
        %v3450 = vmul.f32 %v3199, 1.442695
        %v3451 = vpow.pop %v3450
        %v3452 = vmul.f32 %v3200, 1.442695
        %v3453 = vpow.pop %v3452
        %v3454 = vmul.f32 %v3201, 1.442695
        %v3455 = vpow.pop %v3454
        %v3456 = vmul.f32 %v3202, 1.442695
        %v3457 = vpow.pop %v3456
        %v3458 = vmul.f32 %v3203, 1.442695
        %v3459 = vpow.pop %v3458
        %v3460 = vadd.f32 %v3205, 1.0
        %v3461 = vadd.f32 %v3207, 1.0
        %v3462 = vadd.f32 %v3209, 1.0
        %v3463 = vadd.f32 %v3211, 1.0
        %v3464 = vadd.f32 %v3213, 1.0
        %v3465 = vadd.f32 %v3215, 1.0
        %v3466 = vadd.f32 %v3217, 1.0
        %v3467 = vadd.f32 %v3219, 1.0
        %v3468 = vadd.f32 %v3221, 1.0
        %v3469 = vadd.f32 %v3223, 1.0
        %v3470 = vadd.f32 %v3225, 1.0
        %v3471 = vadd.f32 %v3227, 1.0
        %v3472 = vadd.f32 %v3229, 1.0
        %v3473 = vadd.f32 %v3231, 1.0
        %v3474 = vadd.f32 %v3233, 1.0
        %v3475 = vadd.f32 %v3235, 1.0
        %v3476 = vadd.f32 %v3237, 1.0
        %v3477 = vadd.f32 %v3239, 1.0
        %v3478 = vadd.f32 %v3241, 1.0
        %v3479 = vadd.f32 %v3243, 1.0
        %v3480 = vadd.f32 %v3245, 1.0
        %v3481 = vadd.f32 %v3247, 1.0
        %v3482 = vadd.f32 %v3249, 1.0
        %v3483 = vadd.f32 %v3251, 1.0
        %v3484 = vadd.f32 %v3253, 1.0
        %v3485 = vadd.f32 %v3255, 1.0
        %v3486 = vadd.f32 %v3257, 1.0
        %v3487 = vadd.f32 %v3259, 1.0
        %v3488 = vadd.f32 %v3261, 1.0
        %v3489 = vadd.f32 %v3263, 1.0
        %v3490 = vadd.f32 %v3265, 1.0
        %v3491 = vadd.f32 %v3267, 1.0
        %v3492 = vadd.f32 %v3269, 1.0
        %v3493 = vadd.f32 %v3271, 1.0
        %v3494 = vadd.f32 %v3273, 1.0
        %v3495 = vadd.f32 %v3275, 1.0
        %v3496 = vadd.f32 %v3277, 1.0
        %v3497 = vadd.f32 %v3279, 1.0
        %v3498 = vadd.f32 %v3281, 1.0
        %v3499 = vadd.f32 %v3283, 1.0
        %v3500 = vadd.f32 %v3285, 1.0
        %v3501 = vadd.f32 %v3287, 1.0
        %v3502 = vadd.f32 %v3289, 1.0
        %v3503 = vadd.f32 %v3291, 1.0
        %v3504 = vadd.f32 %v3293, 1.0
        %v3505 = vadd.f32 %v3295, 1.0
        %v3506 = vadd.f32 %v3297, 1.0
        %v3507 = vadd.f32 %v3299, 1.0
        %v3508 = vadd.f32 %v3301, 1.0
        %v3509 = vadd.f32 %v3303, 1.0
        %v3510 = vadd.f32 %v3305, 1.0
        %v3511 = vadd.f32 %v3307, 1.0
        %v3512 = vadd.f32 %v3309, 1.0
        %v3513 = vadd.f32 %v3311, 1.0
        %v3514 = vadd.f32 %v3313, 1.0
        %v3515 = vadd.f32 %v3315, 1.0
        %v3516 = vadd.f32 %v3317, 1.0
        %v3517 = vadd.f32 %v3319, 1.0
        %v3518 = vadd.f32 %v3321, 1.0
        %v3519 = vadd.f32 %v3323, 1.0
        %v3520 = vadd.f32 %v3325, 1.0
        %v3521 = vadd.f32 %v3327, 1.0
        %v3522 = vadd.f32 %v3329, 1.0
        %v3523 = vadd.f32 %v3331, 1.0
        %v3524 = vadd.f32 %v3333, 1.0
        %v3525 = vadd.f32 %v3335, 1.0
        %v3526 = vadd.f32 %v3337, 1.0
        %v3527 = vadd.f32 %v3339, 1.0
        %v3528 = vadd.f32 %v3341, 1.0
        %v3529 = vadd.f32 %v3343, 1.0
        %v3530 = vadd.f32 %v3345, 1.0
        %v3531 = vadd.f32 %v3347, 1.0
        %v3532 = vadd.f32 %v3349, 1.0
        %v3533 = vadd.f32 %v3351, 1.0
        %v3534 = vadd.f32 %v3353, 1.0
        %v3535 = vadd.f32 %v3355, 1.0
        %v3536 = vadd.f32 %v3357, 1.0
        %v3537 = vadd.f32 %v3359, 1.0
        %v3538 = vadd.f32 %v3361, 1.0
        %v3539 = vadd.f32 %v3363, 1.0
        %v3540 = vadd.f32 %v3365, 1.0
        %v3541 = vadd.f32 %v3367, 1.0
        %v3542 = vadd.f32 %v3369, 1.0
        %v3543 = vadd.f32 %v3371, 1.0
        %v3544 = vadd.f32 %v3373, 1.0
        %v3545 = vadd.f32 %v3375, 1.0
        %v3546 = vadd.f32 %v3377, 1.0
        %v3547 = vadd.f32 %v3379, 1.0
        %v3548 = vadd.f32 %v3381, 1.0
        %v3549 = vadd.f32 %v3383, 1.0
        %v3550 = vadd.f32 %v3385, 1.0
        %v3551 = vadd.f32 %v3387, 1.0
        %v3552 = vadd.f32 %v3389, 1.0
        %v3553 = vadd.f32 %v3391, 1.0
        %v3554 = vadd.f32 %v3393, 1.0
        %v3555 = vadd.f32 %v3395, 1.0
        %v3556 = vadd.f32 %v3397, 1.0
        %v3557 = vadd.f32 %v3399, 1.0
        %v3558 = vadd.f32 %v3401, 1.0
        %v3559 = vadd.f32 %v3403, 1.0
        %v3560 = vadd.f32 %v3405, 1.0
        %v3561 = vadd.f32 %v3407, 1.0
        %v3562 = vadd.f32 %v3409, 1.0
        %v3563 = vadd.f32 %v3411, 1.0
        %v3564 = vadd.f32 %v3413, 1.0
        %v3565 = vadd.f32 %v3415, 1.0
        %v3566 = vadd.f32 %v3417, 1.0
        %v3567 = vadd.f32 %v3419, 1.0
        %v3568 = vadd.f32 %v3421, 1.0
        %v3569 = vadd.f32 %v3423, 1.0
        %v3570 = vadd.f32 %v3425, 1.0
        %v3571 = vadd.f32 %v3427, 1.0
        %v3572 = vadd.f32 %v3429, 1.0
        %v3573 = vadd.f32 %v3431, 1.0
        %v3574 = vadd.f32 %v3433, 1.0
        %v3575 = vadd.f32 %v3435, 1.0
        %v3576 = vadd.f32 %v3437, 1.0
        %v3577 = vadd.f32 %v3439, 1.0
        %v3578 = vadd.f32 %v3441, 1.0
        %v3579 = vadd.f32 %v3443, 1.0
        %v3580 = vadd.f32 %v3445, 1.0
        %v3581 = vadd.f32 %v3447, 1.0
        %v3582 = vadd.f32 %v3449, 1.0
        %v3583 = vadd.f32 %v3451, 1.0
        %v3584 = vadd.f32 %v3453, 1.0
        %v3585 = vadd.f32 %v3455, 1.0
        %v3586 = vadd.f32 %v3457, 1.0
        %v3587 = vadd.f32 %v3459, 1.0
        %v3588 = vrcp.pop %v3460
        %v3589 = vrcp.pop %v3461
        %v3590 = vrcp.pop %v3462
        %v3591 = vrcp.pop %v3463
        %v3592 = vrcp.pop %v3464
        %v3593 = vrcp.pop %v3465
        %v3594 = vrcp.pop %v3466
        %v3595 = vrcp.pop %v3467
        %v3596 = vrcp.pop %v3468
        %v3597 = vrcp.pop %v3469
        %v3598 = vrcp.pop %v3470
        %v3599 = vrcp.pop %v3471
        %v3600 = vrcp.pop %v3472
        %v3601 = vrcp.pop %v3473
        %v3602 = vrcp.pop %v3474
        %v3603 = vrcp.pop %v3475
        %v3604 = vrcp.pop %v3476
        %v3605 = vrcp.pop %v3477
        %v3606 = vrcp.pop %v3478
        %v3607 = vrcp.pop %v3479
        %v3608 = vrcp.pop %v3480
        %v3609 = vrcp.pop %v3481
        %v3610 = vrcp.pop %v3482
        %v3611 = vrcp.pop %v3483
        %v3612 = vrcp.pop %v3484
        %v3613 = vrcp.pop %v3485
        %v3614 = vrcp.pop %v3486
        %v3615 = vrcp.pop %v3487
        %v3616 = vrcp.pop %v3488
        %v3617 = vrcp.pop %v3489
        %v3618 = vrcp.pop %v3490
        %v3619 = vrcp.pop %v3491
        %v3620 = vrcp.pop %v3492
        %v3621 = vrcp.pop %v3493
        %v3622 = vrcp.pop %v3494
        %v3623 = vrcp.pop %v3495
        %v3624 = vrcp.pop %v3496
        %v3625 = vrcp.pop %v3497
        %v3626 = vrcp.pop %v3498
        %v3627 = vrcp.pop %v3499
        %v3628 = vrcp.pop %v3500
        %v3629 = vrcp.pop %v3501
        %v3630 = vrcp.pop %v3502
        %v3631 = vrcp.pop %v3503
        %v3632 = vrcp.pop %v3504
        %v3633 = vrcp.pop %v3505
        %v3634 = vrcp.pop %v3506
        %v3635 = vrcp.pop %v3507
        %v3636 = vrcp.pop %v3508
        %v3637 = vrcp.pop %v3509
        %v3638 = vrcp.pop %v3510
        %v3639 = vrcp.pop %v3511
        %v3640 = vrcp.pop %v3512
        %v3641 = vrcp.pop %v3513
        %v3642 = vrcp.pop %v3514
        %v3643 = vrcp.pop %v3515
        %v3644 = vrcp.pop %v3516
        %v3645 = vrcp.pop %v3517
        %v3646 = vrcp.pop %v3518
        %v3647 = vrcp.pop %v3519
        %v3648 = vrcp.pop %v3520
        %v3649 = vrcp.pop %v3521
        %v3650 = vrcp.pop %v3522
        %v3651 = vrcp.pop %v3523
        %v3652 = vrcp.pop %v3524
        %v3653 = vrcp.pop %v3525
        %v3654 = vrcp.pop %v3526
        %v3655 = vrcp.pop %v3527
        %v3656 = vrcp.pop %v3528
        %v3657 = vrcp.pop %v3529
        %v3658 = vrcp.pop %v3530
        %v3659 = vrcp.pop %v3531
        %v3660 = vrcp.pop %v3532
        %v3661 = vrcp.pop %v3533
        %v3662 = vrcp.pop %v3534
        %v3663 = vrcp.pop %v3535
        %v3664 = vrcp.pop %v3536
        %v3665 = vrcp.pop %v3537
        %v3666 = vrcp.pop %v3538
        %v3667 = vrcp.pop %v3539
        %v3668 = vrcp.pop %v3540
        %v3669 = vrcp.pop %v3541
        %v3670 = vrcp.pop %v3542
        %v3671 = vrcp.pop %v3543
        %v3672 = vrcp.pop %v3544
        %v3673 = vrcp.pop %v3545
        %v3674 = vrcp.pop %v3546
        %v3675 = vrcp.pop %v3547
        %v3676 = vrcp.pop %v3548
        %v3677 = vrcp.pop %v3549
        %v3678 = vrcp.pop %v3550
        %v3679 = vrcp.pop %v3551
        %v3680 = vrcp.pop %v3552
        %v3681 = vrcp.pop %v3553
        %v3682 = vrcp.pop %v3554
        %v3683 = vrcp.pop %v3555
        %v3684 = vrcp.pop %v3556
        %v3685 = vrcp.pop %v3557
        %v3686 = vrcp.pop %v3558
        %v3687 = vrcp.pop %v3559
        %v3688 = vrcp.pop %v3560
        %v3689 = vrcp.pop %v3561
        %v3690 = vrcp.pop %v3562
        %v3691 = vrcp.pop %v3563
        %v3692 = vrcp.pop %v3564
        %v3693 = vrcp.pop %v3565
        %v3694 = vrcp.pop %v3566
        %v3695 = vrcp.pop %v3567
        %v3696 = vrcp.pop %v3568
        %v3697 = vrcp.pop %v3569
        %v3698 = vrcp.pop %v3570
        %v3699 = vrcp.pop %v3571
        %v3700 = vrcp.pop %v3572
        %v3701 = vrcp.pop %v3573
        %v3702 = vrcp.pop %v3574
        %v3703 = vrcp.pop %v3575
        %v3704 = vrcp.pop %v3576
        %v3705 = vrcp.pop %v3577
        %v3706 = vrcp.pop %v3578
        %v3707 = vrcp.pop %v3579
        %v3708 = vrcp.pop %v3580
        %v3709 = vrcp.pop %v3581
        %v3710 = vrcp.pop %v3582
        %v3711 = vrcp.pop %v3583
        %v3712 = vrcp.pop %v3584
        %v3713 = vrcp.pop %v3585
        %v3714 = vrcp.pop %v3586
        %v3715 = vrcp.pop %v3587
        %v3716 = vmul.f32 %v2566, %v3588
        %v3717 = vmul.f32 %v2569, %v3589
        %v3718 = vmul.f32 %v2574, %v3590
        %v3719 = vmul.f32 %v2577, %v3591
        %v3720 = vmul.f32 %v2582, %v3592
        %v3721 = vmul.f32 %v2585, %v3593
        %v3722 = vmul.f32 %v2590, %v3594
        %v3723 = vmul.f32 %v2593, %v3595
        %v3724 = vmul.f32 %v2598, %v3596
        %v3725 = vmul.f32 %v2601, %v3597
        %v3726 = vmul.f32 %v2606, %v3598
        %v3727 = vmul.f32 %v2609, %v3599
        %v3728 = vmul.f32 %v2614, %v3600
        %v3729 = vmul.f32 %v2617, %v3601
        %v3730 = vmul.f32 %v2622, %v3602
        %v3731 = vmul.f32 %v2625, %v3603
        %v3732 = vmul.f32 %v2630, %v3604
        %v3733 = vmul.f32 %v2633, %v3605
        %v3734 = vmul.f32 %v2638, %v3606
        %v3735 = vmul.f32 %v2641, %v3607
        %v3736 = vmul.f32 %v2646, %v3608
        %v3737 = vmul.f32 %v2649, %v3609
        %v3738 = vmul.f32 %v2654, %v3610
        %v3739 = vmul.f32 %v2657, %v3611
        %v3740 = vmul.f32 %v2662, %v3612
        %v3741 = vmul.f32 %v2665, %v3613
        %v3742 = vmul.f32 %v2670, %v3614
        %v3743 = vmul.f32 %v2673, %v3615
        %v3744 = vmul.f32 %v2678, %v3616
        %v3745 = vmul.f32 %v2681, %v3617
        %v3746 = vmul.f32 %v2686, %v3618
        %v3747 = vmul.f32 %v2689, %v3619
        %v3748 = vmul.f32 %v2694, %v3620
        %v3749 = vmul.f32 %v2697, %v3621
        %v3750 = vmul.f32 %v2702, %v3622
        %v3751 = vmul.f32 %v2705, %v3623
        %v3752 = vmul.f32 %v2710, %v3624
        %v3753 = vmul.f32 %v2713, %v3625
        %v3754 = vmul.f32 %v2718, %v3626
        %v3755 = vmul.f32 %v2721, %v3627
        %v3756 = vmul.f32 %v2726, %v3628
        %v3757 = vmul.f32 %v2729, %v3629
        %v3758 = vmul.f32 %v2734, %v3630
        %v3759 = vmul.f32 %v2737, %v3631
        %v3760 = vmul.f32 %v2742, %v3632
        %v3761 = vmul.f32 %v2745, %v3633
        %v3762 = vmul.f32 %v2750, %v3634
        %v3763 = vmul.f32 %v2753, %v3635
        %v3764 = vmul.f32 %v2758, %v3636
        %v3765 = vmul.f32 %v2761, %v3637
        %v3766 = vmul.f32 %v2766, %v3638
        %v3767 = vmul.f32 %v2769, %v3639
        %v3768 = vmul.f32 %v2774, %v3640
        %v3769 = vmul.f32 %v2777, %v3641
        %v3770 = vmul.f32 %v2782, %v3642
        %v3771 = vmul.f32 %v2785, %v3643
        %v3772 = vmul.f32 %v2790, %v3644
        %v3773 = vmul.f32 %v2793, %v3645
        %v3774 = vmul.f32 %v2798, %v3646
        %v3775 = vmul.f32 %v2801, %v3647
        %v3776 = vmul.f32 %v2806, %v3648
        %v3777 = vmul.f32 %v2809, %v3649
        %v3778 = vmul.f32 %v2814, %v3650
        %v3779 = vmul.f32 %v2817, %v3651
        %v3780 = vmul.f32 %v2822, %v3652
        %v3781 = vmul.f32 %v2825, %v3653
        %v3782 = vmul.f32 %v2830, %v3654
        %v3783 = vmul.f32 %v2833, %v3655
        %v3784 = vmul.f32 %v2838, %v3656
        %v3785 = vmul.f32 %v2841, %v3657
        %v3786 = vmul.f32 %v2846, %v3658
        %v3787 = vmul.f32 %v2849, %v3659
        %v3788 = vmul.f32 %v2854, %v3660
        %v3789 = vmul.f32 %v2857, %v3661
        %v3790 = vmul.f32 %v2862, %v3662
        %v3791 = vmul.f32 %v2865, %v3663
        %v3792 = vmul.f32 %v2870, %v3664
        %v3793 = vmul.f32 %v2873, %v3665
        %v3794 = vmul.f32 %v2878, %v3666
        %v3795 = vmul.f32 %v2881, %v3667
        %v3796 = vmul.f32 %v2886, %v3668
        %v3797 = vmul.f32 %v2889, %v3669
        %v3798 = vmul.f32 %v2894, %v3670
        %v3799 = vmul.f32 %v2897, %v3671
        %v3800 = vmul.f32 %v2902, %v3672
        %v3801 = vmul.f32 %v2905, %v3673
        %v3802 = vmul.f32 %v2910, %v3674
        %v3803 = vmul.f32 %v2913, %v3675
        %v3804 = vmul.f32 %v2918, %v3676
        %v3805 = vmul.f32 %v2921, %v3677
        %v3806 = vmul.f32 %v2926, %v3678
        %v3807 = vmul.f32 %v2929, %v3679
        %v3808 = vmul.f32 %v2934, %v3680
        %v3809 = vmul.f32 %v2937, %v3681
        %v3810 = vmul.f32 %v2942, %v3682
        %v3811 = vmul.f32 %v2945, %v3683
        %v3812 = vmul.f32 %v2950, %v3684
        %v3813 = vmul.f32 %v2953, %v3685
        %v3814 = vmul.f32 %v2958, %v3686
        %v3815 = vmul.f32 %v2961, %v3687
        %v3816 = vmul.f32 %v2966, %v3688
        %v3817 = vmul.f32 %v2969, %v3689
        %v3818 = vmul.f32 %v2974, %v3690
        %v3819 = vmul.f32 %v2977, %v3691
        %v3820 = vmul.f32 %v2982, %v3692
        %v3821 = vmul.f32 %v2985, %v3693
        %v3822 = vmul.f32 %v2990, %v3694
        %v3823 = vmul.f32 %v2993, %v3695
        %v3824 = vmul.f32 %v2998, %v3696
        %v3825 = vmul.f32 %v3001, %v3697
        %v3826 = vmul.f32 %v3006, %v3698
        %v3827 = vmul.f32 %v3009, %v3699
        %v3828 = vmul.f32 %v3014, %v3700
        %v3829 = vmul.f32 %v3017, %v3701
        %v3830 = vmul.f32 %v3022, %v3702
        %v3831 = vmul.f32 %v3025, %v3703
        %v3832 = vmul.f32 %v3030, %v3704
        %v3833 = vmul.f32 %v3033, %v3705
        %v3834 = vmul.f32 %v3038, %v3706
        %v3835 = vmul.f32 %v3041, %v3707
        %v3836 = vmul.f32 %v3046, %v3708
        %v3837 = vmul.f32 %v3049, %v3709
        %v3838 = vmul.f32 %v3054, %v3710
        %v3839 = vmul.f32 %v3057, %v3711
        %v3840 = vmul.f32 %v3062, %v3712
        %v3841 = vmul.f32 %v3065, %v3713
        %v3842 = vmul.f32 %v3070, %v3714
        %v3843 = vmul.f32 %v3073, %v3715
        %v3844 = vld [vmem:[%s5] sm:$0x1]
        %v3846 = vlaneseq
        %v3847 = vshrl.u32 %v3846, 7
        %v3848 = vsub.s32 0, %v3847
        %v3849 = vrot.slane %v3844, %v3848
        %v3851 = vmul.f32 %v3716, %v3849
        %v3852 = vmul.f32 %v3717, %v3849
        %v3853 = vmul.f32 %v3718, %v3849
        %v3854 = vmul.f32 %v3719, %v3849
        %v3855 = vmul.f32 %v3720, %v3849
        %v3856 = vmul.f32 %v3721, %v3849
        %v3857 = vmul.f32 %v3722, %v3849
        %v3858 = vmul.f32 %v3723, %v3849
        %v3859 = vmul.f32 %v3724, %v3849
        %v3860 = vmul.f32 %v3725, %v3849
        %v3861 = vmul.f32 %v3726, %v3849
        %v3862 = vmul.f32 %v3727, %v3849
        %v3863 = vmul.f32 %v3728, %v3849
        %v3864 = vmul.f32 %v3729, %v3849
        %v3865 = vmul.f32 %v3730, %v3849
        %v3866 = vmul.f32 %v3731, %v3849
        %v3867 = vmul.f32 %v3732, %v3849
        %v3868 = vmul.f32 %v3733, %v3849
        %v3869 = vmul.f32 %v3734, %v3849
        %v3870 = vmul.f32 %v3735, %v3849
        %v3871 = vmul.f32 %v3736, %v3849
        %v3872 = vmul.f32 %v3737, %v3849
        %v3873 = vmul.f32 %v3738, %v3849
        %v3874 = vmul.f32 %v3739, %v3849
        %v3875 = vmul.f32 %v3740, %v3849
        %v3876 = vmul.f32 %v3741, %v3849
        %v3877 = vmul.f32 %v3742, %v3849
        %v3878 = vmul.f32 %v3743, %v3849
        %v3879 = vmul.f32 %v3744, %v3849
        %v3880 = vmul.f32 %v3745, %v3849
        %v3881 = vmul.f32 %v3746, %v3849
        %v3882 = vmul.f32 %v3747, %v3849
        %v3883 = vmul.f32 %v3748, %v3849
        %v3884 = vmul.f32 %v3749, %v3849
        %v3885 = vmul.f32 %v3750, %v3849
        %v3886 = vmul.f32 %v3751, %v3849
        %v3887 = vmul.f32 %v3752, %v3849
        %v3888 = vmul.f32 %v3753, %v3849
        %v3889 = vmul.f32 %v3754, %v3849
        %v3890 = vmul.f32 %v3755, %v3849
        %v3891 = vmul.f32 %v3756, %v3849
        %v3892 = vmul.f32 %v3757, %v3849
        %v3893 = vmul.f32 %v3758, %v3849
        %v3894 = vmul.f32 %v3759, %v3849
        %v3895 = vmul.f32 %v3760, %v3849
        %v3896 = vmul.f32 %v3761, %v3849
        %v3897 = vmul.f32 %v3762, %v3849
        %v3898 = vmul.f32 %v3763, %v3849
        %v3899 = vmul.f32 %v3764, %v3849
        %v3900 = vmul.f32 %v3765, %v3849
        %v3901 = vmul.f32 %v3766, %v3849
        %v3902 = vmul.f32 %v3767, %v3849
        %v3903 = vmul.f32 %v3768, %v3849
        %v3904 = vmul.f32 %v3769, %v3849
        %v3905 = vmul.f32 %v3770, %v3849
        %v3906 = vmul.f32 %v3771, %v3849
        %v3907 = vmul.f32 %v3772, %v3849
        %v3908 = vmul.f32 %v3773, %v3849
        %v3909 = vmul.f32 %v3774, %v3849
        %v3910 = vmul.f32 %v3775, %v3849
        %v3911 = vmul.f32 %v3776, %v3849
        %v3912 = vmul.f32 %v3777, %v3849
        %v3913 = vmul.f32 %v3778, %v3849
        %v3914 = vmul.f32 %v3779, %v3849
        %v3915 = vmul.f32 %v3780, %v3849
        %v3916 = vmul.f32 %v3781, %v3849
        %v3917 = vmul.f32 %v3782, %v3849
        %v3918 = vmul.f32 %v3783, %v3849
        %v3919 = vmul.f32 %v3784, %v3849
        %v3920 = vmul.f32 %v3785, %v3849
        %v3921 = vmul.f32 %v3786, %v3849
        %v3922 = vmul.f32 %v3787, %v3849
        %v3923 = vmul.f32 %v3788, %v3849
        %v3924 = vmul.f32 %v3789, %v3849
        %v3925 = vmul.f32 %v3790, %v3849
        %v3926 = vmul.f32 %v3791, %v3849
        %v3927 = vmul.f32 %v3792, %v3849
        %v3928 = vmul.f32 %v3793, %v3849
        %v3929 = vmul.f32 %v3794, %v3849
        %v3930 = vmul.f32 %v3795, %v3849
        %v3931 = vmul.f32 %v3796, %v3849
        %v3932 = vmul.f32 %v3797, %v3849
        %v3933 = vmul.f32 %v3798, %v3849
        %v3934 = vmul.f32 %v3799, %v3849
        %v3935 = vmul.f32 %v3800, %v3849
        %v3936 = vmul.f32 %v3801, %v3849
        %v3937 = vmul.f32 %v3802, %v3849
        %v3938 = vmul.f32 %v3803, %v3849
        %v3939 = vmul.f32 %v3804, %v3849
        %v3940 = vmul.f32 %v3805, %v3849
        %v3941 = vmul.f32 %v3806, %v3849
        %v3942 = vmul.f32 %v3807, %v3849
        %v3943 = vmul.f32 %v3808, %v3849
        %v3944 = vmul.f32 %v3809, %v3849
        %v3945 = vmul.f32 %v3810, %v3849
        %v3946 = vmul.f32 %v3811, %v3849
        %v3947 = vmul.f32 %v3812, %v3849
        %v3948 = vmul.f32 %v3813, %v3849
        %v3949 = vmul.f32 %v3814, %v3849
        %v3950 = vmul.f32 %v3815, %v3849
        %v3951 = vmul.f32 %v3816, %v3849
        %v3952 = vmul.f32 %v3817, %v3849
        %v3953 = vmul.f32 %v3818, %v3849
        %v3954 = vmul.f32 %v3819, %v3849
        %v3955 = vmul.f32 %v3820, %v3849
        %v3956 = vmul.f32 %v3821, %v3849
        %v3957 = vmul.f32 %v3822, %v3849
        %v3958 = vmul.f32 %v3823, %v3849
        %v3959 = vmul.f32 %v3824, %v3849
        %v3960 = vmul.f32 %v3825, %v3849
        %v3961 = vmul.f32 %v3826, %v3849
        %v3962 = vmul.f32 %v3827, %v3849
        %v3963 = vmul.f32 %v3828, %v3849
        %v3964 = vmul.f32 %v3829, %v3849
        %v3965 = vmul.f32 %v3830, %v3849
        %v3966 = vmul.f32 %v3831, %v3849
        %v3967 = vmul.f32 %v3832, %v3849
        %v3968 = vmul.f32 %v3833, %v3849
        %v3969 = vmul.f32 %v3834, %v3849
        %v3970 = vmul.f32 %v3835, %v3849
        %v3971 = vmul.f32 %v3836, %v3849
        %v3972 = vmul.f32 %v3837, %v3849
        %v3973 = vmul.f32 %v3838, %v3849
        %v3974 = vmul.f32 %v3839, %v3849
        %v3975 = vmul.f32 %v3840, %v3849
        %v3976 = vmul.f32 %v3841, %v3849
        %v3977 = vmul.f32 %v3842, %v3849
        %v3978 = vmul.f32 %v3843, %v3849
        %v3979 = vsel %vm745, %v3851, 0.0
        %3980 = vadd.xlane.f32.xlu0 %v3979
        %v3981 = vpop.xlane.xlu0 %3980
        %v3982 = vsel %vm745, %v3852, 0.0
        %3983 = vadd.xlane.f32.xlu0 %v3982
        %v3984 = vpop.xlane.xlu0 %3983
        %v3985 = vsel %vm745, %v3853, 0.0
        %3986 = vadd.xlane.f32.xlu0 %v3985
        %v3987 = vpop.xlane.xlu0 %3986
        %v3988 = vsel %vm745, %v3854, 0.0
        %3989 = vadd.xlane.f32.xlu0 %v3988
        %v3990 = vpop.xlane.xlu0 %3989
        %v3991 = vsel %vm745, %v3855, 0.0
        %3992 = vadd.xlane.f32.xlu0 %v3991
        %v3993 = vpop.xlane.xlu0 %3992
        %v3994 = vsel %vm745, %v3856, 0.0
        %3995 = vadd.xlane.f32.xlu0 %v3994
        %v3996 = vpop.xlane.xlu0 %3995
        %v3997 = vsel %vm745, %v3857, 0.0
        %3998 = vadd.xlane.f32.xlu0 %v3997
        %v3999 = vpop.xlane.xlu0 %3998
        %v4000 = vsel %vm745, %v3858, 0.0
        %4001 = vadd.xlane.f32.xlu0 %v4000
        %v4002 = vpop.xlane.xlu0 %4001
        %v4003 = vsel %vm745, %v3859, 0.0
        %4004 = vadd.xlane.f32.xlu0 %v4003
        %v4005 = vpop.xlane.xlu0 %4004
        %v4006 = vsel %vm745, %v3860, 0.0
        %4007 = vadd.xlane.f32.xlu0 %v4006
        %v4008 = vpop.xlane.xlu0 %4007
        %v4009 = vsel %vm745, %v3861, 0.0
        %4010 = vadd.xlane.f32.xlu0 %v4009
        %v4011 = vpop.xlane.xlu0 %4010
        %v4012 = vsel %vm745, %v3862, 0.0
        %4013 = vadd.xlane.f32.xlu0 %v4012
        %v4014 = vpop.xlane.xlu0 %4013
        %v4015 = vsel %vm745, %v3863, 0.0
        %4016 = vadd.xlane.f32.xlu0 %v4015
        %v4017 = vpop.xlane.xlu0 %4016
        %v4018 = vsel %vm745, %v3864, 0.0
        %4019 = vadd.xlane.f32.xlu0 %v4018
        %v4020 = vpop.xlane.xlu0 %4019
        %v4021 = vsel %vm745, %v3865, 0.0
        %4022 = vadd.xlane.f32.xlu0 %v4021
        %v4023 = vpop.xlane.xlu0 %4022
        %v4024 = vsel %vm745, %v3866, 0.0
        %4025 = vadd.xlane.f32.xlu0 %v4024
        %v4026 = vpop.xlane.xlu0 %4025
        %v4027 = vsel %vm745, %v3867, 0.0
        %4028 = vadd.xlane.f32.xlu0 %v4027
        %v4029 = vpop.xlane.xlu0 %4028
        %v4030 = vsel %vm745, %v3868, 0.0
        %4031 = vadd.xlane.f32.xlu0 %v4030
        %v4032 = vpop.xlane.xlu0 %4031
        %v4033 = vsel %vm745, %v3869, 0.0
        %4034 = vadd.xlane.f32.xlu0 %v4033
        %v4035 = vpop.xlane.xlu0 %4034
        %v4036 = vsel %vm745, %v3870, 0.0
        %4037 = vadd.xlane.f32.xlu0 %v4036
        %v4038 = vpop.xlane.xlu0 %4037
        %v4039 = vsel %vm745, %v3871, 0.0
        %4040 = vadd.xlane.f32.xlu0 %v4039
        %v4041 = vpop.xlane.xlu0 %4040
        %v4042 = vsel %vm745, %v3872, 0.0
        %4043 = vadd.xlane.f32.xlu0 %v4042
        %v4044 = vpop.xlane.xlu0 %4043
        %v4045 = vsel %vm745, %v3873, 0.0
        %4046 = vadd.xlane.f32.xlu0 %v4045
        %v4047 = vpop.xlane.xlu0 %4046
        %v4048 = vsel %vm745, %v3874, 0.0
        %4049 = vadd.xlane.f32.xlu0 %v4048
        %v4050 = vpop.xlane.xlu0 %4049
        %v4051 = vsel %vm745, %v3875, 0.0
        %4052 = vadd.xlane.f32.xlu0 %v4051
        %v4053 = vpop.xlane.xlu0 %4052
        %v4054 = vsel %vm745, %v3876, 0.0
        %4055 = vadd.xlane.f32.xlu0 %v4054
        %v4056 = vpop.xlane.xlu0 %4055
        %v4057 = vsel %vm745, %v3877, 0.0
        %4058 = vadd.xlane.f32.xlu0 %v4057
        %v4059 = vpop.xlane.xlu0 %4058
        %v4060 = vsel %vm745, %v3878, 0.0
        %4061 = vadd.xlane.f32.xlu0 %v4060
        %v4062 = vpop.xlane.xlu0 %4061
        %v4063 = vsel %vm745, %v3879, 0.0
        %4064 = vadd.xlane.f32.xlu0 %v4063
        %v4065 = vpop.xlane.xlu0 %4064
        %v4066 = vsel %vm745, %v3880, 0.0
        %4067 = vadd.xlane.f32.xlu0 %v4066
        %v4068 = vpop.xlane.xlu0 %4067
        %v4069 = vsel %vm745, %v3881, 0.0
        %4070 = vadd.xlane.f32.xlu0 %v4069
        %v4071 = vpop.xlane.xlu0 %4070
        %v4072 = vsel %vm745, %v3882, 0.0
        %4073 = vadd.xlane.f32.xlu0 %v4072
        %v4074 = vpop.xlane.xlu0 %4073
        %v4075 = vsel %vm745, %v3883, 0.0
        %4076 = vadd.xlane.f32.xlu0 %v4075
        %v4077 = vpop.xlane.xlu0 %4076
        %v4078 = vsel %vm745, %v3884, 0.0
        %4079 = vadd.xlane.f32.xlu0 %v4078
        %v4080 = vpop.xlane.xlu0 %4079
        %v4081 = vsel %vm745, %v3885, 0.0
        %4082 = vadd.xlane.f32.xlu0 %v4081
        %v4083 = vpop.xlane.xlu0 %4082
        %v4084 = vsel %vm745, %v3886, 0.0
        %4085 = vadd.xlane.f32.xlu0 %v4084
        %v4086 = vpop.xlane.xlu0 %4085
        %v4087 = vsel %vm745, %v3887, 0.0
        %4088 = vadd.xlane.f32.xlu0 %v4087
        %v4089 = vpop.xlane.xlu0 %4088
        %v4090 = vsel %vm745, %v3888, 0.0
        %4091 = vadd.xlane.f32.xlu0 %v4090
        %v4092 = vpop.xlane.xlu0 %4091
        %v4093 = vsel %vm745, %v3889, 0.0
        %4094 = vadd.xlane.f32.xlu0 %v4093
        %v4095 = vpop.xlane.xlu0 %4094
        %v4096 = vsel %vm745, %v3890, 0.0
        %4097 = vadd.xlane.f32.xlu0 %v4096
        %v4098 = vpop.xlane.xlu0 %4097
        %v4099 = vsel %vm745, %v3891, 0.0
        %4100 = vadd.xlane.f32.xlu0 %v4099
        %v4101 = vpop.xlane.xlu0 %4100
        %v4102 = vsel %vm745, %v3892, 0.0
        %4103 = vadd.xlane.f32.xlu0 %v4102
        %v4104 = vpop.xlane.xlu0 %4103
        %v4105 = vsel %vm745, %v3893, 0.0
        %4106 = vadd.xlane.f32.xlu0 %v4105
        %v4107 = vpop.xlane.xlu0 %4106
        %v4108 = vsel %vm745, %v3894, 0.0
        %4109 = vadd.xlane.f32.xlu0 %v4108
        %v4110 = vpop.xlane.xlu0 %4109
        %v4111 = vsel %vm745, %v3895, 0.0
        %4112 = vadd.xlane.f32.xlu0 %v4111
        %v4113 = vpop.xlane.xlu0 %4112
        %v4114 = vsel %vm745, %v3896, 0.0
        %4115 = vadd.xlane.f32.xlu0 %v4114
        %v4116 = vpop.xlane.xlu0 %4115
        %v4117 = vsel %vm745, %v3897, 0.0
        %4118 = vadd.xlane.f32.xlu0 %v4117
        %v4119 = vpop.xlane.xlu0 %4118
        %v4120 = vsel %vm745, %v3898, 0.0
        %4121 = vadd.xlane.f32.xlu0 %v4120
        %v4122 = vpop.xlane.xlu0 %4121
        %v4123 = vsel %vm745, %v3899, 0.0
        %4124 = vadd.xlane.f32.xlu0 %v4123
        %v4125 = vpop.xlane.xlu0 %4124
        %v4126 = vsel %vm745, %v3900, 0.0
        %4127 = vadd.xlane.f32.xlu0 %v4126
        %v4128 = vpop.xlane.xlu0 %4127
        %v4129 = vsel %vm745, %v3901, 0.0
        %4130 = vadd.xlane.f32.xlu0 %v4129
        %v4131 = vpop.xlane.xlu0 %4130
        %v4132 = vsel %vm745, %v3902, 0.0
        %4133 = vadd.xlane.f32.xlu0 %v4132
        %v4134 = vpop.xlane.xlu0 %4133
        %v4135 = vsel %vm745, %v3903, 0.0
        %4136 = vadd.xlane.f32.xlu0 %v4135
        %v4137 = vpop.xlane.xlu0 %4136
        %v4138 = vsel %vm745, %v3904, 0.0
        %4139 = vadd.xlane.f32.xlu0 %v4138
        %v4140 = vpop.xlane.xlu0 %4139
        %v4141 = vsel %vm745, %v3905, 0.0
        %4142 = vadd.xlane.f32.xlu0 %v4141
        %v4143 = vpop.xlane.xlu0 %4142
        %v4144 = vsel %vm745, %v3906, 0.0
        %4145 = vadd.xlane.f32.xlu0 %v4144
        %v4146 = vpop.xlane.xlu0 %4145
        %v4147 = vsel %vm745, %v3907, 0.0
        %4148 = vadd.xlane.f32.xlu0 %v4147
        %v4149 = vpop.xlane.xlu0 %4148
        %v4150 = vsel %vm745, %v3908, 0.0
        %4151 = vadd.xlane.f32.xlu0 %v4150
        %v4152 = vpop.xlane.xlu0 %4151
        %v4153 = vsel %vm745, %v3909, 0.0
        %4154 = vadd.xlane.f32.xlu0 %v4153
        %v4155 = vpop.xlane.xlu0 %4154
        %v4156 = vsel %vm745, %v3910, 0.0
        %4157 = vadd.xlane.f32.xlu0 %v4156
        %v4158 = vpop.xlane.xlu0 %4157
        %v4159 = vsel %vm745, %v3911, 0.0
        %4160 = vadd.xlane.f32.xlu0 %v4159
        %v4161 = vpop.xlane.xlu0 %4160
        %v4162 = vsel %vm745, %v3912, 0.0
        %4163 = vadd.xlane.f32.xlu0 %v4162
        %v4164 = vpop.xlane.xlu0 %4163
        %v4165 = vsel %vm745, %v3913, 0.0
        %4166 = vadd.xlane.f32.xlu0 %v4165
        %v4167 = vpop.xlane.xlu0 %4166
        %v4168 = vsel %vm745, %v3914, 0.0
        %4169 = vadd.xlane.f32.xlu0 %v4168
        %v4170 = vpop.xlane.xlu0 %4169
        %v4171 = vsel %vm745, %v3915, 0.0
        %4172 = vadd.xlane.f32.xlu0 %v4171
        %v4173 = vpop.xlane.xlu0 %4172
        %v4174 = vsel %vm745, %v3916, 0.0
        %4175 = vadd.xlane.f32.xlu0 %v4174
        %v4176 = vpop.xlane.xlu0 %4175
        %v4177 = vsel %vm745, %v3917, 0.0
        %4178 = vadd.xlane.f32.xlu0 %v4177
        %v4179 = vpop.xlane.xlu0 %4178
        %v4180 = vsel %vm745, %v3918, 0.0
        %4181 = vadd.xlane.f32.xlu0 %v4180
        %v4182 = vpop.xlane.xlu0 %4181
        %v4183 = vsel %vm745, %v3919, 0.0
        %4184 = vadd.xlane.f32.xlu0 %v4183
        %v4185 = vpop.xlane.xlu0 %4184
        %v4186 = vsel %vm745, %v3920, 0.0
        %4187 = vadd.xlane.f32.xlu0 %v4186
        %v4188 = vpop.xlane.xlu0 %4187
        %v4189 = vsel %vm745, %v3921, 0.0
        %4190 = vadd.xlane.f32.xlu0 %v4189
        %v4191 = vpop.xlane.xlu0 %4190
        %v4192 = vsel %vm745, %v3922, 0.0
        %4193 = vadd.xlane.f32.xlu0 %v4192
        %v4194 = vpop.xlane.xlu0 %4193
        %v4195 = vsel %vm745, %v3923, 0.0
        %4196 = vadd.xlane.f32.xlu0 %v4195
        %v4197 = vpop.xlane.xlu0 %4196
        %v4198 = vsel %vm745, %v3924, 0.0
        %4199 = vadd.xlane.f32.xlu0 %v4198
        %v4200 = vpop.xlane.xlu0 %4199
        %v4201 = vsel %vm745, %v3925, 0.0
        %4202 = vadd.xlane.f32.xlu0 %v4201
        %v4203 = vpop.xlane.xlu0 %4202
        %v4204 = vsel %vm745, %v3926, 0.0
        %4205 = vadd.xlane.f32.xlu0 %v4204
        %v4206 = vpop.xlane.xlu0 %4205
        %v4207 = vsel %vm745, %v3927, 0.0
        %4208 = vadd.xlane.f32.xlu0 %v4207
        %v4209 = vpop.xlane.xlu0 %4208
        %v4210 = vsel %vm745, %v3928, 0.0
        %4211 = vadd.xlane.f32.xlu0 %v4210
        %v4212 = vpop.xlane.xlu0 %4211
        %v4213 = vsel %vm745, %v3929, 0.0
        %4214 = vadd.xlane.f32.xlu0 %v4213
        %v4215 = vpop.xlane.xlu0 %4214
        %v4216 = vsel %vm745, %v3930, 0.0
        %4217 = vadd.xlane.f32.xlu0 %v4216
        %v4218 = vpop.xlane.xlu0 %4217
        %v4219 = vsel %vm745, %v3931, 0.0
        %4220 = vadd.xlane.f32.xlu0 %v4219
        %v4221 = vpop.xlane.xlu0 %4220
        %v4222 = vsel %vm745, %v3932, 0.0
        %4223 = vadd.xlane.f32.xlu0 %v4222
        %v4224 = vpop.xlane.xlu0 %4223
        %v4225 = vsel %vm745, %v3933, 0.0
        %4226 = vadd.xlane.f32.xlu0 %v4225
        %v4227 = vpop.xlane.xlu0 %4226
        %v4228 = vsel %vm745, %v3934, 0.0
        %4229 = vadd.xlane.f32.xlu0 %v4228
        %v4230 = vpop.xlane.xlu0 %4229
        %v4231 = vsel %vm745, %v3935, 0.0
        %4232 = vadd.xlane.f32.xlu0 %v4231
        %v4233 = vpop.xlane.xlu0 %4232
        %v4234 = vsel %vm745, %v3936, 0.0
        %4235 = vadd.xlane.f32.xlu0 %v4234
        %v4236 = vpop.xlane.xlu0 %4235
        %v4237 = vsel %vm745, %v3937, 0.0
        %4238 = vadd.xlane.f32.xlu0 %v4237
        %v4239 = vpop.xlane.xlu0 %4238
        %v4240 = vsel %vm745, %v3938, 0.0
        %4241 = vadd.xlane.f32.xlu0 %v4240
        %v4242 = vpop.xlane.xlu0 %4241
        %v4243 = vsel %vm745, %v3939, 0.0
        %4244 = vadd.xlane.f32.xlu0 %v4243
        %v4245 = vpop.xlane.xlu0 %4244
        %v4246 = vsel %vm745, %v3940, 0.0
        %4247 = vadd.xlane.f32.xlu0 %v4246
        %v4248 = vpop.xlane.xlu0 %4247
        %v4249 = vsel %vm745, %v3941, 0.0
        %4250 = vadd.xlane.f32.xlu0 %v4249
        %v4251 = vpop.xlane.xlu0 %4250
        %v4252 = vsel %vm745, %v3942, 0.0
        %4253 = vadd.xlane.f32.xlu0 %v4252
        %v4254 = vpop.xlane.xlu0 %4253
        %v4255 = vsel %vm745, %v3943, 0.0
        %4256 = vadd.xlane.f32.xlu0 %v4255
        %v4257 = vpop.xlane.xlu0 %4256
        %v4258 = vsel %vm745, %v3944, 0.0
        %4259 = vadd.xlane.f32.xlu0 %v4258
        %v4260 = vpop.xlane.xlu0 %4259
        %v4261 = vsel %vm745, %v3945, 0.0
        %4262 = vadd.xlane.f32.xlu0 %v4261
        %v4263 = vpop.xlane.xlu0 %4262
        %v4264 = vsel %vm745, %v3946, 0.0
        %4265 = vadd.xlane.f32.xlu0 %v4264
        %v4266 = vpop.xlane.xlu0 %4265
        %v4267 = vsel %vm745, %v3947, 0.0
        %4268 = vadd.xlane.f32.xlu0 %v4267
        %v4269 = vpop.xlane.xlu0 %4268
        %v4270 = vsel %vm745, %v3948, 0.0
        %4271 = vadd.xlane.f32.xlu0 %v4270
        %v4272 = vpop.xlane.xlu0 %4271
        %v4273 = vsel %vm745, %v3949, 0.0
        %4274 = vadd.xlane.f32.xlu0 %v4273
        %v4275 = vpop.xlane.xlu0 %4274
        %v4276 = vsel %vm745, %v3950, 0.0
        %4277 = vadd.xlane.f32.xlu0 %v4276
        %v4278 = vpop.xlane.xlu0 %4277
        %v4279 = vsel %vm745, %v3951, 0.0
        %4280 = vadd.xlane.f32.xlu0 %v4279
        %v4281 = vpop.xlane.xlu0 %4280
        %v4282 = vsel %vm745, %v3952, 0.0
        %4283 = vadd.xlane.f32.xlu0 %v4282
        %v4284 = vpop.xlane.xlu0 %4283
        %v4285 = vsel %vm745, %v3953, 0.0
        %4286 = vadd.xlane.f32.xlu0 %v4285
        %v4287 = vpop.xlane.xlu0 %4286
        %v4288 = vsel %vm745, %v3954, 0.0
        %4289 = vadd.xlane.f32.xlu0 %v4288
        %v4290 = vpop.xlane.xlu0 %4289
        %v4291 = vsel %vm745, %v3955, 0.0
        %4292 = vadd.xlane.f32.xlu0 %v4291
        %v4293 = vpop.xlane.xlu0 %4292
        %v4294 = vsel %vm745, %v3956, 0.0
        %4295 = vadd.xlane.f32.xlu0 %v4294
        %v4296 = vpop.xlane.xlu0 %4295
        %v4297 = vsel %vm745, %v3957, 0.0
        %4298 = vadd.xlane.f32.xlu0 %v4297
        %v4299 = vpop.xlane.xlu0 %4298
        %v4300 = vsel %vm745, %v3958, 0.0
        %4301 = vadd.xlane.f32.xlu0 %v4300
        %v4302 = vpop.xlane.xlu0 %4301
        %v4303 = vsel %vm745, %v3959, 0.0
        %4304 = vadd.xlane.f32.xlu0 %v4303
        %v4305 = vpop.xlane.xlu0 %4304
        %v4306 = vsel %vm745, %v3960, 0.0
        %4307 = vadd.xlane.f32.xlu0 %v4306
        %v4308 = vpop.xlane.xlu0 %4307
        %v4309 = vsel %vm745, %v3961, 0.0
        %4310 = vadd.xlane.f32.xlu0 %v4309
        %v4311 = vpop.xlane.xlu0 %4310
        %v4312 = vsel %vm745, %v3962, 0.0
        %4313 = vadd.xlane.f32.xlu0 %v4312
        %v4314 = vpop.xlane.xlu0 %4313
        %v4315 = vsel %vm745, %v3963, 0.0
        %4316 = vadd.xlane.f32.xlu0 %v4315
        %v4317 = vpop.xlane.xlu0 %4316
        %v4318 = vsel %vm745, %v3964, 0.0
        %4319 = vadd.xlane.f32.xlu0 %v4318
        %v4320 = vpop.xlane.xlu0 %4319
        %v4321 = vsel %vm745, %v3965, 0.0
        %4322 = vadd.xlane.f32.xlu0 %v4321
        %v4323 = vpop.xlane.xlu0 %4322
        %v4324 = vsel %vm745, %v3966, 0.0
        %4325 = vadd.xlane.f32.xlu0 %v4324
        %v4326 = vpop.xlane.xlu0 %4325
        %v4327 = vsel %vm745, %v3967, 0.0
        %4328 = vadd.xlane.f32.xlu0 %v4327
        %v4329 = vpop.xlane.xlu0 %4328
        %v4330 = vsel %vm745, %v3968, 0.0
        %4331 = vadd.xlane.f32.xlu0 %v4330
        %v4332 = vpop.xlane.xlu0 %4331
        %v4333 = vsel %vm745, %v3969, 0.0
        %4334 = vadd.xlane.f32.xlu0 %v4333
        %v4335 = vpop.xlane.xlu0 %4334
        %v4336 = vsel %vm745, %v3970, 0.0
        %4337 = vadd.xlane.f32.xlu0 %v4336
        %v4338 = vpop.xlane.xlu0 %4337
        %v4339 = vsel %vm745, %v3971, 0.0
        %4340 = vadd.xlane.f32.xlu0 %v4339
        %v4341 = vpop.xlane.xlu0 %4340
        %v4342 = vsel %vm745, %v3972, 0.0
        %4343 = vadd.xlane.f32.xlu0 %v4342
        %v4344 = vpop.xlane.xlu0 %4343
        %v4345 = vsel %vm745, %v3973, 0.0
        %4346 = vadd.xlane.f32.xlu0 %v4345
        %v4347 = vpop.xlane.xlu0 %4346
        %v4348 = vsel %vm745, %v3974, 0.0
        %4349 = vadd.xlane.f32.xlu0 %v4348
        %v4350 = vpop.xlane.xlu0 %4349
        %v4351 = vsel %vm745, %v3975, 0.0
        %4352 = vadd.xlane.f32.xlu0 %v4351
        %v4353 = vpop.xlane.xlu0 %4352
        %v4354 = vsel %vm745, %v3976, 0.0
        %4355 = vadd.xlane.f32.xlu0 %v4354
        %v4356 = vpop.xlane.xlu0 %4355
        %v4357 = vsel %vm745, %v3977, 0.0
        %4358 = vadd.xlane.f32.xlu0 %v4357
        %v4359 = vpop.xlane.xlu0 %4358
        %v4360 = vsel %vm745, %v3978, 0.0
        %4361 = vadd.xlane.f32.xlu0 %v4360
        %v4362 = vpop.xlane.xlu0 %4361
        %v4363 = vld [vmem:[#allocation2] sm:$0x1]
        %v4365 = vlaneseq
        %v4366 = vshrl.u32 %v4365, 7
        %v4367 = vsub.s32 0, %v4366
        %v4368 = vrot.slane %v4363, %v4367
        %4369 = vset.pattern.permute.xlu0 0
        %4370 = vperm.xlu0 %4369, %v4368
        %v4371 = vpop.permute.xlu0 %4370
        %v4373 = vadd.f32 %v3981, %v4371
        %v4374 = vadd.f32 %v3984, %v4371
        %v4375 = vadd.f32 %v3987, %v4371
        %v4376 = vadd.f32 %v3990, %v4371
        %v4377 = vadd.f32 %v3993, %v4371
        %v4378 = vadd.f32 %v3996, %v4371
        %v4379 = vadd.f32 %v3999, %v4371
        %v4380 = vadd.f32 %v4002, %v4371
        %v4381 = vadd.f32 %v4005, %v4371
        %v4382 = vadd.f32 %v4008, %v4371
        %v4383 = vadd.f32 %v4011, %v4371
        %v4384 = vadd.f32 %v4014, %v4371
        %v4385 = vadd.f32 %v4017, %v4371
        %v4386 = vadd.f32 %v4020, %v4371
        %v4387 = vadd.f32 %v4023, %v4371
        %v4388 = vadd.f32 %v4026, %v4371
        %v4389 = vadd.f32 %v4029, %v4371
        %v4390 = vadd.f32 %v4032, %v4371
        %v4391 = vadd.f32 %v4035, %v4371
        %v4392 = vadd.f32 %v4038, %v4371
        %v4393 = vadd.f32 %v4041, %v4371
        %v4394 = vadd.f32 %v4044, %v4371
        %v4395 = vadd.f32 %v4047, %v4371
        %v4396 = vadd.f32 %v4050, %v4371
        %v4397 = vadd.f32 %v4053, %v4371
        %v4398 = vadd.f32 %v4056, %v4371
        %v4399 = vadd.f32 %v4059, %v4371
        %v4400 = vadd.f32 %v4062, %v4371
        %v4401 = vadd.f32 %v4065, %v4371
        %v4402 = vadd.f32 %v4068, %v4371
        %v4403 = vadd.f32 %v4071, %v4371
        %v4404 = vadd.f32 %v4074, %v4371
        %v4405 = vadd.f32 %v4077, %v4371
        %v4406 = vadd.f32 %v4080, %v4371
        %v4407 = vadd.f32 %v4083, %v4371
        %v4408 = vadd.f32 %v4086, %v4371
        %v4409 = vadd.f32 %v4089, %v4371
        %v4410 = vadd.f32 %v4092, %v4371
        %v4411 = vadd.f32 %v4095, %v4371
        %v4412 = vadd.f32 %v4098, %v4371
        %v4413 = vadd.f32 %v4101, %v4371
        %v4414 = vadd.f32 %v4104, %v4371
        %v4415 = vadd.f32 %v4107, %v4371
        %v4416 = vadd.f32 %v4110, %v4371
        %v4417 = vadd.f32 %v4113, %v4371
        %v4418 = vadd.f32 %v4116, %v4371
        %v4419 = vadd.f32 %v4119, %v4371
        %v4420 = vadd.f32 %v4122, %v4371
        %v4421 = vadd.f32 %v4125, %v4371
        %v4422 = vadd.f32 %v4128, %v4371
        %v4423 = vadd.f32 %v4131, %v4371
        %v4424 = vadd.f32 %v4134, %v4371
        %v4425 = vadd.f32 %v4137, %v4371
        %v4426 = vadd.f32 %v4140, %v4371
        %v4427 = vadd.f32 %v4143, %v4371
        %v4428 = vadd.f32 %v4146, %v4371
        %v4429 = vadd.f32 %v4149, %v4371
        %v4430 = vadd.f32 %v4152, %v4371
        %v4431 = vadd.f32 %v4155, %v4371
        %v4432 = vadd.f32 %v4158, %v4371
        %v4433 = vadd.f32 %v4161, %v4371
        %v4434 = vadd.f32 %v4164, %v4371
        %v4435 = vadd.f32 %v4167, %v4371
        %v4436 = vadd.f32 %v4170, %v4371
        %v4437 = vadd.f32 %v4173, %v4371
        %v4438 = vadd.f32 %v4176, %v4371
        %v4439 = vadd.f32 %v4179, %v4371
        %v4440 = vadd.f32 %v4182, %v4371
        %v4441 = vadd.f32 %v4185, %v4371
        %v4442 = vadd.f32 %v4188, %v4371
        %v4443 = vadd.f32 %v4191, %v4371
        %v4444 = vadd.f32 %v4194, %v4371
        %v4445 = vadd.f32 %v4197, %v4371
        %v4446 = vadd.f32 %v4200, %v4371
        %v4447 = vadd.f32 %v4203, %v4371
        %v4448 = vadd.f32 %v4206, %v4371
        %v4449 = vadd.f32 %v4209, %v4371
        %v4450 = vadd.f32 %v4212, %v4371
        %v4451 = vadd.f32 %v4215, %v4371
        %v4452 = vadd.f32 %v4218, %v4371
        %v4453 = vadd.f32 %v4221, %v4371
        %v4454 = vadd.f32 %v4224, %v4371
        %v4455 = vadd.f32 %v4227, %v4371
        %v4456 = vadd.f32 %v4230, %v4371
        %v4457 = vadd.f32 %v4233, %v4371
        %v4458 = vadd.f32 %v4236, %v4371
        %v4459 = vadd.f32 %v4239, %v4371
        %v4460 = vadd.f32 %v4242, %v4371
        %v4461 = vadd.f32 %v4245, %v4371
        %v4462 = vadd.f32 %v4248, %v4371
        %v4463 = vadd.f32 %v4251, %v4371
        %v4464 = vadd.f32 %v4254, %v4371
        %v4465 = vadd.f32 %v4257, %v4371
        %v4466 = vadd.f32 %v4260, %v4371
        %v4467 = vadd.f32 %v4263, %v4371
        %v4468 = vadd.f32 %v4266, %v4371
        %v4469 = vadd.f32 %v4269, %v4371
        %v4470 = vadd.f32 %v4272, %v4371
        %v4471 = vadd.f32 %v4275, %v4371
        %v4472 = vadd.f32 %v4278, %v4371
        %v4473 = vadd.f32 %v4281, %v4371
        %v4474 = vadd.f32 %v4284, %v4371
        %v4475 = vadd.f32 %v4287, %v4371
        %v4476 = vadd.f32 %v4290, %v4371
        %v4477 = vadd.f32 %v4293, %v4371
        %v4478 = vadd.f32 %v4296, %v4371
        %v4479 = vadd.f32 %v4299, %v4371
        %v4480 = vadd.f32 %v4302, %v4371
        %v4481 = vadd.f32 %v4305, %v4371
        %v4482 = vadd.f32 %v4308, %v4371
        %v4483 = vadd.f32 %v4311, %v4371
        %v4484 = vadd.f32 %v4314, %v4371
        %v4485 = vadd.f32 %v4317, %v4371
        %v4486 = vadd.f32 %v4320, %v4371
        %v4487 = vadd.f32 %v4323, %v4371
        %v4488 = vadd.f32 %v4326, %v4371
        %v4489 = vadd.f32 %v4329, %v4371
        %v4490 = vadd.f32 %v4332, %v4371
        %v4491 = vadd.f32 %v4335, %v4371
        %v4492 = vadd.f32 %v4338, %v4371
        %v4493 = vadd.f32 %v4341, %v4371
        %v4494 = vadd.f32 %v4344, %v4371
        %v4495 = vadd.f32 %v4347, %v4371
        %v4496 = vadd.f32 %v4350, %v4371
        %v4497 = vadd.f32 %v4353, %v4371
        %v4498 = vadd.f32 %v4356, %v4371
        %v4499 = vadd.f32 %v4359, %v4371
        %v4500 = vadd.f32 %v4362, %v4371
        %v4629 = vlaneseq
        %v4630 = vand.u32 %v4629, 127
        %v4631 = vlaneseq
        %v4632 = vshrl.u32 %v4631, 7
        %v4633 = vsub.s32 %v4630, %v4632
        %v4634 = vrot.slane %v4373, %v4633
        %v4635 = vadd.s32 %v4630, 4294967288
        %v4636 = vlaneseq
        %v4637 = vshrl.u32 %v4636, 7
        %v4638 = vsub.s32 %v4635, %v4637
        %v4639 = vrot.slane %v4374, %v4638
        %vm4640 = vcmask 130112
        %v4641 = vsel %vm4640, %v4639, %v4634
        %v4642 = vadd.s32 %v4630, 4294967280
        %v4643 = vlaneseq
        %v4644 = vshrl.u32 %v4643, 7
        %v4645 = vsub.s32 %v4642, %v4644
        %v4646 = vrot.slane %v4375, %v4645
        %vm4647 = vcmask 195712
        %v4648 = vsel %vm4647, %v4646, %v4641
        %v4649 = vadd.s32 %v4630, 4294967272
        %v4650 = vlaneseq
        %v4651 = vshrl.u32 %v4650, 7
        %v4652 = vsub.s32 %v4649, %v4651
        %v4653 = vrot.slane %v4376, %v4652
        %vm4654 = vcmask 261312
        %v4655 = vsel %vm4654, %v4653, %v4648
        %v4656 = vadd.s32 %v4630, 4294967264
        %v4657 = vlaneseq
        %v4658 = vshrl.u32 %v4657, 7
        %v4659 = vsub.s32 %v4656, %v4658
        %v4660 = vrot.slane %v4377, %v4659
        %vm4661 = vcmask 326912
        %v4662 = vsel %vm4661, %v4660, %v4655
        %v4663 = vadd.s32 %v4630, 4294967256
        %v4664 = vlaneseq
        %v4665 = vshrl.u32 %v4664, 7
        %v4666 = vsub.s32 %v4663, %v4665
        %v4667 = vrot.slane %v4378, %v4666
        %vm4668 = vcmask 392512
        %v4669 = vsel %vm4668, %v4667, %v4662
        %v4670 = vadd.s32 %v4630, 4294967248
        %v4671 = vlaneseq
        %v4672 = vshrl.u32 %v4671, 7
        %v4673 = vsub.s32 %v4670, %v4672
        %v4674 = vrot.slane %v4379, %v4673
        %vm4675 = vcmask 458112
        %v4676 = vsel %vm4675, %v4674, %v4669
        %v4677 = vadd.s32 %v4630, 4294967240
        %v4678 = vlaneseq
        %v4679 = vshrl.u32 %v4678, 7
        %v4680 = vsub.s32 %v4677, %v4679
        %v4681 = vrot.slane %v4380, %v4680
        %vm4682 = vcmask 523712
        %v4683 = vsel %vm4682, %v4681, %v4676
        %v4684 = vadd.s32 %v4630, 4294967232
        %v4685 = vlaneseq
        %v4686 = vshrl.u32 %v4685, 7
        %v4687 = vsub.s32 %v4684, %v4686
        %v4688 = vrot.slane %v4381, %v4687
        %vm4689 = vcmask 589312
        %v4690 = vsel %vm4689, %v4688, %v4683
        %v4691 = vadd.s32 %v4630, 4294967224
        %v4692 = vlaneseq
        %v4693 = vshrl.u32 %v4692, 7
        %v4694 = vsub.s32 %v4691, %v4693
        %v4695 = vrot.slane %v4382, %v4694
        %vm4696 = vcmask 654912
        %v4697 = vsel %vm4696, %v4695, %v4690
        %v4698 = vadd.s32 %v4630, 4294967216
        %v4699 = vlaneseq
        %v4700 = vshrl.u32 %v4699, 7
        %v4701 = vsub.s32 %v4698, %v4700
        %v4702 = vrot.slane %v4383, %v4701
        %vm4703 = vcmask 720512
        %v4704 = vsel %vm4703, %v4702, %v4697
        %v4705 = vadd.s32 %v4630, 4294967208
        %v4706 = vlaneseq
        %v4707 = vshrl.u32 %v4706, 7
        %v4708 = vsub.s32 %v4705, %v4707
        %v4709 = vrot.slane %v4384, %v4708
        %vm4710 = vcmask 786112
        %v4711 = vsel %vm4710, %v4709, %v4704
        %v4712 = vadd.s32 %v4630, 4294967200
        %v4713 = vlaneseq
        %v4714 = vshrl.u32 %v4713, 7
        %v4715 = vsub.s32 %v4712, %v4714
        %v4716 = vrot.slane %v4385, %v4715
        %vm4717 = vcmask 851712
        %v4718 = vsel %vm4717, %v4716, %v4711
        %v4719 = vadd.s32 %v4630, 4294967192
        %v4720 = vlaneseq
        %v4721 = vshrl.u32 %v4720, 7
        %v4722 = vsub.s32 %v4719, %v4721
        %v4723 = vrot.slane %v4386, %v4722
        %vm4724 = vcmask 917312
        %v4725 = vsel %vm4724, %v4723, %v4718
        %v4726 = vadd.s32 %v4630, 4294967184
        %v4727 = vlaneseq
        %v4728 = vshrl.u32 %v4727, 7
        %v4729 = vsub.s32 %v4726, %v4728
        %v4730 = vrot.slane %v4387, %v4729
        %vm4731 = vcmask 982912
        %v4732 = vsel %vm4731, %v4730, %v4725
        %v4733 = vadd.s32 %v4630, 4294967176
        %v4734 = vlaneseq
        %v4735 = vshrl.u32 %v4734, 7
        %v4736 = vsub.s32 %v4733, %v4735
        %v4737 = vrot.slane %v4388, %v4736
        %vm4738 = vcmask 1048512
        %v4739 = vsel %vm4738, %v4737, %v4732
        %v4740 = vlaneseq
        %v4741 = vshrl.u32 %v4740, 7
        %v4742 = vsub.s32 %v4630, %v4741
        %v4743 = vrot.slane %v4389, %v4742
        %v4744 = vlaneseq
        %v4745 = vshrl.u32 %v4744, 7
        %v4746 = vsub.s32 %v4635, %v4745
        %v4747 = vrot.slane %v4390, %v4746
        %v4748 = vsel %vm4640, %v4747, %v4743
        %v4749 = vlaneseq
        %v4750 = vshrl.u32 %v4749, 7
        %v4751 = vsub.s32 %v4642, %v4750
        %v4752 = vrot.slane %v4391, %v4751
        %v4753 = vsel %vm4647, %v4752, %v4748
        %v4754 = vlaneseq
        %v4755 = vshrl.u32 %v4754, 7
        %v4756 = vsub.s32 %v4649, %v4755
        %v4757 = vrot.slane %v4392, %v4756
        %v4758 = vsel %vm4654, %v4757, %v4753
        %v4759 = vlaneseq
        %v4760 = vshrl.u32 %v4759, 7
        %v4761 = vsub.s32 %v4656, %v4760
        %v4762 = vrot.slane %v4393, %v4761
        %v4763 = vsel %vm4661, %v4762, %v4758
        %v4764 = vlaneseq
        %v4765 = vshrl.u32 %v4764, 7
        %v4766 = vsub.s32 %v4663, %v4765
        %v4767 = vrot.slane %v4394, %v4766
        %v4768 = vsel %vm4668, %v4767, %v4763
        %v4769 = vlaneseq
        %v4770 = vshrl.u32 %v4769, 7
        %v4771 = vsub.s32 %v4670, %v4770
        %v4772 = vrot.slane %v4395, %v4771
        %v4773 = vsel %vm4675, %v4772, %v4768
        %v4774 = vlaneseq
        %v4775 = vshrl.u32 %v4774, 7
        %v4776 = vsub.s32 %v4677, %v4775
        %v4777 = vrot.slane %v4396, %v4776
        %v4778 = vsel %vm4682, %v4777, %v4773
        %v4779 = vlaneseq
        %v4780 = vshrl.u32 %v4779, 7
        %v4781 = vsub.s32 %v4684, %v4780
        %v4782 = vrot.slane %v4397, %v4781
        %v4783 = vsel %vm4689, %v4782, %v4778
        %v4784 = vlaneseq
        %v4785 = vshrl.u32 %v4784, 7
        %v4786 = vsub.s32 %v4691, %v4785
        %v4787 = vrot.slane %v4398, %v4786
        %v4788 = vsel %vm4696, %v4787, %v4783
        %v4789 = vlaneseq
        %v4790 = vshrl.u32 %v4789, 7
        %v4791 = vsub.s32 %v4698, %v4790
        %v4792 = vrot.slane %v4399, %v4791
        %v4793 = vsel %vm4703, %v4792, %v4788
        %v4794 = vlaneseq
        %v4795 = vshrl.u32 %v4794, 7
        %v4796 = vsub.s32 %v4705, %v4795
        %v4797 = vrot.slane %v4400, %v4796
        %v4798 = vsel %vm4710, %v4797, %v4793
        %v4799 = vlaneseq
        %v4800 = vshrl.u32 %v4799, 7
        %v4801 = vsub.s32 %v4712, %v4800
        %v4802 = vrot.slane %v4401, %v4801
        %v4803 = vsel %vm4717, %v4802, %v4798
        %v4804 = vlaneseq
        %v4805 = vshrl.u32 %v4804, 7
        %v4806 = vsub.s32 %v4719, %v4805
        %v4807 = vrot.slane %v4402, %v4806
        %v4808 = vsel %vm4724, %v4807, %v4803
        %v4809 = vlaneseq
        %v4810 = vshrl.u32 %v4809, 7
        %v4811 = vsub.s32 %v4726, %v4810
        %v4812 = vrot.slane %v4403, %v4811
        %v4813 = vsel %vm4731, %v4812, %v4808
        %v4814 = vlaneseq
        %v4815 = vshrl.u32 %v4814, 7
        %v4816 = vsub.s32 %v4733, %v4815
        %v4817 = vrot.slane %v4404, %v4816
        %v4818 = vsel %vm4738, %v4817, %v4813
        %v4819 = vlaneseq
        %v4820 = vshrl.u32 %v4819, 7
        %v4821 = vsub.s32 %v4630, %v4820
        %v4822 = vrot.slane %v4405, %v4821
        %v4823 = vlaneseq
        %v4824 = vshrl.u32 %v4823, 7
        %v4825 = vsub.s32 %v4635, %v4824
        %v4826 = vrot.slane %v4406, %v4825
        %v4827 = vsel %vm4640, %v4826, %v4822
        %v4828 = vlaneseq
        %v4829 = vshrl.u32 %v4828, 7
        %v4830 = vsub.s32 %v4642, %v4829
        %v4831 = vrot.slane %v4407, %v4830
        %v4832 = vsel %vm4647, %v4831, %v4827
        %v4833 = vlaneseq
        %v4834 = vshrl.u32 %v4833, 7
        %v4835 = vsub.s32 %v4649, %v4834
        %v4836 = vrot.slane %v4408, %v4835
        %v4837 = vsel %vm4654, %v4836, %v4832
        %v4838 = vlaneseq
        %v4839 = vshrl.u32 %v4838, 7
        %v4840 = vsub.s32 %v4656, %v4839
        %v4841 = vrot.slane %v4409, %v4840
        %v4842 = vsel %vm4661, %v4841, %v4837
        %v4843 = vlaneseq
        %v4844 = vshrl.u32 %v4843, 7
        %v4845 = vsub.s32 %v4663, %v4844
        %v4846 = vrot.slane %v4410, %v4845
        %v4847 = vsel %vm4668, %v4846, %v4842
        %v4848 = vlaneseq
        %v4849 = vshrl.u32 %v4848, 7
        %v4850 = vsub.s32 %v4670, %v4849
        %v4851 = vrot.slane %v4411, %v4850
        %v4852 = vsel %vm4675, %v4851, %v4847
        %v4853 = vlaneseq
        %v4854 = vshrl.u32 %v4853, 7
        %v4855 = vsub.s32 %v4677, %v4854
        %v4856 = vrot.slane %v4412, %v4855
        %v4857 = vsel %vm4682, %v4856, %v4852
        %v4858 = vlaneseq
        %v4859 = vshrl.u32 %v4858, 7
        %v4860 = vsub.s32 %v4684, %v4859
        %v4861 = vrot.slane %v4413, %v4860
        %v4862 = vsel %vm4689, %v4861, %v4857
        %v4863 = vlaneseq
        %v4864 = vshrl.u32 %v4863, 7
        %v4865 = vsub.s32 %v4691, %v4864
        %v4866 = vrot.slane %v4414, %v4865
        %v4867 = vsel %vm4696, %v4866, %v4862
        %v4868 = vlaneseq
        %v4869 = vshrl.u32 %v4868, 7
        %v4870 = vsub.s32 %v4698, %v4869
        %v4871 = vrot.slane %v4415, %v4870
        %v4872 = vsel %vm4703, %v4871, %v4867
        %v4873 = vlaneseq
        %v4874 = vshrl.u32 %v4873, 7
        %v4875 = vsub.s32 %v4705, %v4874
        %v4876 = vrot.slane %v4416, %v4875
        %v4877 = vsel %vm4710, %v4876, %v4872
        %v4878 = vlaneseq
        %v4879 = vshrl.u32 %v4878, 7
        %v4880 = vsub.s32 %v4712, %v4879
        %v4881 = vrot.slane %v4417, %v4880
        %v4882 = vsel %vm4717, %v4881, %v4877
        %v4883 = vlaneseq
        %v4884 = vshrl.u32 %v4883, 7
        %v4885 = vsub.s32 %v4719, %v4884
        %v4886 = vrot.slane %v4418, %v4885
        %v4887 = vsel %vm4724, %v4886, %v4882
        %v4888 = vlaneseq
        %v4889 = vshrl.u32 %v4888, 7
        %v4890 = vsub.s32 %v4726, %v4889
        %v4891 = vrot.slane %v4419, %v4890
        %v4892 = vsel %vm4731, %v4891, %v4887
        %v4893 = vlaneseq
        %v4894 = vshrl.u32 %v4893, 7
        %v4895 = vsub.s32 %v4733, %v4894
        %v4896 = vrot.slane %v4420, %v4895
        %v4897 = vsel %vm4738, %v4896, %v4892
        %v4898 = vlaneseq
        %v4899 = vshrl.u32 %v4898, 7
        %v4900 = vsub.s32 %v4630, %v4899
        %v4901 = vrot.slane %v4421, %v4900
        %v4902 = vlaneseq
        %v4903 = vshrl.u32 %v4902, 7
        %v4904 = vsub.s32 %v4635, %v4903
        %v4905 = vrot.slane %v4422, %v4904
        %v4906 = vsel %vm4640, %v4905, %v4901
        %v4907 = vlaneseq
        %v4908 = vshrl.u32 %v4907, 7
        %v4909 = vsub.s32 %v4642, %v4908
        %v4910 = vrot.slane %v4423, %v4909
        %v4911 = vsel %vm4647, %v4910, %v4906
        %v4912 = vlaneseq
        %v4913 = vshrl.u32 %v4912, 7
        %v4914 = vsub.s32 %v4649, %v4913
        %v4915 = vrot.slane %v4424, %v4914
        %v4916 = vsel %vm4654, %v4915, %v4911
        %v4917 = vlaneseq
        %v4918 = vshrl.u32 %v4917, 7
        %v4919 = vsub.s32 %v4656, %v4918
        %v4920 = vrot.slane %v4425, %v4919
        %v4921 = vsel %vm4661, %v4920, %v4916
        %v4922 = vlaneseq
        %v4923 = vshrl.u32 %v4922, 7
        %v4924 = vsub.s32 %v4663, %v4923
        %v4925 = vrot.slane %v4426, %v4924
        %v4926 = vsel %vm4668, %v4925, %v4921
        %v4927 = vlaneseq
        %v4928 = vshrl.u32 %v4927, 7
        %v4929 = vsub.s32 %v4670, %v4928
        %v4930 = vrot.slane %v4427, %v4929
        %v4931 = vsel %vm4675, %v4930, %v4926
        %v4932 = vlaneseq
        %v4933 = vshrl.u32 %v4932, 7
        %v4934 = vsub.s32 %v4677, %v4933
        %v4935 = vrot.slane %v4428, %v4934
        %v4936 = vsel %vm4682, %v4935, %v4931
        %v4937 = vlaneseq
        %v4938 = vshrl.u32 %v4937, 7
        %v4939 = vsub.s32 %v4684, %v4938
        %v4940 = vrot.slane %v4429, %v4939
        %v4941 = vsel %vm4689, %v4940, %v4936
        %v4942 = vlaneseq
        %v4943 = vshrl.u32 %v4942, 7
        %v4944 = vsub.s32 %v4691, %v4943
        %v4945 = vrot.slane %v4430, %v4944
        %v4946 = vsel %vm4696, %v4945, %v4941
        %v4947 = vlaneseq
        %v4948 = vshrl.u32 %v4947, 7
        %v4949 = vsub.s32 %v4698, %v4948
        %v4950 = vrot.slane %v4431, %v4949
        %v4951 = vsel %vm4703, %v4950, %v4946
        %v4952 = vlaneseq
        %v4953 = vshrl.u32 %v4952, 7
        %v4954 = vsub.s32 %v4705, %v4953
        %v4955 = vrot.slane %v4432, %v4954
        %v4956 = vsel %vm4710, %v4955, %v4951
        %v4957 = vlaneseq
        %v4958 = vshrl.u32 %v4957, 7
        %v4959 = vsub.s32 %v4712, %v4958
        %v4960 = vrot.slane %v4433, %v4959
        %v4961 = vsel %vm4717, %v4960, %v4956
        %v4962 = vlaneseq
        %v4963 = vshrl.u32 %v4962, 7
        %v4964 = vsub.s32 %v4719, %v4963
        %v4965 = vrot.slane %v4434, %v4964
        %v4966 = vsel %vm4724, %v4965, %v4961
        %v4967 = vlaneseq
        %v4968 = vshrl.u32 %v4967, 7
        %v4969 = vsub.s32 %v4726, %v4968
        %v4970 = vrot.slane %v4435, %v4969
        %v4971 = vsel %vm4731, %v4970, %v4966
        %v4972 = vlaneseq
        %v4973 = vshrl.u32 %v4972, 7
        %v4974 = vsub.s32 %v4733, %v4973
        %v4975 = vrot.slane %v4436, %v4974
        %v4976 = vsel %vm4738, %v4975, %v4971
        %v4977 = vlaneseq
        %v4978 = vshrl.u32 %v4977, 7
        %v4979 = vsub.s32 %v4630, %v4978
        %v4980 = vrot.slane %v4437, %v4979
        %v4981 = vlaneseq
        %v4982 = vshrl.u32 %v4981, 7
        %v4983 = vsub.s32 %v4635, %v4982
        %v4984 = vrot.slane %v4438, %v4983
        %v4985 = vsel %vm4640, %v4984, %v4980
        %v4986 = vlaneseq
        %v4987 = vshrl.u32 %v4986, 7
        %v4988 = vsub.s32 %v4642, %v4987
        %v4989 = vrot.slane %v4439, %v4988
        %v4990 = vsel %vm4647, %v4989, %v4985
        %v4991 = vlaneseq
        %v4992 = vshrl.u32 %v4991, 7
        %v4993 = vsub.s32 %v4649, %v4992
        %v4994 = vrot.slane %v4440, %v4993
        %v4995 = vsel %vm4654, %v4994, %v4990
        %v4996 = vlaneseq
        %v4997 = vshrl.u32 %v4996, 7
        %v4998 = vsub.s32 %v4656, %v4997
        %v4999 = vrot.slane %v4441, %v4998
        %v5000 = vsel %vm4661, %v4999, %v4995
        %v5001 = vlaneseq
        %v5002 = vshrl.u32 %v5001, 7
        %v5003 = vsub.s32 %v4663, %v5002
        %v5004 = vrot.slane %v4442, %v5003
        %v5005 = vsel %vm4668, %v5004, %v5000
        %v5006 = vlaneseq
        %v5007 = vshrl.u32 %v5006, 7
        %v5008 = vsub.s32 %v4670, %v5007
        %v5009 = vrot.slane %v4443, %v5008
        %v5010 = vsel %vm4675, %v5009, %v5005
        %v5011 = vlaneseq
        %v5012 = vshrl.u32 %v5011, 7
        %v5013 = vsub.s32 %v4677, %v5012
        %v5014 = vrot.slane %v4444, %v5013
        %v5015 = vsel %vm4682, %v5014, %v5010
        %v5016 = vlaneseq
        %v5017 = vshrl.u32 %v5016, 7
        %v5018 = vsub.s32 %v4684, %v5017
        %v5019 = vrot.slane %v4445, %v5018
        %v5020 = vsel %vm4689, %v5019, %v5015
        %v5021 = vlaneseq
        %v5022 = vshrl.u32 %v5021, 7
        %v5023 = vsub.s32 %v4691, %v5022
        %v5024 = vrot.slane %v4446, %v5023
        %v5025 = vsel %vm4696, %v5024, %v5020
        %v5026 = vlaneseq
        %v5027 = vshrl.u32 %v5026, 7
        %v5028 = vsub.s32 %v4698, %v5027
        %v5029 = vrot.slane %v4447, %v5028
        %v5030 = vsel %vm4703, %v5029, %v5025
        %v5031 = vlaneseq
        %v5032 = vshrl.u32 %v5031, 7
        %v5033 = vsub.s32 %v4705, %v5032
        %v5034 = vrot.slane %v4448, %v5033
        %v5035 = vsel %vm4710, %v5034, %v5030
        %v5036 = vlaneseq
        %v5037 = vshrl.u32 %v5036, 7
        %v5038 = vsub.s32 %v4712, %v5037
        %v5039 = vrot.slane %v4449, %v5038
        %v5040 = vsel %vm4717, %v5039, %v5035
        %v5041 = vlaneseq
        %v5042 = vshrl.u32 %v5041, 7
        %v5043 = vsub.s32 %v4719, %v5042
        %v5044 = vrot.slane %v4450, %v5043
        %v5045 = vsel %vm4724, %v5044, %v5040
        %v5046 = vlaneseq
        %v5047 = vshrl.u32 %v5046, 7
        %v5048 = vsub.s32 %v4726, %v5047
        %v5049 = vrot.slane %v4451, %v5048
        %v5050 = vsel %vm4731, %v5049, %v5045
        %v5051 = vlaneseq
        %v5052 = vshrl.u32 %v5051, 7
        %v5053 = vsub.s32 %v4733, %v5052
        %v5054 = vrot.slane %v4452, %v5053
        %v5055 = vsel %vm4738, %v5054, %v5050
        %v5056 = vlaneseq
        %v5057 = vshrl.u32 %v5056, 7
        %v5058 = vsub.s32 %v4630, %v5057
        %v5059 = vrot.slane %v4453, %v5058
        %v5060 = vlaneseq
        %v5061 = vshrl.u32 %v5060, 7
        %v5062 = vsub.s32 %v4635, %v5061
        %v5063 = vrot.slane %v4454, %v5062
        %v5064 = vsel %vm4640, %v5063, %v5059
        %v5065 = vlaneseq
        %v5066 = vshrl.u32 %v5065, 7
        %v5067 = vsub.s32 %v4642, %v5066
        %v5068 = vrot.slane %v4455, %v5067
        %v5069 = vsel %vm4647, %v5068, %v5064
        %v5070 = vlaneseq
        %v5071 = vshrl.u32 %v5070, 7
        %v5072 = vsub.s32 %v4649, %v5071
        %v5073 = vrot.slane %v4456, %v5072
        %v5074 = vsel %vm4654, %v5073, %v5069
        %v5075 = vlaneseq
        %v5076 = vshrl.u32 %v5075, 7
        %v5077 = vsub.s32 %v4656, %v5076
        %v5078 = vrot.slane %v4457, %v5077
        %v5079 = vsel %vm4661, %v5078, %v5074
        %v5080 = vlaneseq
        %v5081 = vshrl.u32 %v5080, 7
        %v5082 = vsub.s32 %v4663, %v5081
        %v5083 = vrot.slane %v4458, %v5082
        %v5084 = vsel %vm4668, %v5083, %v5079
        %v5085 = vlaneseq
        %v5086 = vshrl.u32 %v5085, 7
        %v5087 = vsub.s32 %v4670, %v5086
        %v5088 = vrot.slane %v4459, %v5087
        %v5089 = vsel %vm4675, %v5088, %v5084
        %v5090 = vlaneseq
        %v5091 = vshrl.u32 %v5090, 7
        %v5092 = vsub.s32 %v4677, %v5091
        %v5093 = vrot.slane %v4460, %v5092
        %v5094 = vsel %vm4682, %v5093, %v5089
        %v5095 = vlaneseq
        %v5096 = vshrl.u32 %v5095, 7
        %v5097 = vsub.s32 %v4684, %v5096
        %v5098 = vrot.slane %v4461, %v5097
        %v5099 = vsel %vm4689, %v5098, %v5094
        %v5100 = vlaneseq
        %v5101 = vshrl.u32 %v5100, 7
        %v5102 = vsub.s32 %v4691, %v5101
        %v5103 = vrot.slane %v4462, %v5102
        %v5104 = vsel %vm4696, %v5103, %v5099
        %v5105 = vlaneseq
        %v5106 = vshrl.u32 %v5105, 7
        %v5107 = vsub.s32 %v4698, %v5106
        %v5108 = vrot.slane %v4463, %v5107
        %v5109 = vsel %vm4703, %v5108, %v5104
        %v5110 = vlaneseq
        %v5111 = vshrl.u32 %v5110, 7
        %v5112 = vsub.s32 %v4705, %v5111
        %v5113 = vrot.slane %v4464, %v5112
        %v5114 = vsel %vm4710, %v5113, %v5109
        %v5115 = vlaneseq
        %v5116 = vshrl.u32 %v5115, 7
        %v5117 = vsub.s32 %v4712, %v5116
        %v5118 = vrot.slane %v4465, %v5117
        %v5119 = vsel %vm4717, %v5118, %v5114
        %v5120 = vlaneseq
        %v5121 = vshrl.u32 %v5120, 7
        %v5122 = vsub.s32 %v4719, %v5121
        %v5123 = vrot.slane %v4466, %v5122
        %v5124 = vsel %vm4724, %v5123, %v5119
        %v5125 = vlaneseq
        %v5126 = vshrl.u32 %v5125, 7
        %v5127 = vsub.s32 %v4726, %v5126
        %v5128 = vrot.slane %v4467, %v5127
        %v5129 = vsel %vm4731, %v5128, %v5124
        %v5130 = vlaneseq
        %v5131 = vshrl.u32 %v5130, 7
        %v5132 = vsub.s32 %v4733, %v5131
        %v5133 = vrot.slane %v4468, %v5132
        %v5134 = vsel %vm4738, %v5133, %v5129
        %v5135 = vlaneseq
        %v5136 = vshrl.u32 %v5135, 7
        %v5137 = vsub.s32 %v4630, %v5136
        %v5138 = vrot.slane %v4469, %v5137
        %v5139 = vlaneseq
        %v5140 = vshrl.u32 %v5139, 7
        %v5141 = vsub.s32 %v4635, %v5140
        %v5142 = vrot.slane %v4470, %v5141
        %v5143 = vsel %vm4640, %v5142, %v5138
        %v5144 = vlaneseq
        %v5145 = vshrl.u32 %v5144, 7
        %v5146 = vsub.s32 %v4642, %v5145
        %v5147 = vrot.slane %v4471, %v5146
        %v5148 = vsel %vm4647, %v5147, %v5143
        %v5149 = vlaneseq
        %v5150 = vshrl.u32 %v5149, 7
        %v5151 = vsub.s32 %v4649, %v5150
        %v5152 = vrot.slane %v4472, %v5151
        %v5153 = vsel %vm4654, %v5152, %v5148
        %v5154 = vlaneseq
        %v5155 = vshrl.u32 %v5154, 7
        %v5156 = vsub.s32 %v4656, %v5155
        %v5157 = vrot.slane %v4473, %v5156
        %v5158 = vsel %vm4661, %v5157, %v5153
        %v5159 = vlaneseq
        %v5160 = vshrl.u32 %v5159, 7
        %v5161 = vsub.s32 %v4663, %v5160
        %v5162 = vrot.slane %v4474, %v5161
        %v5163 = vsel %vm4668, %v5162, %v5158
        %v5164 = vlaneseq
        %v5165 = vshrl.u32 %v5164, 7
        %v5166 = vsub.s32 %v4670, %v5165
        %v5167 = vrot.slane %v4475, %v5166
        %v5168 = vsel %vm4675, %v5167, %v5163
        %v5169 = vlaneseq
        %v5170 = vshrl.u32 %v5169, 7
        %v5171 = vsub.s32 %v4677, %v5170
        %v5172 = vrot.slane %v4476, %v5171
        %v5173 = vsel %vm4682, %v5172, %v5168
        %v5174 = vlaneseq
        %v5175 = vshrl.u32 %v5174, 7
        %v5176 = vsub.s32 %v4684, %v5175
        %v5177 = vrot.slane %v4477, %v5176
        %v5178 = vsel %vm4689, %v5177, %v5173
        %v5179 = vlaneseq
        %v5180 = vshrl.u32 %v5179, 7
        %v5181 = vsub.s32 %v4691, %v5180
        %v5182 = vrot.slane %v4478, %v5181
        %v5183 = vsel %vm4696, %v5182, %v5178
        %v5184 = vlaneseq
        %v5185 = vshrl.u32 %v5184, 7
        %v5186 = vsub.s32 %v4698, %v5185
        %v5187 = vrot.slane %v4479, %v5186
        %v5188 = vsel %vm4703, %v5187, %v5183
        %v5189 = vlaneseq
        %v5190 = vshrl.u32 %v5189, 7
        %v5191 = vsub.s32 %v4705, %v5190
        %v5192 = vrot.slane %v4480, %v5191
        %v5193 = vsel %vm4710, %v5192, %v5188
        %v5194 = vlaneseq
        %v5195 = vshrl.u32 %v5194, 7
        %v5196 = vsub.s32 %v4712, %v5195
        %v5197 = vrot.slane %v4481, %v5196
        %v5198 = vsel %vm4717, %v5197, %v5193
        %v5199 = vlaneseq
        %v5200 = vshrl.u32 %v5199, 7
        %v5201 = vsub.s32 %v4719, %v5200
        %v5202 = vrot.slane %v4482, %v5201
        %v5203 = vsel %vm4724, %v5202, %v5198
        %v5204 = vlaneseq
        %v5205 = vshrl.u32 %v5204, 7
        %v5206 = vsub.s32 %v4726, %v5205
        %v5207 = vrot.slane %v4483, %v5206
        %v5208 = vsel %vm4731, %v5207, %v5203
        %v5209 = vlaneseq
        %v5210 = vshrl.u32 %v5209, 7
        %v5211 = vsub.s32 %v4733, %v5210
        %v5212 = vrot.slane %v4484, %v5211
        %v5213 = vsel %vm4738, %v5212, %v5208
        %v5214 = vlaneseq
        %v5215 = vshrl.u32 %v5214, 7
        %v5216 = vsub.s32 %v4630, %v5215
        %v5217 = vrot.slane %v4485, %v5216
        %v5218 = vlaneseq
        %v5219 = vshrl.u32 %v5218, 7
        %v5220 = vsub.s32 %v4635, %v5219
        %v5221 = vrot.slane %v4486, %v5220
        %v5222 = vsel %vm4640, %v5221, %v5217
        %v5223 = vlaneseq
        %v5224 = vshrl.u32 %v5223, 7
        %v5225 = vsub.s32 %v4642, %v5224
        %v5226 = vrot.slane %v4487, %v5225
        %v5227 = vsel %vm4647, %v5226, %v5222
        %v5228 = vlaneseq
        %v5229 = vshrl.u32 %v5228, 7
        %v5230 = vsub.s32 %v4649, %v5229
        %v5231 = vrot.slane %v4488, %v5230
        %v5232 = vsel %vm4654, %v5231, %v5227
        %v5233 = vlaneseq
        %v5234 = vshrl.u32 %v5233, 7
        %v5235 = vsub.s32 %v4656, %v5234
        %v5236 = vrot.slane %v4489, %v5235
        %v5237 = vsel %vm4661, %v5236, %v5232
        %v5238 = vlaneseq
        %v5239 = vshrl.u32 %v5238, 7
        %v5240 = vsub.s32 %v4663, %v5239
        %v5241 = vrot.slane %v4490, %v5240
        %v5242 = vsel %vm4668, %v5241, %v5237
        %v5243 = vlaneseq
        %v5244 = vshrl.u32 %v5243, 7
        %v5245 = vsub.s32 %v4670, %v5244
        %v5246 = vrot.slane %v4491, %v5245
        %v5247 = vsel %vm4675, %v5246, %v5242
        %v5248 = vlaneseq
        %v5249 = vshrl.u32 %v5248, 7
        %v5250 = vsub.s32 %v4677, %v5249
        %v5251 = vrot.slane %v4492, %v5250
        %v5252 = vsel %vm4682, %v5251, %v5247
        %v5253 = vlaneseq
        %v5254 = vshrl.u32 %v5253, 7
        %v5255 = vsub.s32 %v4684, %v5254
        %v5256 = vrot.slane %v4493, %v5255
        %v5257 = vsel %vm4689, %v5256, %v5252
        %v5258 = vlaneseq
        %v5259 = vshrl.u32 %v5258, 7
        %v5260 = vsub.s32 %v4691, %v5259
        %v5261 = vrot.slane %v4494, %v5260
        %v5262 = vsel %vm4696, %v5261, %v5257
        %v5263 = vlaneseq
        %v5264 = vshrl.u32 %v5263, 7
        %v5265 = vsub.s32 %v4698, %v5264
        %v5266 = vrot.slane %v4495, %v5265
        %v5267 = vsel %vm4703, %v5266, %v5262
        %v5268 = vlaneseq
        %v5269 = vshrl.u32 %v5268, 7
        %v5270 = vsub.s32 %v4705, %v5269
        %v5271 = vrot.slane %v4496, %v5270
        %v5272 = vsel %vm4710, %v5271, %v5267
        %v5273 = vlaneseq
        %v5274 = vshrl.u32 %v5273, 7
        %v5275 = vsub.s32 %v4712, %v5274
        %v5276 = vrot.slane %v4497, %v5275
        %v5277 = vsel %vm4717, %v5276, %v5272
        %v5278 = vlaneseq
        %v5279 = vshrl.u32 %v5278, 7
        %v5280 = vsub.s32 %v4719, %v5279
        %v5281 = vrot.slane %v4498, %v5280
        %v5282 = vsel %vm4724, %v5281, %v5277
        %v5283 = vlaneseq
        %v5284 = vshrl.u32 %v5283, 7
        %v5285 = vsub.s32 %v4726, %v5284
        %v5286 = vrot.slane %v4499, %v5285
        %v5287 = vsel %vm4731, %v5286, %v5282
        %v5288 = vlaneseq
        %v5289 = vshrl.u32 %v5288, 7
        %v5290 = vsub.s32 %v4733, %v5289
        %v5291 = vrot.slane %v4500, %v5290
        %v5292 = vsel %vm4738, %v5291, %v5287
        %vm5293 = vcmask 1041409
        %v5294 = vsel %vm5293, %v4818, %v4739
        %vm5295 = vcmask 1042434
        %v5296 = vsel %vm5295, %v4897, %v5294
        %vm5297 = vcmask 1043459
        %v5298 = vsel %vm5297, %v4976, %v5296
        %vm5299 = vcmask 1044484
        %v5300 = vsel %vm5299, %v5055, %v5298
        %vm5301 = vcmask 1045509
        %v5302 = vsel %vm5301, %v5134, %v5300
        %vm5303 = vcmask 1046534
        %v5304 = vsel %vm5303, %v5213, %v5302
        %vm5305 = vcmask 1047559
        %v5306 = vsel %vm5305, %v5292, %v5304
        %5308 = vst [vmem:[%s274] sm:$0xff] %v5306
        %s5309 = sand.u32 %s183, 1
        %s5310 = scalar_lea.sflag [#allocation4], %s5309
        %s5311 = sand.u32 %s183, 1
        %s5312 = smul.addr %s5311, 8
        %s5313 = scalar_lea.vmem [#allocation3], %s5312
        // Predicated region
        $region49: #{tpu_custom_call.1} parent=47 // pred_check
          %p5314 = pneg %p193
        $region50: #{tpu_custom_call.1} parent=47 // pred_check_branch
          %5316 = sbr.rel (%p5314) target = $region52
        $region51: #{tpu_custom_call.1} parent=47 // pred_region
          %s5318 = ssub.s32 128, 128
          %5319 = vsyncadd %s5310, %s5318
          %s5320 = smul.addr %s23, 128
          %s5321 = scalar_lea.hbm %s7, %s5320
          %s5323 = sshll.u32 %s5313, 4
          %s5324 = int_to_ptr.vmem [resolvable:$true] %s5323
          %5326 = dma.vmem_to_hbm [thread:$0]  %s5324, 128, %s5321, %s5310
        $region52: #{tpu_custom_call.1} parent=47 // pred_fallthru
          _
      $region48: #{tpu_custom_call.1} parent=5 // pred_fallthru
        _
      %p5327 = scmp.le.s32.totalorder 2, %s18
      // Predicated region
      $region53: #{tpu_custom_call.1} parent=5 // pred_check
        %p5328 = pneg %p5327
      $region54: #{tpu_custom_call.1} parent=5 // pred_check_branch
        %5330 = sbr.rel (%p5328) target = $region56
      $region55: #{tpu_custom_call.1} parent=5 // pred_region
        %s5331 = ssub.s32 %s18, 2
        // Predicated region
        $region57: #{tpu_custom_call.1} parent=55 // pred_check
          %p5332 = pneg %p199
        $region58: #{tpu_custom_call.1} parent=55 // pred_check_branch
          %5334 = sbr.rel (%p5332) target = $region60
        $region59: #{tpu_custom_call.1} parent=55 // pred_region
          %s5335 = sand.u32 %s184, 1
          %s5336 = scalar_lea.sflag [#allocation4], %s5335
          %s5337 = sand.u32 %s184, 1
          %s5338 = smul.addr %s5337, 8
          %s5339 = scalar_lea.vmem [#allocation3], %s5338
          %5340 = dma.done %s5336, 128
        $region60: #{tpu_custom_call.1} parent=55 // pred_fallthru
          _
      $region56: #{tpu_custom_call.1} parent=5 // pred_fallthru
        _
    $region6: #{tpu_custom_call.1} parent=1 // loop_footer
      %s22 = sadd.s32 1, %s18
    $region7: #{tpu_custom_call.1} parent=1 // loop_footer_branch
      %17 = sbr.rel target = $region3
    $region8: #{tpu_custom_call.1} parent=1 // loop_exit
      _
    %5341 = vsyncpa [#allocation4], 1
    %s5342 = scalar_lea.sflag [#allocation4], 1
    %5343 = vsyncpa %s5342, 1

</llo_original>
